<compile_context>
chip_gen: v6e
topology: v6e:2x2x1
jax: 0.10.0
libtpu: 0.0.40
codegen_flags: <defaults>
</compile_context>

<pallas_src>
import functools

import jax
import jax.numpy as jnp
from jax import lax
from jax.experimental import pallas as pl
from jax.experimental.pallas import tpu as pltpu

# ---- hyperparameters (production embedding width; heads chosen so hs = 128 is lane-dense) ----
N_EMBD = 384       # n_embd (matches the PyTorch module)
N_HEADS = 3        # n
HEAD_SIZE = 128    # size  (n * size == n_embd so proj(n_embd, n_embd) works)
assert N_HEADS * HEAD_SIZE == N_EMBD


def _multihead_kernel(x_ref, wqkv_ref, wp_ref, bp_ref, o_ref, *, n_heads, head_size):
    """One grid step = one (BB, T, C) batch block.

    x_ref   : (BB, T, C)  input block (bf16 recommended on v6e/v7x; any float works)
    wqkv_ref: (C, 3C)     fused [Wq * C**-0.5 | Wk | Wv], pre-transposed so x @ W works
    wp_ref  : (C, C)      proj weight (transposed)
    bp_ref  : (1, C)      proj bias
    o_ref   : (BB, T, C)  float32 output block
    """
    bb, T, C = x_ref.shape
    M = bb * T
    cdt = x_ref.dtype            # MXU input dtype; accumulation & softmax stay f32

    # Fused QKV projection: one lane-dense (M, 3C) matmul with f32 accumulation.
    x2d = x_ref[...].reshape(M, C)                       # leading-dim merge only
    qkv = jnp.dot(x2d, wqkv_ref[...], preferred_element_type=jnp.float32)

    # Causal mask, shared across heads and the folded batch.
    row = lax.broadcasted_iota(jnp.int32, (1, T, T), 1)
    col = lax.broadcasted_iota(jnp.int32, (1, T, T), 2)
    causal = col <= row

    # Output accumulator: project each head's slab directly (replaces concat + matmul).
    y = jnp.zeros((M, C), jnp.float32) + bp_ref[...].astype(jnp.float32)

    for h in range(n_heads):
        lo = h * head_size
        hi = lo + head_size
        # 128-lane, tile-aligned slabs; reshapes split the leading (sublane) dim only.
        q_h = qkv[:, lo:hi].reshape(bb, T, head_size).astype(cdt)
        k_h = qkv[:, C + lo:C + hi].reshape(bb, T, head_size).astype(cdt)
        v_h = qkv[:, 2 * C + lo:2 * C + hi].reshape(bb, T, head_size).astype(cdt)

        # Scores (the C**-0.5 scale is already folded into the Wq slab of wqkv).
        s = jnp.einsum('bqd,bkd->bqk', q_h, k_h,
                       preferred_element_type=jnp.float32)           # (bb, T, T) f32
        s = s - jnp.max(s, axis=-1, keepdims=True)
        p = jnp.where(causal, jnp.exp(s), 0.0)                        # mask after exp
        p = p * pl.reciprocal(jnp.sum(p, axis=-1, keepdims=True), approx=True)

        attn = jnp.einsum('bqk,bkd->bqd', p.astype(cdt), v_h,
                          preferred_element_type=jnp.float32)         # (bb, T, hs)

        # out @ Wp == sum_h out_h @ Wp[h*hs:(h+1)*hs, :]  -> accumulate, no concat.
        y = y + jnp.dot(attn.reshape(M, head_size).astype(cdt),
                        wp_ref[lo:hi, :],
                        preferred_element_type=jnp.float32)

    o_ref[...] = y.reshape(bb, T, C).astype(o_ref.dtype)              # lane-dense store


def multihead_forward(x, wqkv, wp_t, bp, *, n_heads=N_HEADS, head_size=HEAD_SIZE,
                      batch_block=2):
    """x: (B, T, C). wqkv: (C, 3C) fused [Wq*C**-0.5 | Wk | Wv] (pre-transposed).
    wp_t: (C, C) transposed proj weight, bp: (1, C) proj bias. Output is float32."""
    B, T, C = x.shape
    assert C == n_heads * head_size
    bb = min(batch_block, B)
    assert B % bb == 0, "batch must be divisible by batch_block"
    kernel = functools.partial(_multihead_kernel, n_heads=n_heads, head_size=head_size)
    return pl.pallas_call(
        kernel,
        out_shape=jax.ShapeDtypeStruct((B, T, C), jnp.float32),
        grid_spec=pltpu.PrefetchScalarGridSpec(
            num_scalar_prefetch=0,
            grid=(B // bb,),
            in_specs=[
                pl.BlockSpec((bb, T, C), lambda i: (i, 0, 0)),    # x (batch block)
                pl.BlockSpec((C, 3 * C), lambda i: (0, 0)),       # fused [Wq|Wk|Wv]
                pl.BlockSpec((C, C), lambda i: (0, 0)),           # Wproj^T
                pl.BlockSpec((1, C), lambda i: (0, 0)),           # proj bias
            ],
            out_specs=pl.BlockSpec((bb, T, C), lambda i: (i, 0, 0)),
        ),
        # Batch-block axis is "parallel": with B // bb >= 2 both v7x TensorCores get
        # work; on single-TC v5e/v6e it is just a sequential loop.
        # TODO(synk): when scaling T / batch_block to production sizes, set
        # vmem_limit_bytes here and re-derive batch_block for v7x's 64 MiB VMEM.
        compiler_params=pltpu.CompilerParams(dimension_semantics=("parallel",)),
    )(x, wqkv, wp_t, bp)


def _reference_forward(x, wq_cat, wk_cat, wv_cat, wp_t, bp):
    """Pure-JAX float32 reference mirroring the PyTorch forward (eval mode)."""
    B, T, C = x.shape
    scale = C ** -0.5                     # module uses C**-0.5 with C = n_embd
    tril = jnp.tril(jnp.ones((T, T), dtype=bool))
    heads = []
    for h in range(N_HEADS):
        lo, hi = h * HEAD_SIZE, (h + 1) * HEAD_SIZE
        q = x @ wq_cat[:, lo:hi]
        k = x @ wk_cat[:, lo:hi]
        v = x @ wv_cat[:, lo:hi]
        wei = (q @ jnp.swapaxes(k, -2, -1)) * scale
        wei = jnp.where(tril, wei, -jnp.inf)
        wei = jax.nn.softmax(wei, axis=-1)
        heads.append(wei @ v)
    out = jnp.concatenate(heads, axis=-1)
    return out @ wp_t + bp[0]


if __name__ == "__main__":
    key = jax.random.PRNGKey(0)
    k_x, k_q, k_k, k_v, k_p, k_b = jax.random.split(key, 6)

    B, T, C = 4, 16, N_EMBD
    x = jax.random.normal(k_x, (B, T, C), dtype=jnp.float32)

    # PyTorch-style init: Linear weight ~ U(-1/sqrt(fan_in), 1/sqrt(fan_in)).
    # Per-head Q/K/V weights are concatenated along the output-feature axis and stored
    # transposed as (C, H*hs) so the kernel does x @ W directly (== x @ W_torch^T).
    bound = 1.0 / (C ** 0.5)
    wq_cat = jax.random.uniform(k_q, (C, N_HEADS * HEAD_SIZE), jnp.float32, -bound, bound)
    wk_cat = jax.random.uniform(k_k, (C, N_HEADS * HEAD_SIZE), jnp.float32, -bound, bound)
    wv_cat = jax.random.uniform(k_v, (C, N_HEADS * HEAD_SIZE), jnp.float32, -bound, bound)
    wp_t = jax.random.uniform(k_p, (C, C), jnp.float32, -bound, bound)   # proj weight^T
    bp = jax.random.uniform(k_b, (1, C), jnp.float32, -bound, bound)     # proj bias

    # One-time host-side weight prep: fold the C**-0.5 score scale into Wq and fuse
    # [Wq | Wk | Wv] into a single (C, 3C) matrix (one matmul, one DMA stream).
    wqkv = jnp.concatenate([wq_cat * (C ** -0.5), wk_cat, wv_cat], axis=1)

    # bf16 matmul inputs (v6e/v7x guidance); accumulation & softmax stay f32 in-kernel.
    run_dtype = jnp.bfloat16
    out = multihead_forward(x.astype(run_dtype), wqkv.astype(run_dtype),
                            wp_t.astype(run_dtype), bp.astype(run_dtype))
    out = jax.block_until_ready(out)

    ref = _reference_forward(x, wq_cat, wk_cat, wv_cat, wp_t, bp)
    assert out.shape == (B, T, C)
    # Tolerance covers bf16 matmul inputs + approx-reciprocal softmax vs. the f32 reference.
    assert jnp.allclose(out, ref, rtol=2e-2, atol=2e-2), "mismatch vs pure-JAX reference"

    print("KERNEL_OK")
</pallas_src>

<mosaic_0001>
module attributes {stable_mosaic.version = 11 : i64} {
  func.func @_multihead_kernel(%arg0: i32, %arg1: memref<2x16x384xbf16, #tpu.memory_space<vmem>>, %arg2: memref<384x1152xbf16, #tpu.memory_space<vmem>>, %arg3: memref<384x384xbf16, #tpu.memory_space<vmem>>, %arg4: memref<1x384xbf16, #tpu.memory_space<vmem>>, %arg5: memref<2x16x384xf32, #tpu.memory_space<vmem>>) attributes {dimension_semantics = [#tpu.dimension_semantics<parallel>], iteration_bounds = array<i64: 2>, scalar_prefetch = 0 : i64, scratch_operands = 0 : i64, tpu.core_type = #tpu.core_type<tc>, window_params = [{transform_indices = @transform_0, window_bounds = array<i64: 2, 16, 384>}, {pipeline_mode = #tpu.pipeline_mode<synchronous>, transform_indices = @transform_1, window_bounds = array<i64: 384, 1152>}, {pipeline_mode = #tpu.pipeline_mode<synchronous>, transform_indices = @transform_2, window_bounds = array<i64: 384, 384>}, {pipeline_mode = #tpu.pipeline_mode<synchronous>, transform_indices = @transform_3, window_bounds = array<i64: 1, 384>}, {transform_indices = @transform_4, window_bounds = array<i64: 2, 16, 384>}]} {
    %c0 = arith.constant 0 : index
    %c0_0 = arith.constant 0 : index
    %c0_1 = arith.constant 0 : index
    %0 = vector.load %arg1[%c0, %c0_0, %c0_1] : memref<2x16x384xbf16, #tpu.memory_space<vmem>>, vector<2x16x384xbf16>
    %1 = vector.shape_cast %0 : vector<2x16x384xbf16> to vector<32x384xbf16>
    %c0_2 = arith.constant 0 : index
    %c0_3 = arith.constant 0 : index
    %2 = vector.load %arg2[%c0_2, %c0_3] : memref<384x1152xbf16, #tpu.memory_space<vmem>>, vector<384x1152xbf16>
    %cst = arith.constant dense<0.000000e+00> : vector<32x1152xf32>
    %3 = tpu.matmul %1, %2, %cst {dimension_numbers = #tpu.dot_dimension_numbers<[1], [0], [0], [1], [0, 0, 1, 1], [], []>} : vector<32x384xbf16>, vector<384x1152xbf16>, vector<32x1152xf32> -> vector<32x1152xf32>
    %4 = tpu.iota {dimensions = array<i32: 1>} : vector<1x16x16xi32>
    %5 = tpu.iota {dimensions = array<i32: 2>} : vector<1x16x16xi32>
    %6 = arith.cmpi sle, %5, %4 : vector<1x16x16xi32>
    %cst_4 = arith.constant 0.000000e+00 : f32
    %7 = vector.broadcast %cst_4 : f32 to vector<32x384xf32>
    %c0_5 = arith.constant 0 : index
    %c0_6 = arith.constant 0 : index
    %8 = vector.load %arg4[%c0_5, %c0_6] : memref<1x384xbf16, #tpu.memory_space<vmem>>, vector<1x384xbf16>
    %9 = arith.extf %8 : vector<1x384xbf16> to vector<1x384xf32>
    %10 = vector.broadcast %9 : vector<1x384xf32> to vector<32x384xf32>
    %11 = arith.addf %7, %10 : vector<32x384xf32>
    %12 = vector.extract_strided_slice %3 {offsets = [0, 0], sizes = [32, 128], strides = [1, 1]} : vector<32x1152xf32> to vector<32x128xf32>
    %13 = vector.shape_cast %12 : vector<32x128xf32> to vector<2x16x128xf32>
    %14 = arith.truncf %13 : vector<2x16x128xf32> to vector<2x16x128xbf16>
    %15 = vector.extract_strided_slice %3 {offsets = [0, 384], sizes = [32, 128], strides = [1, 1]} : vector<32x1152xf32> to vector<32x128xf32>
    %16 = vector.shape_cast %15 : vector<32x128xf32> to vector<2x16x128xf32>
    %17 = arith.truncf %16 : vector<2x16x128xf32> to vector<2x16x128xbf16>
    %18 = vector.extract_strided_slice %3 {offsets = [0, 768], sizes = [32, 128], strides = [1, 1]} : vector<32x1152xf32> to vector<32x128xf32>
    %19 = vector.shape_cast %18 : vector<32x128xf32> to vector<2x16x128xf32>
    %20 = arith.truncf %19 : vector<2x16x128xf32> to vector<2x16x128xbf16>
    "tpu.trace_start"() <{level = 10 : i32, message = "bqd,bkd->bqk"}> : () -> ()
    %cst_7 = arith.constant dense<0.000000e+00> : vector<2x16x16xf32>
    %21 = tpu.matmul %14, %17, %cst_7 {dimension_numbers = #tpu.dot_dimension_numbers<[2], [2], [1], [1], [0, 0, 0, 1, 1, 1], [0], [0]>} : vector<2x16x128xbf16>, vector<2x16x128xbf16>, vector<2x16x16xf32> -> vector<2x16x16xf32>
    "tpu.trace_stop"() : () -> ()
    %cst_8 = arith.constant dense<0xFF800000> : vector<2x16xf32>
    %22 = vector.multi_reduction <maximumf>, %21, %cst_8 [2] : vector<2x16x16xf32> to vector<2x16xf32>
    %23 = vector.shape_cast %22 : vector<2x16xf32> to vector<2x16x1xf32>
    %24 = vector.broadcast %23 : vector<2x16x1xf32> to vector<2x16x16xf32>
    %25 = arith.subf %21, %24 : vector<2x16x16xf32>
    %26 = math.exp %25 : vector<2x16x16xf32>
    %cst_9 = arith.constant 0.000000e+00 : f32
    %27 = vector.shape_cast %6 : vector<1x16x16xi1> to vector<1x16x16xi1>
    %28 = vector.broadcast %27 : vector<1x16x16xi1> to vector<2x16x16xi1>
    %29 = vector.broadcast %cst_9 : f32 to vector<2x16x16xf32>
    %30 = arith.select %28, %26, %29 : vector<2x16x16xi1>, vector<2x16x16xf32>
    %cst_10 = arith.constant dense<0.000000e+00> : vector<2x16xf32>
    %31 = vector.multi_reduction <add>, %30, %cst_10 [2] : vector<2x16x16xf32> to vector<2x16xf32>
    %32 = vector.shape_cast %31 : vector<2x16xf32> to vector<2x16x1xf32>
    %33 = tpu.reciprocal %32 {approx = true} : vector<2x16x1xf32> -> vector<2x16x1xf32>
    %34 = vector.broadcast %33 : vector<2x16x1xf32> to vector<2x16x16xf32>
    %35 = arith.mulf %30, %34 : vector<2x16x16xf32>
    %36 = arith.truncf %35 : vector<2x16x16xf32> to vector<2x16x16xbf16>
    "tpu.trace_start"() <{level = 10 : i32, message = "bqk,bkd->bqd"}> : () -> ()
    %cst_11 = arith.constant dense<0.000000e+00> : vector<2x16x128xf32>
    %37 = tpu.matmul %36, %20, %cst_11 {dimension_numbers = #tpu.dot_dimension_numbers<[2], [1], [1], [2], [0, 0, 0, 1, 1, 2], [0], [0]>} : vector<2x16x16xbf16>, vector<2x16x128xbf16>, vector<2x16x128xf32> -> vector<2x16x128xf32>
    "tpu.trace_stop"() : () -> ()
    %38 = vector.shape_cast %37 : vector<2x16x128xf32> to vector<32x128xf32>
    %39 = arith.truncf %38 : vector<32x128xf32> to vector<32x128xbf16>
    %c0_12 = arith.constant 0 : index
    %c0_13 = arith.constant 0 : index
    %40 = vector.load %arg3[%c0_12, %c0_13] : memref<384x384xbf16, #tpu.memory_space<vmem>>, vector<128x384xbf16>
    %cst_14 = arith.constant dense<0.000000e+00> : vector<32x384xf32>
    %41 = tpu.matmul %39, %40, %cst_14 {dimension_numbers = #tpu.dot_dimension_numbers<[1], [0], [0], [1], [0, 0, 1, 1], [], []>} : vector<32x128xbf16>, vector<128x384xbf16>, vector<32x384xf32> -> vector<32x384xf32>
    %42 = arith.addf %11, %41 : vector<32x384xf32>
    %43 = vector.extract_strided_slice %3 {offsets = [0, 128], sizes = [32, 128], strides = [1, 1]} : vector<32x1152xf32> to vector<32x128xf32>
    %44 = vector.shape_cast %43 : vector<32x128xf32> to vector<2x16x128xf32>
    %45 = arith.truncf %44 : vector<2x16x128xf32> to vector<2x16x128xbf16>
    %46 = vector.extract_strided_slice %3 {offsets = [0, 512], sizes = [32, 128], strides = [1, 1]} : vector<32x1152xf32> to vector<32x128xf32>
    %47 = vector.shape_cast %46 : vector<32x128xf32> to vector<2x16x128xf32>
    %48 = arith.truncf %47 : vector<2x16x128xf32> to vector<2x16x128xbf16>
    %49 = vector.extract_strided_slice %3 {offsets = [0, 896], sizes = [32, 128], strides = [1, 1]} : vector<32x1152xf32> to vector<32x128xf32>
    %50 = vector.shape_cast %49 : vector<32x128xf32> to vector<2x16x128xf32>
    %51 = arith.truncf %50 : vector<2x16x128xf32> to vector<2x16x128xbf16>
    "tpu.trace_start"() <{level = 10 : i32, message = "bqd,bkd->bqk"}> : () -> ()
    %cst_15 = arith.constant dense<0.000000e+00> : vector<2x16x16xf32>
    %52 = tpu.matmul %45, %48, %cst_15 {dimension_numbers = #tpu.dot_dimension_numbers<[2], [2], [1], [1], [0, 0, 0, 1, 1, 1], [0], [0]>} : vector<2x16x128xbf16>, vector<2x16x128xbf16>, vector<2x16x16xf32> -> vector<2x16x16xf32>
    "tpu.trace_stop"() : () -> ()
    %cst_16 = arith.constant dense<0xFF800000> : vector<2x16xf32>
    %53 = vector.multi_reduction <maximumf>, %52, %cst_16 [2] : vector<2x16x16xf32> to vector<2x16xf32>
    %54 = vector.shape_cast %53 : vector<2x16xf32> to vector<2x16x1xf32>
    %55 = vector.broadcast %54 : vector<2x16x1xf32> to vector<2x16x16xf32>
    %56 = arith.subf %52, %55 : vector<2x16x16xf32>
    %57 = math.exp %56 : vector<2x16x16xf32>
    %cst_17 = arith.constant 0.000000e+00 : f32
    %58 = vector.shape_cast %6 : vector<1x16x16xi1> to vector<1x16x16xi1>
    %59 = vector.broadcast %58 : vector<1x16x16xi1> to vector<2x16x16xi1>
    %60 = vector.broadcast %cst_17 : f32 to vector<2x16x16xf32>
    %61 = arith.select %59, %57, %60 : vector<2x16x16xi1>, vector<2x16x16xf32>
    %cst_18 = arith.constant dense<0.000000e+00> : vector<2x16xf32>
    %62 = vector.multi_reduction <add>, %61, %cst_18 [2] : vector<2x16x16xf32> to vector<2x16xf32>
    %63 = vector.shape_cast %62 : vector<2x16xf32> to vector<2x16x1xf32>
    %64 = tpu.reciprocal %63 {approx = true} : vector<2x16x1xf32> -> vector<2x16x1xf32>
    %65 = vector.broadcast %64 : vector<2x16x1xf32> to vector<2x16x16xf32>
    %66 = arith.mulf %61, %65 : vector<2x16x16xf32>
    %67 = arith.truncf %66 : vector<2x16x16xf32> to vector<2x16x16xbf16>
    "tpu.trace_start"() <{level = 10 : i32, message = "bqk,bkd->bqd"}> : () -> ()
    %cst_19 = arith.constant dense<0.000000e+00> : vector<2x16x128xf32>
    %68 = tpu.matmul %67, %51, %cst_19 {dimension_numbers = #tpu.dot_dimension_numbers<[2], [1], [1], [2], [0, 0, 0, 1, 1, 2], [0], [0]>} : vector<2x16x16xbf16>, vector<2x16x128xbf16>, vector<2x16x128xf32> -> vector<2x16x128xf32>
    "tpu.trace_stop"() : () -> ()
    %69 = vector.shape_cast %68 : vector<2x16x128xf32> to vector<32x128xf32>
    %70 = arith.truncf %69 : vector<32x128xf32> to vector<32x128xbf16>
    %c128 = arith.constant 128 : index
    %c0_20 = arith.constant 0 : index
    %71 = vector.load %arg3[%c128, %c0_20] : memref<384x384xbf16, #tpu.memory_space<vmem>>, vector<128x384xbf16>
    %cst_21 = arith.constant dense<0.000000e+00> : vector<32x384xf32>
    %72 = tpu.matmul %70, %71, %cst_21 {dimension_numbers = #tpu.dot_dimension_numbers<[1], [0], [0], [1], [0, 0, 1, 1], [], []>} : vector<32x128xbf16>, vector<128x384xbf16>, vector<32x384xf32> -> vector<32x384xf32>
    %73 = arith.addf %42, %72 : vector<32x384xf32>
    %74 = vector.extract_strided_slice %3 {offsets = [0, 256], sizes = [32, 128], strides = [1, 1]} : vector<32x1152xf32> to vector<32x128xf32>
    %75 = vector.shape_cast %74 : vector<32x128xf32> to vector<2x16x128xf32>
    %76 = arith.truncf %75 : vector<2x16x128xf32> to vector<2x16x128xbf16>
    %77 = vector.extract_strided_slice %3 {offsets = [0, 640], sizes = [32, 128], strides = [1, 1]} : vector<32x1152xf32> to vector<32x128xf32>
    %78 = vector.shape_cast %77 : vector<32x128xf32> to vector<2x16x128xf32>
    %79 = arith.truncf %78 : vector<2x16x128xf32> to vector<2x16x128xbf16>
    %80 = vector.extract_strided_slice %3 {offsets = [0, 1024], sizes = [32, 128], strides = [1, 1]} : vector<32x1152xf32> to vector<32x128xf32>
    %81 = vector.shape_cast %80 : vector<32x128xf32> to vector<2x16x128xf32>
    %82 = arith.truncf %81 : vector<2x16x128xf32> to vector<2x16x128xbf16>
    "tpu.trace_start"() <{level = 10 : i32, message = "bqd,bkd->bqk"}> : () -> ()
    %cst_22 = arith.constant dense<0.000000e+00> : vector<2x16x16xf32>
    %83 = tpu.matmul %76, %79, %cst_22 {dimension_numbers = #tpu.dot_dimension_numbers<[2], [2], [1], [1], [0, 0, 0, 1, 1, 1], [0], [0]>} : vector<2x16x128xbf16>, vector<2x16x128xbf16>, vector<2x16x16xf32> -> vector<2x16x16xf32>
    "tpu.trace_stop"() : () -> ()
    %cst_23 = arith.constant dense<0xFF800000> : vector<2x16xf32>
    %84 = vector.multi_reduction <maximumf>, %83, %cst_23 [2] : vector<2x16x16xf32> to vector<2x16xf32>
    %85 = vector.shape_cast %84 : vector<2x16xf32> to vector<2x16x1xf32>
    %86 = vector.broadcast %85 : vector<2x16x1xf32> to vector<2x16x16xf32>
    %87 = arith.subf %83, %86 : vector<2x16x16xf32>
    %88 = math.exp %87 : vector<2x16x16xf32>
    %cst_24 = arith.constant 0.000000e+00 : f32
    %89 = vector.shape_cast %6 : vector<1x16x16xi1> to vector<1x16x16xi1>
    %90 = vector.broadcast %89 : vector<1x16x16xi1> to vector<2x16x16xi1>
    %91 = vector.broadcast %cst_24 : f32 to vector<2x16x16xf32>
    %92 = arith.select %90, %88, %91 : vector<2x16x16xi1>, vector<2x16x16xf32>
    %cst_25 = arith.constant dense<0.000000e+00> : vector<2x16xf32>
    %93 = vector.multi_reduction <add>, %92, %cst_25 [2] : vector<2x16x16xf32> to vector<2x16xf32>
    %94 = vector.shape_cast %93 : vector<2x16xf32> to vector<2x16x1xf32>
    %95 = tpu.reciprocal %94 {approx = true} : vector<2x16x1xf32> -> vector<2x16x1xf32>
    %96 = vector.broadcast %95 : vector<2x16x1xf32> to vector<2x16x16xf32>
    %97 = arith.mulf %92, %96 : vector<2x16x16xf32>
    %98 = arith.truncf %97 : vector<2x16x16xf32> to vector<2x16x16xbf16>
    "tpu.trace_start"() <{level = 10 : i32, message = "bqk,bkd->bqd"}> : () -> ()
    %cst_26 = arith.constant dense<0.000000e+00> : vector<2x16x128xf32>
    %99 = tpu.matmul %98, %82, %cst_26 {dimension_numbers = #tpu.dot_dimension_numbers<[2], [1], [1], [2], [0, 0, 0, 1, 1, 2], [0], [0]>} : vector<2x16x16xbf16>, vector<2x16x128xbf16>, vector<2x16x128xf32> -> vector<2x16x128xf32>
    "tpu.trace_stop"() : () -> ()
    %100 = vector.shape_cast %99 : vector<2x16x128xf32> to vector<32x128xf32>
    %101 = arith.truncf %100 : vector<32x128xf32> to vector<32x128xbf16>
    %c256 = arith.constant 256 : index
    %c0_27 = arith.constant 0 : index
    %102 = vector.load %arg3[%c256, %c0_27] : memref<384x384xbf16, #tpu.memory_space<vmem>>, vector<128x384xbf16>
    %cst_28 = arith.constant dense<0.000000e+00> : vector<32x384xf32>
    %103 = tpu.matmul %101, %102, %cst_28 {dimension_numbers = #tpu.dot_dimension_numbers<[1], [0], [0], [1], [0, 0, 1, 1], [], []>} : vector<32x128xbf16>, vector<128x384xbf16>, vector<32x384xf32> -> vector<32x384xf32>
    %104 = arith.addf %73, %103 : vector<32x384xf32>
    %105 = vector.shape_cast %104 : vector<32x384xf32> to vector<2x16x384xf32>
    %c0_29 = arith.constant 0 : index
    %c0_30 = arith.constant 0 : index
    %c0_31 = arith.constant 0 : index
    %106 = vector.load %arg5[%c0_29, %c0_30, %c0_31] : memref<2x16x384xf32, #tpu.memory_space<vmem>>, vector<2x16x384xf32>
    tpu.vector_store %arg5[%c0_29, %c0_30, %c0_31], %105 {strides = array<i32>} : memref<2x16x384xf32, #tpu.memory_space<vmem>>, vector<2x16x384xf32>,
    return
  }
  func.func @transform_0(%arg0: i32) -> (i32, i32, i32) {
    %c0_i32 = arith.constant 0 : i32
    %c0_i32_0 = arith.constant 0 : i32
    %c0_i32_1 = arith.constant 0 : i32
    return %arg0, %c0_i32, %c0_i32_0 : i32, i32, i32
  }
  func.func @transform_1(%arg0: i32) -> (i32, i32) {
    %c0_i32 = arith.constant 0 : i32
    %c0_i32_0 = arith.constant 0 : i32
    %c0_i32_1 = arith.constant 0 : i32
    return %c0_i32, %c0_i32_0 : i32, i32
  }
  func.func @transform_2(%arg0: i32) -> (i32, i32) {
    %c0_i32 = arith.constant 0 : i32
    %c0_i32_0 = arith.constant 0 : i32
    %c0_i32_1 = arith.constant 0 : i32
    return %c0_i32, %c0_i32_0 : i32, i32
  }
  func.func @transform_3(%arg0: i32) -> (i32, i32) {
    %c0_i32 = arith.constant 0 : i32
    %c0_i32_0 = arith.constant 0 : i32
    %c0_i32_1 = arith.constant 0 : i32
    return %c0_i32, %c0_i32_0 : i32, i32
  }
  func.func @transform_4(%arg0: i32) -> (i32, i32, i32) {
    %c0_i32 = arith.constant 0 : i32
    %c0_i32_0 = arith.constant 0 : i32
    %c0_i32_1 = arith.constant 0 : i32
    return %arg0, %c0_i32, %c0_i32_0 : i32, i32, i32
  }
}

</mosaic_0001>

<llo_original>
// kernel: tpu_custom_call.1
$region0: #{tpu_custom_call.1}
  #allocation0 [shape = 'u32[]', space=smem, size = 0x4, offset = 0x4, fixed_abs, tag = 'smem constant byte address 0x4 - core index']
  #allocation1 [shape = 'u32[144,128]{1,0:T(1,128)}', space=vmem, size = 0x12000, scoped, tag = 'internal scratch']
  %s0 = inlined_call_operand.hbm [shape: bf16[4,16,384], index: 0, kind: input, shape index: {}]
  %s1 = inlined_call_operand.hbm [shape: bf16[384,1152], index: 1, kind: input, shape index: {}]
  %s2 = inlined_call_operand.hbm [shape: bf16[384,384], index: 2, kind: input, shape index: {}]
  %s3 = inlined_call_operand.vmem [shape: bf16[1,384], index: 3, kind: input, shape index: {}]
  %s4 = inlined_call_operand.hbm [shape: f32[4,16,384], index: 4, kind: output, shape index: {}]
  %s5 = sld [smem:[#allocation0]]
  $region61: #{tpu_custom_call.1} parent=0
    _
  %s7 = ssub.s32 1, %s5
  %s8 = scalar_select 0, %s7, %s5
  $region1: #{tpu_custom_call.1} parent=0
    #allocation2 [shape = 'u8[49152]{0}', space=vmem, size = 0xc000, scoped, tag = 'input window, operand 0']
    #allocation3 [shape = 's32[2]{0}', space=sflag, size = 0x8, scoped, tag = 'scoped memory for tpu_custom_call.1']
    #allocation4 [shape = 's32[2]{0}', space=sflag, size = 0x8, scoped, tag = 'scoped memory for tpu_custom_call.1']
    #allocation5 [shape = 'u8[884736]{0}', space=vmem, size = 0xd8000, scoped, tag = 'input window, operand 1, single buffered']
    #allocation6 [shape = 's32[1]{0}', space=sflag, size = 0x4, scoped, tag = 'scoped memory for tpu_custom_call.1']
    #allocation7 [shape = 'u8[294912]{0}', space=vmem, size = 0x48000, scoped, tag = 'input window, operand 2, single buffered']
    #allocation8 [shape = 'u8[98304]{0}', space=vmem, size = 0x18000, scoped, tag = 'output window, operand 0']
    %9 = vsyncpa [#allocation3], 0
    %s10 = scalar_lea.sflag [#allocation3], 1
    %11 = vsyncpa %s10, 0
    %12 = vsyncpa [#allocation6], 0
    %13 = vsyncpa [#allocation4], 0
    %s14 = scalar_lea.sflag [#allocation4], 1
    %15 = vsyncpa %s14, 0
    loop: start=0, step=1, limit=4
    $region2: #{tpu_custom_call.1} parent=1 // loop_pre_header
      _
    $region3: #{tpu_custom_call.1} parent=1 // loop_header
      %s17 = sphi 0, %s21
      %p18 = scmp.ge.s32.totalorder %s17, 4
      %s27 = sphi 0, %s29
      %s30 = sphi 0, %s27
      %s31 = sphi 0, %s30
      %s47 = sphi 0, %s31
      %s51 = sphi 0, %s51
      %s53 = sphi 0, %s51
      %s54 = sphi 0, %s53
      %s68 = sphi 0, %s54
      %s72 = sphi 0, %s72
      %s74 = sphi 0, %s72
      %s75 = sphi 0, %s74
      %s89 = sphi 0, %s75
      %s93 = sphi 0, %s93
      %s95 = sphi 0, %s93
      %s96 = sphi 0, %s95
      %s110 = sphi 0, %s96
      %s116 = sphi 0, %s118
      %s119 = sphi 0, %s116
      %s120 = sphi 0, %s119
      %s136 = sphi 0, %s120
    $region4: #{tpu_custom_call.1} parent=1 // loop_header_branch
      %20 = sbr.rel (%p18) target = $region8
    $region5: #{tpu_custom_call.1} parent=1 // loop_body
      %s22 = ssub.s32 %s17, 1
      %s23 = ssub.s32 %s17, 2
      %s24 = sadd.s32 %s17, 1
      %s25 = ssub.s32 %s17, %s24
      %p26 = scmp.eq.s32.totalorder %s25, 0
      %s28 = sadd.s32 %s27, 1
      %s29 = scalar_select %p26, %s27, %s28
      %p32 = pneg %p26
      %p33 = scmp.eq.s32.totalorder %s17, 1
      %p34 = por %p32, %p33
      %p35 = scmp.ne.s32.totalorder %s27, %s30
      %p36 = scmp.eq.s32.totalorder %s17, 0
      %p37 = por %p35, %p36
      %p38 = scmp.ne.s32.totalorder %s27, %s30
      %p39 = scmp.eq.s32.totalorder %s22, 1
      %p40 = por %p38, %p39
      %p41 = scmp.ne.s32.totalorder %s30, %s31
      %p42 = scmp.eq.s32.totalorder %s22, 0
      %p43 = por %p41, %p42
      %p44 = scmp.ne.s32.totalorder %s30, %s31
      %p45 = scmp.eq.s32.totalorder %s23, 1
      %p46 = por %p44, %p45
      %p48 = scmp.ne.s32.totalorder %s31, %s47
      %p49 = scmp.eq.s32.totalorder %s23, 0
      %p50 = por %p48, %p49
      %s52 = sadd.s32 %s51, 1
      %p55 = scmp.eq.s32.totalorder %s17, 1
      %p56 = scmp.ne.s32.totalorder %s51, %s53
      %p57 = scmp.eq.s32.totalorder %s17, 0
      %p58 = por %p56, %p57
      %p59 = scmp.ne.s32.totalorder %s51, %s53
      %p60 = scmp.eq.s32.totalorder %s22, 1
      %p61 = por %p59, %p60
      %p62 = scmp.ne.s32.totalorder %s53, %s54
      %p63 = scmp.eq.s32.totalorder %s22, 0
      %p64 = por %p62, %p63
      %p65 = scmp.ne.s32.totalorder %s53, %s54
      %p66 = scmp.eq.s32.totalorder %s23, 1
      %p67 = por %p65, %p66
      %p69 = scmp.ne.s32.totalorder %s54, %s68
      %p70 = scmp.eq.s32.totalorder %s23, 0
      %p71 = por %p69, %p70
      %s73 = sadd.s32 %s72, 1
      %p76 = scmp.eq.s32.totalorder %s17, 1
      %p77 = scmp.ne.s32.totalorder %s72, %s74
      %p78 = scmp.eq.s32.totalorder %s17, 0
      %p79 = por %p77, %p78
      %p80 = scmp.ne.s32.totalorder %s72, %s74
      %p81 = scmp.eq.s32.totalorder %s22, 1
      %p82 = por %p80, %p81
      %p83 = scmp.ne.s32.totalorder %s74, %s75
      %p84 = scmp.eq.s32.totalorder %s22, 0
      %p85 = por %p83, %p84
      %p86 = scmp.ne.s32.totalorder %s74, %s75
      %p87 = scmp.eq.s32.totalorder %s23, 1
      %p88 = por %p86, %p87
      %p90 = scmp.ne.s32.totalorder %s75, %s89
      %p91 = scmp.eq.s32.totalorder %s23, 0
      %p92 = por %p90, %p91
      %s94 = sadd.s32 %s93, 1
      %p97 = scmp.eq.s32.totalorder %s17, 1
      %p98 = scmp.ne.s32.totalorder %s93, %s95
      %p99 = scmp.eq.s32.totalorder %s17, 0
      %p100 = por %p98, %p99
      %p101 = scmp.ne.s32.totalorder %s93, %s95
      %p102 = scmp.eq.s32.totalorder %s22, 1
      %p103 = por %p101, %p102
      %p104 = scmp.ne.s32.totalorder %s95, %s96
      %p105 = scmp.eq.s32.totalorder %s22, 0
      %p106 = por %p104, %p105
      %p107 = scmp.ne.s32.totalorder %s95, %s96
      %p108 = scmp.eq.s32.totalorder %s23, 1
      %p109 = por %p107, %p108
      %p111 = scmp.ne.s32.totalorder %s96, %s110
      %p112 = scmp.eq.s32.totalorder %s23, 0
      %p113 = por %p111, %p112
      %s114 = ssub.s32 %s17, %s24
      %p115 = scmp.eq.s32.totalorder %s114, 0
      %s117 = sadd.s32 %s116, 1
      %s118 = scalar_select %p115, %s116, %s117
      %p121 = pneg %p115
      %p122 = scmp.eq.s32.totalorder %s17, 1
      %p123 = por %p121, %p122
      %p124 = scmp.ne.s32.totalorder %s116, %s119
      %p125 = scmp.eq.s32.totalorder %s17, 0
      %p126 = por %p124, %p125
      %p127 = scmp.ne.s32.totalorder %s116, %s119
      %p128 = scmp.eq.s32.totalorder %s22, 1
      %p129 = por %p127, %p128
      %p130 = scmp.ne.s32.totalorder %s119, %s120
      %p131 = scmp.eq.s32.totalorder %s22, 0
      %p132 = por %p130, %p131
      %p133 = scmp.ne.s32.totalorder %s119, %s120
      %p134 = scmp.eq.s32.totalorder %s23, 1
      %p135 = por %p133, %p134
      %p137 = scmp.ne.s32.totalorder %s120, %s136
      %p138 = scmp.eq.s32.totalorder %s23, 0
      %p139 = por %p137, %p138
      %p140 = scmp.le.s32.totalorder 1, %s17
      %p141 = scmp.lt.s32.totalorder %s17, 3
      %p142 = pnand %p140, %p141
      %p143 = pneg %p142
      // Predicated region
      $region9: #{tpu_custom_call.1} parent=5 // pred_check
        _
      $region10: #{tpu_custom_call.1} parent=5 // pred_check_branch
        %145 = sbr.rel (%p142) target = $region12
      $region11: #{tpu_custom_call.1} parent=5 // pred_region
        %s146 = ssub.s32 %s17, 1
        // Predicated region
        $region13: #{tpu_custom_call.1} parent=11 // pred_check
          %p147 = pneg %p64
        $region14: #{tpu_custom_call.1} parent=11 // pred_check_branch
          %149 = sbr.rel (%p147) target = $region16
        $region15: #{tpu_custom_call.1} parent=11 // pred_region
          %s151 = ssub.s32 27648, 27648
          %152 = vsyncadd [#allocation6], %s151
          %s153 = sshll.u32 [#allocation5], 4
          %s154 = int_to_ptr.vmem [resolvable:$true] %s153
          %159 = dma.hbm_to_vmem [thread:$0]  %s1, 27648, %s154, [#allocation6], 576, 576, 36
        $region16: #{tpu_custom_call.1} parent=11 // pred_fallthru
          _
        // Predicated region
        $region17: #{tpu_custom_call.1} parent=11 // pred_check
          %p160 = pneg %p85
        $region18: #{tpu_custom_call.1} parent=11 // pred_check_branch
          %162 = sbr.rel (%p160) target = $region20
        $region19: #{tpu_custom_call.1} parent=11 // pred_region
          %s164 = ssub.s32 9216, 9216
          %165 = vsyncadd [#allocation6], %s164
          %s166 = sshll.u32 [#allocation7], 4
          %s167 = int_to_ptr.vmem [resolvable:$true] %s166
          %172 = dma.hbm_to_vmem [thread:$0]  %s2, 9216, %s167, [#allocation6], 192, 192, 12
        $region20: #{tpu_custom_call.1} parent=11 // pred_fallthru
          _
        // Predicated region
        $region21: #{tpu_custom_call.1} parent=11 // pred_check
          %p173 = pneg %p106
        $region22: #{tpu_custom_call.1} parent=11 // pred_check_branch
          %175 = sbr.rel (%p173) target = $region24
        $region23: #{tpu_custom_call.1} parent=11 // pred_region
          _
        $region24: #{tpu_custom_call.1} parent=11 // pred_fallthru
          _
      $region12: #{tpu_custom_call.1} parent=5 // pred_fallthru
        _
      %p176 = scmp.lt.s32.totalorder %s17, 2
      // Predicated region
      $region25: #{tpu_custom_call.1} parent=5 // pred_check
        %p177 = pneg %p176
      $region26: #{tpu_custom_call.1} parent=5 // pred_check_branch
        %179 = sbr.rel (%p177) target = $region28
      $region27: #{tpu_custom_call.1} parent=5 // pred_region
        // Predicated region
        $region29: #{tpu_custom_call.1} parent=27 // pred_check
          %p180 = pneg %p37
        $region30: #{tpu_custom_call.1} parent=27 // pred_check_branch
          %182 = sbr.rel (%p180) target = $region32
        $region31: #{tpu_custom_call.1} parent=27 // pred_region
          %s183 = sand.u32 %s27, 1
          %s184 = scalar_lea.sflag [#allocation3], %s183
          %s185 = sand.u32 %s27, 1
          %s186 = smul.addr %s185, 48
          %s187 = scalar_lea.vmem [#allocation2], %s186
          %s188 = smul.u32 2, %s17
          %s190 = ssub.s32 768, 768
          %191 = vsyncadd %s184, %s190
          %s192 = smul.addr %s188, 6
          %s193 = smul.addr %s192, 64
          %s194 = scalar_lea.hbm %s0, %s193
          %s195 = sshll.u32 %s187, 4
          %s196 = int_to_ptr.vmem [resolvable:$true] %s195
          %201 = dma.hbm_to_vmem [thread:$0]  %s194, 768, %s196, %s184, 192, 192, 12
        $region32: #{tpu_custom_call.1} parent=27 // pred_fallthru
          _
      $region28: #{tpu_custom_call.1} parent=5 // pred_fallthru
        _
      %p202 = scmp.le.s32.totalorder 1, %s17
      %p203 = scmp.lt.s32.totalorder %s17, 3
      %p204 = pnand %p202, %p203
      %p205 = pneg %p204
      // Predicated region
      $region33: #{tpu_custom_call.1} parent=5 // pred_check
        _
      $region34: #{tpu_custom_call.1} parent=5 // pred_check_branch
        %207 = sbr.rel (%p204) target = $region36
      $region35: #{tpu_custom_call.1} parent=5 // pred_region
        %s208 = ssub.s32 %s17, 1
        %s209 = sand.u32 %s30, 1
        %s210 = scalar_lea.sflag [#allocation3], %s209
        %s211 = sand.u32 %s30, 1
        %s212 = smul.addr %s211, 48
        %s213 = scalar_lea.vmem [#allocation2], %s212
        // Predicated region
        $region37: #{tpu_custom_call.1} parent=35 // pred_check
          %p214 = pneg %p43
        $region38: #{tpu_custom_call.1} parent=35 // pred_check_branch
          %216 = sbr.rel (%p214) target = $region40
        $region39: #{tpu_custom_call.1} parent=35 // pred_region
          %217 = dma.done %s210, 768
        $region40: #{tpu_custom_call.1} parent=35 // pred_fallthru
          _
        // Predicated region
        $region41: #{tpu_custom_call.1} parent=35 // pred_check
          %p218 = pneg %p64
        $region42: #{tpu_custom_call.1} parent=35 // pred_check_branch
          %220 = sbr.rel (%p218) target = $region44
        $region43: #{tpu_custom_call.1} parent=35 // pred_region
          %221 = dma.done [#allocation6], 27648
        $region44: #{tpu_custom_call.1} parent=35 // pred_fallthru
          _
        // Predicated region
        $region45: #{tpu_custom_call.1} parent=35 // pred_check
          %p222 = pneg %p85
        $region46: #{tpu_custom_call.1} parent=35 // pred_check_branch
          %224 = sbr.rel (%p222) target = $region48
        $region47: #{tpu_custom_call.1} parent=35 // pred_region
          %225 = dma.done [#allocation6], 9216
        $region48: #{tpu_custom_call.1} parent=35 // pred_fallthru
          _
        %s226 = sand.u32 %s30, 1
        %s227 = scalar_lea.sflag [#allocation3], %s226
        %s228 = sand.u32 %s30, 1
        %s229 = smul.addr %s228, 48
        %s230 = scalar_lea.vmem [#allocation2], %s229
        %p231 = pneg %p43
        %p232 = pneg %p40
        %p233 = pneg %p64
        %p234 = pneg %p61
        %p235 = pneg %p85
        %p236 = pneg %p82
        %p237 = pneg %p106
        %p238 = pneg %p103
        %p239 = pneg %p132
        %p240 = pneg %p129
        %s241 = sand.u32 %s119, 1
        %s242 = scalar_lea.sflag [#allocation4], %s241
        %s243 = sand.u32 %s119, 1
        %s244 = smul.addr %s243, 96
        %s245 = scalar_lea.vmem [#allocation8], %s244
        %s246 = smul.u32 2, %s22
        %s247 = smul.u32 2, %s22
        %v249 = vld [vmem:[%s213] sm:$0xff]
        %v250 = vld [vmem:[%s213 + $0x8] sm:$0xf]
        %v251 = vld [vmem:[%s213 + $0xc] sm:$0xff]
        %v252 = vld [vmem:[%s213 + $0x14] sm:$0xf]
        %v253 = vld [vmem:[%s213 + $0x18] sm:$0xff]
        %v254 = vld [vmem:[%s213 + $0x20] sm:$0xf]
        %v255 = vld [vmem:[%s213 + $0x24] sm:$0xff]
        %v256 = vld [vmem:[%s213 + $0x2c] sm:$0xf]
        %v257 = vld [vmem:[#allocation5] sm:$0xff]
        %v258 = vld [vmem:[#allocation5 + $0x8] sm:$0xff]
        %v259 = vld [vmem:[#allocation5 + $0x10] sm:$0xff]
        %v260 = vld [vmem:[#allocation5 + $0x18] sm:$0xff]
        %v261 = vld [vmem:[#allocation5 + $0x20] sm:$0xf]
        %v262 = vld [vmem:[#allocation5 + $0x24] sm:$0xff]
        %v263 = vld [vmem:[#allocation5 + $0x2c] sm:$0xff]
        %v264 = vld [vmem:[#allocation5 + $0x34] sm:$0xff]
        %v265 = vld [vmem:[#allocation5 + $0x3c] sm:$0xff]
        %v266 = vld [vmem:[#allocation5 + $0x44] sm:$0xf]
        %v267 = vld [vmem:[#allocation5 + $0x48] sm:$0xff]
        %v268 = vld [vmem:[#allocation5 + $0x50] sm:$0xff]
        %v269 = vld [vmem:[#allocation5 + $0x58] sm:$0xff]
        %v270 = vld [vmem:[#allocation5 + $0x60] sm:$0xff]
        %v271 = vld [vmem:[#allocation5 + $0x68] sm:$0xf]
        %v272 = vld [vmem:[#allocation5 + $0x6c] sm:$0xff]
        %v273 = vld [vmem:[#allocation5 + $0x74] sm:$0xff]
        %v274 = vld [vmem:[#allocation5 + $0x7c] sm:$0xff]
        %v275 = vld [vmem:[#allocation5 + $0x84] sm:$0xff]
        %v276 = vld [vmem:[#allocation5 + $0x8c] sm:$0xf]
        %v277 = vld [vmem:[#allocation5 + $0x90] sm:$0xff]
        %v278 = vld [vmem:[#allocation5 + $0x98] sm:$0xff]
        %v279 = vld [vmem:[#allocation5 + $0xa0] sm:$0xff]
        %v280 = vld [vmem:[#allocation5 + $0xa8] sm:$0xff]
        %v281 = vld [vmem:[#allocation5 + $0xb0] sm:$0xf]
        %v282 = vld [vmem:[#allocation5 + $0xb4] sm:$0xff]
        %v283 = vld [vmem:[#allocation5 + $0xbc] sm:$0xff]
        %v284 = vld [vmem:[#allocation5 + $0xc4] sm:$0xff]
        %v285 = vld [vmem:[#allocation5 + $0xcc] sm:$0xff]
        %v286 = vld [vmem:[#allocation5 + $0xd4] sm:$0xf]
        %v287 = vld [vmem:[#allocation5 + $0xd8] sm:$0xff]
        %v288 = vld [vmem:[#allocation5 + $0xe0] sm:$0xff]
        %v289 = vld [vmem:[#allocation5 + $0xe8] sm:$0xff]
        %v290 = vld [vmem:[#allocation5 + $0xf0] sm:$0xff]
        %v291 = vld [vmem:[#allocation5 + $0xf8] sm:$0xf]
        %v292 = vld [vmem:[#allocation5 + $0xfc] sm:$0xff]
        %v293 = vld [vmem:[#allocation5 + $0x104] sm:$0xff]
        %v294 = vld [vmem:[#allocation5 + $0x10c] sm:$0xff]
        %v295 = vld [vmem:[#allocation5 + $0x114] sm:$0xff]
        %v296 = vld [vmem:[#allocation5 + $0x11c] sm:$0xf]
        %v297 = vld [vmem:[#allocation5 + $0x120] sm:$0xff]
        %v298 = vld [vmem:[#allocation5 + $0x128] sm:$0xff]
        %v299 = vld [vmem:[#allocation5 + $0x130] sm:$0xff]
        %v300 = vld [vmem:[#allocation5 + $0x138] sm:$0xff]
        %v301 = vld [vmem:[#allocation5 + $0x140] sm:$0xf]
        %v302 = vld [vmem:[#allocation5 + $0x144] sm:$0xff]
        %v303 = vld [vmem:[#allocation5 + $0x14c] sm:$0xff]
        %v304 = vld [vmem:[#allocation5 + $0x154] sm:$0xff]
        %v305 = vld [vmem:[#allocation5 + $0x15c] sm:$0xff]
        %v306 = vld [vmem:[#allocation5 + $0x164] sm:$0xf]
        %v307 = vld [vmem:[#allocation5 + $0x168] sm:$0xff]
        %v308 = vld [vmem:[#allocation5 + $0x170] sm:$0xff]
        %v309 = vld [vmem:[#allocation5 + $0x178] sm:$0xff]
        %v310 = vld [vmem:[#allocation5 + $0x180] sm:$0xff]
        %v311 = vld [vmem:[#allocation5 + $0x188] sm:$0xf]
        %v312 = vld [vmem:[#allocation5 + $0x18c] sm:$0xff]
        %v313 = vld [vmem:[#allocation5 + $0x194] sm:$0xff]
        %v314 = vld [vmem:[#allocation5 + $0x19c] sm:$0xff]
        %v315 = vld [vmem:[#allocation5 + $0x1a4] sm:$0xff]
        %v316 = vld [vmem:[#allocation5 + $0x1ac] sm:$0xf]
        %v317 = vld [vmem:[#allocation5 + $0x1b0] sm:$0xff]
        %v318 = vld [vmem:[#allocation5 + $0x1b8] sm:$0xff]
        %v319 = vld [vmem:[#allocation5 + $0x1c0] sm:$0xff]
        %v320 = vld [vmem:[#allocation5 + $0x1c8] sm:$0xff]
        %v321 = vld [vmem:[#allocation5 + $0x1d0] sm:$0xf]
        %v322 = vld [vmem:[#allocation5 + $0x1d4] sm:$0xff]
        %v323 = vld [vmem:[#allocation5 + $0x1dc] sm:$0xff]
        %v324 = vld [vmem:[#allocation5 + $0x1e4] sm:$0xff]
        %v325 = vld [vmem:[#allocation5 + $0x1ec] sm:$0xff]
        %v326 = vld [vmem:[#allocation5 + $0x1f4] sm:$0xf]
        %v327 = vld [vmem:[#allocation5 + $0x1f8] sm:$0xff]
        %v328 = vld [vmem:[#allocation5 + $0x200] sm:$0xff]
        %v329 = vld [vmem:[#allocation5 + $0x208] sm:$0xff]
        %v330 = vld [vmem:[#allocation5 + $0x210] sm:$0xff]
        %v331 = vld [vmem:[#allocation5 + $0x218] sm:$0xf]
        %v332 = vld [vmem:[#allocation5 + $0x21c] sm:$0xff]
        %v333 = vld [vmem:[#allocation5 + $0x224] sm:$0xff]
        %v334 = vld [vmem:[#allocation5 + $0x22c] sm:$0xff]
        %v335 = vld [vmem:[#allocation5 + $0x234] sm:$0xff]
        %v336 = vld [vmem:[#allocation5 + $0x23c] sm:$0xf]
        %v337 = vld [vmem:[#allocation5 + $0x240] sm:$0xff]
        %v338 = vld [vmem:[#allocation5 + $0x248] sm:$0xff]
        %v339 = vld [vmem:[#allocation5 + $0x250] sm:$0xff]
        %v340 = vld [vmem:[#allocation5 + $0x258] sm:$0xff]
        %v341 = vld [vmem:[#allocation5 + $0x260] sm:$0xf]
        %v342 = vld [vmem:[#allocation5 + $0x264] sm:$0xff]
        %v343 = vld [vmem:[#allocation5 + $0x26c] sm:$0xff]
        %v344 = vld [vmem:[#allocation5 + $0x274] sm:$0xff]
        %v345 = vld [vmem:[#allocation5 + $0x27c] sm:$0xff]
        %v346 = vld [vmem:[#allocation5 + $0x284] sm:$0xf]
        %v347 = vld [vmem:[#allocation5 + $0x288] sm:$0xff]
        %v348 = vld [vmem:[#allocation5 + $0x290] sm:$0xff]
        %v349 = vld [vmem:[#allocation5 + $0x298] sm:$0xff]
        %v350 = vld [vmem:[#allocation5 + $0x2a0] sm:$0xff]
        %v351 = vld [vmem:[#allocation5 + $0x2a8] sm:$0xf]
        %v352 = vld [vmem:[#allocation5 + $0x2ac] sm:$0xff]
        %v353 = vld [vmem:[#allocation5 + $0x2b4] sm:$0xff]
        %v354 = vld [vmem:[#allocation5 + $0x2bc] sm:$0xff]
        %v355 = vld [vmem:[#allocation5 + $0x2c4] sm:$0xff]
        %v356 = vld [vmem:[#allocation5 + $0x2cc] sm:$0xf]
        %v357 = vld [vmem:[#allocation5 + $0x2d0] sm:$0xff]
        %v358 = vld [vmem:[#allocation5 + $0x2d8] sm:$0xff]
        %v359 = vld [vmem:[#allocation5 + $0x2e0] sm:$0xff]
        %v360 = vld [vmem:[#allocation5 + $0x2e8] sm:$0xff]
        %v361 = vld [vmem:[#allocation5 + $0x2f0] sm:$0xf]
        %v362 = vld [vmem:[#allocation5 + $0x2f4] sm:$0xff]
        %v363 = vld [vmem:[#allocation5 + $0x2fc] sm:$0xff]
        %v364 = vld [vmem:[#allocation5 + $0x304] sm:$0xff]
        %v365 = vld [vmem:[#allocation5 + $0x30c] sm:$0xff]
        %v366 = vld [vmem:[#allocation5 + $0x314] sm:$0xf]
        %v367 = vld [vmem:[#allocation5 + $0x318] sm:$0xff]
        %v368 = vld [vmem:[#allocation5 + $0x320] sm:$0xff]
        %v369 = vld [vmem:[#allocation5 + $0x328] sm:$0xff]
        %v370 = vld [vmem:[#allocation5 + $0x330] sm:$0xff]
        %v371 = vld [vmem:[#allocation5 + $0x338] sm:$0xf]
        %v372 = vld [vmem:[#allocation5 + $0x33c] sm:$0xff]
        %v373 = vld [vmem:[#allocation5 + $0x344] sm:$0xff]
        %v374 = vld [vmem:[#allocation5 + $0x34c] sm:$0xff]
        %v375 = vld [vmem:[#allocation5 + $0x354] sm:$0xff]
        %v376 = vld [vmem:[#allocation5 + $0x35c] sm:$0xf]
        %v377 = vld [vmem:[#allocation5 + $0x360] sm:$0xff]
        %v378 = vld [vmem:[#allocation5 + $0x368] sm:$0xff]
        %v379 = vld [vmem:[#allocation5 + $0x370] sm:$0xff]
        %v380 = vld [vmem:[#allocation5 + $0x378] sm:$0xff]
        %v381 = vld [vmem:[#allocation5 + $0x380] sm:$0xf]
        %v382 = vld [vmem:[#allocation5 + $0x384] sm:$0xff]
        %v383 = vld [vmem:[#allocation5 + $0x38c] sm:$0xff]
        %v384 = vld [vmem:[#allocation5 + $0x394] sm:$0xff]
        %v385 = vld [vmem:[#allocation5 + $0x39c] sm:$0xff]
        %v386 = vld [vmem:[#allocation5 + $0x3a4] sm:$0xf]
        %v387 = vld [vmem:[#allocation5 + $0x3a8] sm:$0xff]
        %v388 = vld [vmem:[#allocation5 + $0x3b0] sm:$0xff]
        %v389 = vld [vmem:[#allocation5 + $0x3b8] sm:$0xff]
        %v390 = vld [vmem:[#allocation5 + $0x3c0] sm:$0xff]
        %v391 = vld [vmem:[#allocation5 + $0x3c8] sm:$0xf]
        %v392 = vld [vmem:[#allocation5 + $0x3cc] sm:$0xff]
        %v393 = vld [vmem:[#allocation5 + $0x3d4] sm:$0xff]
        %v394 = vld [vmem:[#allocation5 + $0x3dc] sm:$0xff]
        %v395 = vld [vmem:[#allocation5 + $0x3e4] sm:$0xff]
        %v396 = vld [vmem:[#allocation5 + $0x3ec] sm:$0xf]
        %v397 = vld [vmem:[#allocation5 + $0x3f0] sm:$0xff]
        %v398 = vld [vmem:[#allocation5 + $0x3f8] sm:$0xff]
        %v399 = vld [vmem:[#allocation5 + $0x400] sm:$0xff]
        %v400 = vld [vmem:[#allocation5 + $0x408] sm:$0xff]
        %v401 = vld [vmem:[#allocation5 + $0x410] sm:$0xf]
        %v402 = vld [vmem:[#allocation5 + $0x414] sm:$0xff]
        %v403 = vld [vmem:[#allocation5 + $0x41c] sm:$0xff]
        %v404 = vld [vmem:[#allocation5 + $0x424] sm:$0xff]
        %v405 = vld [vmem:[#allocation5 + $0x42c] sm:$0xff]
        %v406 = vld [vmem:[#allocation5 + $0x434] sm:$0xf]
        %v407 = vld [vmem:[#allocation5 + $0x438] sm:$0xff]
        %v408 = vld [vmem:[#allocation5 + $0x440] sm:$0xff]
        %v409 = vld [vmem:[#allocation5 + $0x448] sm:$0xff]
        %v410 = vld [vmem:[#allocation5 + $0x450] sm:$0xff]
        %v411 = vld [vmem:[#allocation5 + $0x458] sm:$0xf]
        %v412 = vld [vmem:[#allocation5 + $0x45c] sm:$0xff]
        %v413 = vld [vmem:[#allocation5 + $0x464] sm:$0xff]
        %v414 = vld [vmem:[#allocation5 + $0x46c] sm:$0xff]
        %v415 = vld [vmem:[#allocation5 + $0x474] sm:$0xff]
        %v416 = vld [vmem:[#allocation5 + $0x47c] sm:$0xf]
        %v417 = vld [vmem:[#allocation5 + $0x480] sm:$0xff]
        %v418 = vld [vmem:[#allocation5 + $0x488] sm:$0xff]
        %v419 = vld [vmem:[#allocation5 + $0x490] sm:$0xff]
        %v420 = vld [vmem:[#allocation5 + $0x498] sm:$0xff]
        %v421 = vld [vmem:[#allocation5 + $0x4a0] sm:$0xf]
        %v422 = vld [vmem:[#allocation5 + $0x4a4] sm:$0xff]
        %v423 = vld [vmem:[#allocation5 + $0x4ac] sm:$0xff]
        %v424 = vld [vmem:[#allocation5 + $0x4b4] sm:$0xff]
        %v425 = vld [vmem:[#allocation5 + $0x4bc] sm:$0xff]
        %v426 = vld [vmem:[#allocation5 + $0x4c4] sm:$0xf]
        %v427 = vld [vmem:[#allocation5 + $0x4c8] sm:$0xff]
        %v428 = vld [vmem:[#allocation5 + $0x4d0] sm:$0xff]
        %v429 = vld [vmem:[#allocation5 + $0x4d8] sm:$0xff]
        %v430 = vld [vmem:[#allocation5 + $0x4e0] sm:$0xff]
        %v431 = vld [vmem:[#allocation5 + $0x4e8] sm:$0xf]
        %v432 = vld [vmem:[#allocation5 + $0x4ec] sm:$0xff]
        %v433 = vld [vmem:[#allocation5 + $0x4f4] sm:$0xff]
        %v434 = vld [vmem:[#allocation5 + $0x4fc] sm:$0xff]
        %v435 = vld [vmem:[#allocation5 + $0x504] sm:$0xff]
        %v436 = vld [vmem:[#allocation5 + $0x50c] sm:$0xf]
        %v437 = vld [vmem:[#allocation5 + $0x510] sm:$0xff]
        %v438 = vld [vmem:[#allocation5 + $0x518] sm:$0xff]
        %v439 = vld [vmem:[#allocation5 + $0x520] sm:$0xff]
        %v440 = vld [vmem:[#allocation5 + $0x528] sm:$0xff]
        %v441 = vld [vmem:[#allocation5 + $0x530] sm:$0xf]
        %v442 = vld [vmem:[#allocation5 + $0x534] sm:$0xff]
        %v443 = vld [vmem:[#allocation5 + $0x53c] sm:$0xff]
        %v444 = vld [vmem:[#allocation5 + $0x544] sm:$0xff]
        %v445 = vld [vmem:[#allocation5 + $0x54c] sm:$0xff]
        %v446 = vld [vmem:[#allocation5 + $0x554] sm:$0xf]
        %v447 = vld [vmem:[#allocation5 + $0x558] sm:$0xff]
        %v448 = vld [vmem:[#allocation5 + $0x560] sm:$0xff]
        %v449 = vld [vmem:[#allocation5 + $0x568] sm:$0xff]
        %v450 = vld [vmem:[#allocation5 + $0x570] sm:$0xff]
        %v451 = vld [vmem:[#allocation5 + $0x578] sm:$0xf]
        %v452 = vld [vmem:[#allocation5 + $0x57c] sm:$0xff]
        %v453 = vld [vmem:[#allocation5 + $0x584] sm:$0xff]
        %v454 = vld [vmem:[#allocation5 + $0x58c] sm:$0xff]
        %v455 = vld [vmem:[#allocation5 + $0x594] sm:$0xff]
        %v456 = vld [vmem:[#allocation5 + $0x59c] sm:$0xf]
        %v457 = vld [vmem:[#allocation5 + $0x5a0] sm:$0xff]
        %v458 = vld [vmem:[#allocation5 + $0x5a8] sm:$0xff]
        %v459 = vld [vmem:[#allocation5 + $0x5b0] sm:$0xff]
        %v460 = vld [vmem:[#allocation5 + $0x5b8] sm:$0xff]
        %v461 = vld [vmem:[#allocation5 + $0x5c0] sm:$0xf]
        %v462 = vld [vmem:[#allocation5 + $0x5c4] sm:$0xff]
        %v463 = vld [vmem:[#allocation5 + $0x5cc] sm:$0xff]
        %v464 = vld [vmem:[#allocation5 + $0x5d4] sm:$0xff]
        %v465 = vld [vmem:[#allocation5 + $0x5dc] sm:$0xff]
        %v466 = vld [vmem:[#allocation5 + $0x5e4] sm:$0xf]
        %v467 = vld [vmem:[#allocation5 + $0x5e8] sm:$0xff]
        %v468 = vld [vmem:[#allocation5 + $0x5f0] sm:$0xff]
        %v469 = vld [vmem:[#allocation5 + $0x5f8] sm:$0xff]
        %v470 = vld [vmem:[#allocation5 + $0x600] sm:$0xff]
        %v471 = vld [vmem:[#allocation5 + $0x608] sm:$0xf]
        %v472 = vld [vmem:[#allocation5 + $0x60c] sm:$0xff]
        %v473 = vld [vmem:[#allocation5 + $0x614] sm:$0xff]
        %v474 = vld [vmem:[#allocation5 + $0x61c] sm:$0xff]
        %v475 = vld [vmem:[#allocation5 + $0x624] sm:$0xff]
        %v476 = vld [vmem:[#allocation5 + $0x62c] sm:$0xf]
        %v477 = vld [vmem:[#allocation5 + $0x630] sm:$0xff]
        %v478 = vld [vmem:[#allocation5 + $0x638] sm:$0xff]
        %v479 = vld [vmem:[#allocation5 + $0x640] sm:$0xff]
        %v480 = vld [vmem:[#allocation5 + $0x648] sm:$0xff]
        %v481 = vld [vmem:[#allocation5 + $0x650] sm:$0xf]
        %v482 = vld [vmem:[#allocation5 + $0x654] sm:$0xff]
        %v483 = vld [vmem:[#allocation5 + $0x65c] sm:$0xff]
        %v484 = vld [vmem:[#allocation5 + $0x664] sm:$0xff]
        %v485 = vld [vmem:[#allocation5 + $0x66c] sm:$0xff]
        %v486 = vld [vmem:[#allocation5 + $0x674] sm:$0xf]
        %v487 = vld [vmem:[#allocation5 + $0x678] sm:$0xff]
        %v488 = vld [vmem:[#allocation5 + $0x680] sm:$0xff]
        %v489 = vld [vmem:[#allocation5 + $0x688] sm:$0xff]
        %v490 = vld [vmem:[#allocation5 + $0x690] sm:$0xff]
        %v491 = vld [vmem:[#allocation5 + $0x698] sm:$0xf]
        %v492 = vld [vmem:[#allocation5 + $0x69c] sm:$0xff]
        %v493 = vld [vmem:[#allocation5 + $0x6a4] sm:$0xff]
        %v494 = vld [vmem:[#allocation5 + $0x6ac] sm:$0xff]
        %v495 = vld [vmem:[#allocation5 + $0x6b4] sm:$0xff]
        %v496 = vld [vmem:[#allocation5 + $0x6bc] sm:$0xf]
        %v505 = vunpack.c.l.b16 %v249
        %v506 = vunpack.c.h.b16 %v249
        %v507 = vunpack.c.l.b16 %v250
        %v508 = vunpack.c.l.b16 %v251
        %v509 = vunpack.c.h.b16 %v251
        %v510 = vunpack.c.l.b16 %v252
        %v511 = vunpack.c.l.b16 %v253
        %v512 = vunpack.c.h.b16 %v253
        %v513 = vunpack.c.l.b16 %v254
        %v514 = vunpack.c.l.b16 %v255
        %v515 = vunpack.c.h.b16 %v255
        %v516 = vunpack.c.l.b16 %v256
        %v517 = vpack.c.b16 %v508, %v505
        %v518 = vpack.c.b16 %v509, %v506
        %v519 = vpack.c.b16 %v510, %v507
        %v520 = vpack.c.b16 %v514, %v511
        %v521 = vpack.c.b16 %v515, %v512
        %v522 = vpack.c.b16 %v516, %v513
        %v769 = vunpack.c.l.b16 %v257
        %v770 = vunpack.c.h.b16 %v257
        %v771 = vunpack.c.l.b16 %v258
        %v772 = vunpack.c.h.b16 %v258
        %v773 = vunpack.c.l.b16 %v259
        %v774 = vunpack.c.h.b16 %v259
        %v775 = vunpack.c.l.b16 %v260
        %v776 = vunpack.c.h.b16 %v260
        %v777 = vunpack.c.l.b16 %v261
        %v778 = vunpack.c.l.b16 %v262
        %v779 = vunpack.c.h.b16 %v262
        %v780 = vunpack.c.l.b16 %v263
        %v781 = vunpack.c.h.b16 %v263
        %v782 = vunpack.c.l.b16 %v264
        %v783 = vunpack.c.h.b16 %v264
        %v784 = vunpack.c.l.b16 %v265
        %v785 = vunpack.c.h.b16 %v265
        %v786 = vunpack.c.l.b16 %v266
        %v787 = vunpack.c.l.b16 %v267
        %v788 = vunpack.c.h.b16 %v267
        %v789 = vunpack.c.l.b16 %v268
        %v790 = vunpack.c.h.b16 %v268
        %v791 = vunpack.c.l.b16 %v269
        %v792 = vunpack.c.h.b16 %v269
        %v793 = vunpack.c.l.b16 %v270
        %v794 = vunpack.c.h.b16 %v270
        %v795 = vunpack.c.l.b16 %v271
        %v796 = vunpack.c.l.b16 %v272
        %v797 = vunpack.c.h.b16 %v272
        %v798 = vunpack.c.l.b16 %v273
        %v799 = vunpack.c.h.b16 %v273
        %v800 = vunpack.c.l.b16 %v274
        %v801 = vunpack.c.h.b16 %v274
        %v802 = vunpack.c.l.b16 %v275
        %v803 = vunpack.c.h.b16 %v275
        %v804 = vunpack.c.l.b16 %v276
        %v805 = vunpack.c.l.b16 %v277
        %v806 = vunpack.c.h.b16 %v277
        %v807 = vunpack.c.l.b16 %v278
        %v808 = vunpack.c.h.b16 %v278
        %v809 = vunpack.c.l.b16 %v279
        %v810 = vunpack.c.h.b16 %v279
        %v811 = vunpack.c.l.b16 %v280
        %v812 = vunpack.c.h.b16 %v280
        %v813 = vunpack.c.l.b16 %v281
        %v814 = vunpack.c.l.b16 %v282
        %v815 = vunpack.c.h.b16 %v282
        %v816 = vunpack.c.l.b16 %v283
        %v817 = vunpack.c.h.b16 %v283
        %v818 = vunpack.c.l.b16 %v284
        %v819 = vunpack.c.h.b16 %v284
        %v820 = vunpack.c.l.b16 %v285
        %v821 = vunpack.c.h.b16 %v285
        %v822 = vunpack.c.l.b16 %v286
        %v823 = vunpack.c.l.b16 %v287
        %v824 = vunpack.c.h.b16 %v287
        %v825 = vunpack.c.l.b16 %v288
        %v826 = vunpack.c.h.b16 %v288
        %v827 = vunpack.c.l.b16 %v289
        %v828 = vunpack.c.h.b16 %v289
        %v829 = vunpack.c.l.b16 %v290
        %v830 = vunpack.c.h.b16 %v290
        %v831 = vunpack.c.l.b16 %v291
        %v832 = vunpack.c.l.b16 %v292
        %v833 = vunpack.c.h.b16 %v292
        %v834 = vunpack.c.l.b16 %v293
        %v835 = vunpack.c.h.b16 %v293
        %v836 = vunpack.c.l.b16 %v294
        %v837 = vunpack.c.h.b16 %v294
        %v838 = vunpack.c.l.b16 %v295
        %v839 = vunpack.c.h.b16 %v295
        %v840 = vunpack.c.l.b16 %v296
        %v841 = vunpack.c.l.b16 %v297
        %v842 = vunpack.c.h.b16 %v297
        %v843 = vunpack.c.l.b16 %v298
        %v844 = vunpack.c.h.b16 %v298
        %v845 = vunpack.c.l.b16 %v299
        %v846 = vunpack.c.h.b16 %v299
        %v847 = vunpack.c.l.b16 %v300
        %v848 = vunpack.c.h.b16 %v300
        %v849 = vunpack.c.l.b16 %v301
        %v850 = vunpack.c.l.b16 %v302
        %v851 = vunpack.c.h.b16 %v302
        %v852 = vunpack.c.l.b16 %v303
        %v853 = vunpack.c.h.b16 %v303
        %v854 = vunpack.c.l.b16 %v304
        %v855 = vunpack.c.h.b16 %v304
        %v856 = vunpack.c.l.b16 %v305
        %v857 = vunpack.c.h.b16 %v305
        %v858 = vunpack.c.l.b16 %v306
        %v859 = vunpack.c.l.b16 %v307
        %v860 = vunpack.c.h.b16 %v307
        %v861 = vunpack.c.l.b16 %v308
        %v862 = vunpack.c.h.b16 %v308
        %v863 = vunpack.c.l.b16 %v309
        %v864 = vunpack.c.h.b16 %v309
        %v865 = vunpack.c.l.b16 %v310
        %v866 = vunpack.c.h.b16 %v310
        %v867 = vunpack.c.l.b16 %v311
        %v868 = vunpack.c.l.b16 %v312
        %v869 = vunpack.c.h.b16 %v312
        %v870 = vunpack.c.l.b16 %v313
        %v871 = vunpack.c.h.b16 %v313
        %v872 = vunpack.c.l.b16 %v314
        %v873 = vunpack.c.h.b16 %v314
        %v874 = vunpack.c.l.b16 %v315
        %v875 = vunpack.c.h.b16 %v315
        %v876 = vunpack.c.l.b16 %v316
        %v877 = vunpack.c.l.b16 %v317
        %v878 = vunpack.c.h.b16 %v317
        %v879 = vunpack.c.l.b16 %v318
        %v880 = vunpack.c.h.b16 %v318
        %v881 = vunpack.c.l.b16 %v319
        %v882 = vunpack.c.h.b16 %v319
        %v883 = vunpack.c.l.b16 %v320
        %v884 = vunpack.c.h.b16 %v320
        %v885 = vunpack.c.l.b16 %v321
        %v886 = vunpack.c.l.b16 %v322
        %v887 = vunpack.c.h.b16 %v322
        %v888 = vunpack.c.l.b16 %v323
        %v889 = vunpack.c.h.b16 %v323
        %v890 = vunpack.c.l.b16 %v324
        %v891 = vunpack.c.h.b16 %v324
        %v892 = vunpack.c.l.b16 %v325
        %v893 = vunpack.c.h.b16 %v325
        %v894 = vunpack.c.l.b16 %v326
        %v895 = vunpack.c.l.b16 %v327
        %v896 = vunpack.c.h.b16 %v327
        %v897 = vunpack.c.l.b16 %v328
        %v898 = vunpack.c.h.b16 %v328
        %v899 = vunpack.c.l.b16 %v329
        %v900 = vunpack.c.h.b16 %v329
        %v901 = vunpack.c.l.b16 %v330
        %v902 = vunpack.c.h.b16 %v330
        %v903 = vunpack.c.l.b16 %v331
        %v904 = vunpack.c.l.b16 %v332
        %v905 = vunpack.c.h.b16 %v332
        %v906 = vunpack.c.l.b16 %v333
        %v907 = vunpack.c.h.b16 %v333
        %v908 = vunpack.c.l.b16 %v334
        %v909 = vunpack.c.h.b16 %v334
        %v910 = vunpack.c.l.b16 %v335
        %v911 = vunpack.c.h.b16 %v335
        %v912 = vunpack.c.l.b16 %v336
        %v913 = vunpack.c.l.b16 %v337
        %v914 = vunpack.c.h.b16 %v337
        %v915 = vunpack.c.l.b16 %v338
        %v916 = vunpack.c.h.b16 %v338
        %v917 = vunpack.c.l.b16 %v339
        %v918 = vunpack.c.h.b16 %v339
        %v919 = vunpack.c.l.b16 %v340
        %v920 = vunpack.c.h.b16 %v340
        %v921 = vunpack.c.l.b16 %v341
        %v922 = vunpack.c.l.b16 %v342
        %v923 = vunpack.c.h.b16 %v342
        %v924 = vunpack.c.l.b16 %v343
        %v925 = vunpack.c.h.b16 %v343
        %v926 = vunpack.c.l.b16 %v344
        %v927 = vunpack.c.h.b16 %v344
        %v928 = vunpack.c.l.b16 %v345
        %v929 = vunpack.c.h.b16 %v345
        %v930 = vunpack.c.l.b16 %v346
        %v931 = vunpack.c.l.b16 %v347
        %v932 = vunpack.c.h.b16 %v347
        %v933 = vunpack.c.l.b16 %v348
        %v934 = vunpack.c.h.b16 %v348
        %v935 = vunpack.c.l.b16 %v349
        %v936 = vunpack.c.h.b16 %v349
        %v937 = vunpack.c.l.b16 %v350
        %v938 = vunpack.c.h.b16 %v350
        %v939 = vunpack.c.l.b16 %v351
        %v940 = vunpack.c.l.b16 %v352
        %v941 = vunpack.c.h.b16 %v352
        %v942 = vunpack.c.l.b16 %v353
        %v943 = vunpack.c.h.b16 %v353
        %v944 = vunpack.c.l.b16 %v354
        %v945 = vunpack.c.h.b16 %v354
        %v946 = vunpack.c.l.b16 %v355
        %v947 = vunpack.c.h.b16 %v355
        %v948 = vunpack.c.l.b16 %v356
        %v949 = vunpack.c.l.b16 %v357
        %v950 = vunpack.c.h.b16 %v357
        %v951 = vunpack.c.l.b16 %v358
        %v952 = vunpack.c.h.b16 %v358
        %v953 = vunpack.c.l.b16 %v359
        %v954 = vunpack.c.h.b16 %v359
        %v955 = vunpack.c.l.b16 %v360
        %v956 = vunpack.c.h.b16 %v360
        %v957 = vunpack.c.l.b16 %v361
        %v958 = vunpack.c.l.b16 %v362
        %v959 = vunpack.c.h.b16 %v362
        %v960 = vunpack.c.l.b16 %v363
        %v961 = vunpack.c.h.b16 %v363
        %v962 = vunpack.c.l.b16 %v364
        %v963 = vunpack.c.h.b16 %v364
        %v964 = vunpack.c.l.b16 %v365
        %v965 = vunpack.c.h.b16 %v365
        %v966 = vunpack.c.l.b16 %v366
        %v967 = vunpack.c.l.b16 %v367
        %v968 = vunpack.c.h.b16 %v367
        %v969 = vunpack.c.l.b16 %v368
        %v970 = vunpack.c.h.b16 %v368
        %v971 = vunpack.c.l.b16 %v369
        %v972 = vunpack.c.h.b16 %v369
        %v973 = vunpack.c.l.b16 %v370
        %v974 = vunpack.c.h.b16 %v370
        %v975 = vunpack.c.l.b16 %v371
        %v976 = vunpack.c.l.b16 %v372
        %v977 = vunpack.c.h.b16 %v372
        %v978 = vunpack.c.l.b16 %v373
        %v979 = vunpack.c.h.b16 %v373
        %v980 = vunpack.c.l.b16 %v374
        %v981 = vunpack.c.h.b16 %v374
        %v982 = vunpack.c.l.b16 %v375
        %v983 = vunpack.c.h.b16 %v375
        %v984 = vunpack.c.l.b16 %v376
        %v985 = vunpack.c.l.b16 %v377
        %v986 = vunpack.c.h.b16 %v377
        %v987 = vunpack.c.l.b16 %v378
        %v988 = vunpack.c.h.b16 %v378
        %v989 = vunpack.c.l.b16 %v379
        %v990 = vunpack.c.h.b16 %v379
        %v991 = vunpack.c.l.b16 %v380
        %v992 = vunpack.c.h.b16 %v380
        %v993 = vunpack.c.l.b16 %v381
        %v994 = vunpack.c.l.b16 %v382
        %v995 = vunpack.c.h.b16 %v382
        %v996 = vunpack.c.l.b16 %v383
        %v997 = vunpack.c.h.b16 %v383
        %v998 = vunpack.c.l.b16 %v384
        %v999 = vunpack.c.h.b16 %v384
        %v1000 = vunpack.c.l.b16 %v385
        %v1001 = vunpack.c.h.b16 %v385
        %v1002 = vunpack.c.l.b16 %v386
        %v1003 = vunpack.c.l.b16 %v387
        %v1004 = vunpack.c.h.b16 %v387
        %v1005 = vunpack.c.l.b16 %v388
        %v1006 = vunpack.c.h.b16 %v388
        %v1007 = vunpack.c.l.b16 %v389
        %v1008 = vunpack.c.h.b16 %v389
        %v1009 = vunpack.c.l.b16 %v390
        %v1010 = vunpack.c.h.b16 %v390
        %v1011 = vunpack.c.l.b16 %v391
        %v1012 = vunpack.c.l.b16 %v392
        %v1013 = vunpack.c.h.b16 %v392
        %v1014 = vunpack.c.l.b16 %v393
        %v1015 = vunpack.c.h.b16 %v393
        %v1016 = vunpack.c.l.b16 %v394
        %v1017 = vunpack.c.h.b16 %v394
        %v1018 = vunpack.c.l.b16 %v395
        %v1019 = vunpack.c.h.b16 %v395
        %v1020 = vunpack.c.l.b16 %v396
        %v1021 = vunpack.c.l.b16 %v397
        %v1022 = vunpack.c.h.b16 %v397
        %v1023 = vunpack.c.l.b16 %v398
        %v1024 = vunpack.c.h.b16 %v398
        %v1025 = vunpack.c.l.b16 %v399
        %v1026 = vunpack.c.h.b16 %v399
        %v1027 = vunpack.c.l.b16 %v400
        %v1028 = vunpack.c.h.b16 %v400
        %v1029 = vunpack.c.l.b16 %v401
        %v1030 = vunpack.c.l.b16 %v402
        %v1031 = vunpack.c.h.b16 %v402
        %v1032 = vunpack.c.l.b16 %v403
        %v1033 = vunpack.c.h.b16 %v403
        %v1034 = vunpack.c.l.b16 %v404
        %v1035 = vunpack.c.h.b16 %v404
        %v1036 = vunpack.c.l.b16 %v405
        %v1037 = vunpack.c.h.b16 %v405
        %v1038 = vunpack.c.l.b16 %v406
        %v1039 = vunpack.c.l.b16 %v407
        %v1040 = vunpack.c.h.b16 %v407
        %v1041 = vunpack.c.l.b16 %v408
        %v1042 = vunpack.c.h.b16 %v408
        %v1043 = vunpack.c.l.b16 %v409
        %v1044 = vunpack.c.h.b16 %v409
        %v1045 = vunpack.c.l.b16 %v410
        %v1046 = vunpack.c.h.b16 %v410
        %v1047 = vunpack.c.l.b16 %v411
        %v1048 = vunpack.c.l.b16 %v412
        %v1049 = vunpack.c.h.b16 %v412
        %v1050 = vunpack.c.l.b16 %v413
        %v1051 = vunpack.c.h.b16 %v413
        %v1052 = vunpack.c.l.b16 %v414
        %v1053 = vunpack.c.h.b16 %v414
        %v1054 = vunpack.c.l.b16 %v415
        %v1055 = vunpack.c.h.b16 %v415
        %v1056 = vunpack.c.l.b16 %v416
        %v1057 = vunpack.c.l.b16 %v417
        %v1058 = vunpack.c.h.b16 %v417
        %v1059 = vunpack.c.l.b16 %v418
        %v1060 = vunpack.c.h.b16 %v418
        %v1061 = vunpack.c.l.b16 %v419
        %v1062 = vunpack.c.h.b16 %v419
        %v1063 = vunpack.c.l.b16 %v420
        %v1064 = vunpack.c.h.b16 %v420
        %v1065 = vunpack.c.l.b16 %v421
        %v1066 = vunpack.c.l.b16 %v422
        %v1067 = vunpack.c.h.b16 %v422
        %v1068 = vunpack.c.l.b16 %v423
        %v1069 = vunpack.c.h.b16 %v423
        %v1070 = vunpack.c.l.b16 %v424
        %v1071 = vunpack.c.h.b16 %v424
        %v1072 = vunpack.c.l.b16 %v425
        %v1073 = vunpack.c.h.b16 %v425
        %v1074 = vunpack.c.l.b16 %v426
        %v1075 = vunpack.c.l.b16 %v427
        %v1076 = vunpack.c.h.b16 %v427
        %v1077 = vunpack.c.l.b16 %v428
        %v1078 = vunpack.c.h.b16 %v428
        %v1079 = vunpack.c.l.b16 %v429
        %v1080 = vunpack.c.h.b16 %v429
        %v1081 = vunpack.c.l.b16 %v430
        %v1082 = vunpack.c.h.b16 %v430
        %v1083 = vunpack.c.l.b16 %v431
        %v1084 = vunpack.c.l.b16 %v432
        %v1085 = vunpack.c.h.b16 %v432
        %v1086 = vunpack.c.l.b16 %v433
        %v1087 = vunpack.c.h.b16 %v433
        %v1088 = vunpack.c.l.b16 %v434
        %v1089 = vunpack.c.h.b16 %v434
        %v1090 = vunpack.c.l.b16 %v435
        %v1091 = vunpack.c.h.b16 %v435
        %v1092 = vunpack.c.l.b16 %v436
        %v1093 = vunpack.c.l.b16 %v437
        %v1094 = vunpack.c.h.b16 %v437
        %v1095 = vunpack.c.l.b16 %v438
        %v1096 = vunpack.c.h.b16 %v438
        %v1097 = vunpack.c.l.b16 %v439
        %v1098 = vunpack.c.h.b16 %v439
        %v1099 = vunpack.c.l.b16 %v440
        %v1100 = vunpack.c.h.b16 %v440
        %v1101 = vunpack.c.l.b16 %v441
        %v1102 = vunpack.c.l.b16 %v442
        %v1103 = vunpack.c.h.b16 %v442
        %v1104 = vunpack.c.l.b16 %v443
        %v1105 = vunpack.c.h.b16 %v443
        %v1106 = vunpack.c.l.b16 %v444
        %v1107 = vunpack.c.h.b16 %v444
        %v1108 = vunpack.c.l.b16 %v445
        %v1109 = vunpack.c.h.b16 %v445
        %v1110 = vunpack.c.l.b16 %v446
        %v1111 = vunpack.c.l.b16 %v447
        %v1112 = vunpack.c.h.b16 %v447
        %v1113 = vunpack.c.l.b16 %v448
        %v1114 = vunpack.c.h.b16 %v448
        %v1115 = vunpack.c.l.b16 %v449
        %v1116 = vunpack.c.h.b16 %v449
        %v1117 = vunpack.c.l.b16 %v450
        %v1118 = vunpack.c.h.b16 %v450
        %v1119 = vunpack.c.l.b16 %v451
        %v1120 = vunpack.c.l.b16 %v452
        %v1121 = vunpack.c.h.b16 %v452
        %v1122 = vunpack.c.l.b16 %v453
        %v1123 = vunpack.c.h.b16 %v453
        %v1124 = vunpack.c.l.b16 %v454
        %v1125 = vunpack.c.h.b16 %v454
        %v1126 = vunpack.c.l.b16 %v455
        %v1127 = vunpack.c.h.b16 %v455
        %v1128 = vunpack.c.l.b16 %v456
        %v1129 = vunpack.c.l.b16 %v457
        %v1130 = vunpack.c.h.b16 %v457
        %v1131 = vunpack.c.l.b16 %v458
        %v1132 = vunpack.c.h.b16 %v458
        %v1133 = vunpack.c.l.b16 %v459
        %v1134 = vunpack.c.h.b16 %v459
        %v1135 = vunpack.c.l.b16 %v460
        %v1136 = vunpack.c.h.b16 %v460
        %v1137 = vunpack.c.l.b16 %v461
        %v1138 = vunpack.c.l.b16 %v462
        %v1139 = vunpack.c.h.b16 %v462
        %v1140 = vunpack.c.l.b16 %v463
        %v1141 = vunpack.c.h.b16 %v463
        %v1142 = vunpack.c.l.b16 %v464
        %v1143 = vunpack.c.h.b16 %v464
        %v1144 = vunpack.c.l.b16 %v465
        %v1145 = vunpack.c.h.b16 %v465
        %v1146 = vunpack.c.l.b16 %v466
        %v1147 = vunpack.c.l.b16 %v467
        %v1148 = vunpack.c.h.b16 %v467
        %v1149 = vunpack.c.l.b16 %v468
        %v1150 = vunpack.c.h.b16 %v468
        %v1151 = vunpack.c.l.b16 %v469
        %v1152 = vunpack.c.h.b16 %v469
        %v1153 = vunpack.c.l.b16 %v470
        %v1154 = vunpack.c.h.b16 %v470
        %v1155 = vunpack.c.l.b16 %v471
        %v1156 = vunpack.c.l.b16 %v472
        %v1157 = vunpack.c.h.b16 %v472
        %v1158 = vunpack.c.l.b16 %v473
        %v1159 = vunpack.c.h.b16 %v473
        %v1160 = vunpack.c.l.b16 %v474
        %v1161 = vunpack.c.h.b16 %v474
        %v1162 = vunpack.c.l.b16 %v475
        %v1163 = vunpack.c.h.b16 %v475
        %v1164 = vunpack.c.l.b16 %v476
        %v1165 = vunpack.c.l.b16 %v477
        %v1166 = vunpack.c.h.b16 %v477
        %v1167 = vunpack.c.l.b16 %v478
        %v1168 = vunpack.c.h.b16 %v478
        %v1169 = vunpack.c.l.b16 %v479
        %v1170 = vunpack.c.h.b16 %v479
        %v1171 = vunpack.c.l.b16 %v480
        %v1172 = vunpack.c.h.b16 %v480
        %v1173 = vunpack.c.l.b16 %v481
        %v1174 = vunpack.c.l.b16 %v482
        %v1175 = vunpack.c.h.b16 %v482
        %v1176 = vunpack.c.l.b16 %v483
        %v1177 = vunpack.c.h.b16 %v483
        %v1178 = vunpack.c.l.b16 %v484
        %v1179 = vunpack.c.h.b16 %v484
        %v1180 = vunpack.c.l.b16 %v485
        %v1181 = vunpack.c.h.b16 %v485
        %v1182 = vunpack.c.l.b16 %v486
        %v1183 = vunpack.c.l.b16 %v487
        %v1184 = vunpack.c.h.b16 %v487
        %v1185 = vunpack.c.l.b16 %v488
        %v1186 = vunpack.c.h.b16 %v488
        %v1187 = vunpack.c.l.b16 %v489
        %v1188 = vunpack.c.h.b16 %v489
        %v1189 = vunpack.c.l.b16 %v490
        %v1190 = vunpack.c.h.b16 %v490
        %v1191 = vunpack.c.l.b16 %v491
        %v1192 = vunpack.c.l.b16 %v492
        %v1193 = vunpack.c.h.b16 %v492
        %v1194 = vunpack.c.l.b16 %v493
        %v1195 = vunpack.c.h.b16 %v493
        %v1196 = vunpack.c.l.b16 %v494
        %v1197 = vunpack.c.h.b16 %v494
        %v1198 = vunpack.c.l.b16 %v495
        %v1199 = vunpack.c.h.b16 %v495
        %v1200 = vunpack.c.l.b16 %v496
        %v1201 = vpack.c.b16 %v778, %v769
        %v1202 = vpack.c.b16 %v779, %v770
        %v1203 = vpack.c.b16 %v780, %v771
        %v1204 = vpack.c.b16 %v781, %v772
        %v1205 = vpack.c.b16 %v782, %v773
        %v1206 = vpack.c.b16 %v783, %v774
        %v1207 = vpack.c.b16 %v784, %v775
        %v1208 = vpack.c.b16 %v785, %v776
        %v1209 = vpack.c.b16 %v786, %v777
        %v1210 = vpack.c.b16 %v796, %v787
        %v1211 = vpack.c.b16 %v797, %v788
        %v1212 = vpack.c.b16 %v798, %v789
        %v1213 = vpack.c.b16 %v799, %v790
        %v1214 = vpack.c.b16 %v800, %v791
        %v1215 = vpack.c.b16 %v801, %v792
        %v1216 = vpack.c.b16 %v802, %v793
        %v1217 = vpack.c.b16 %v803, %v794
        %v1218 = vpack.c.b16 %v804, %v795
        %v1219 = vpack.c.b16 %v814, %v805
        %v1220 = vpack.c.b16 %v815, %v806
        %v1221 = vpack.c.b16 %v816, %v807
        %v1222 = vpack.c.b16 %v817, %v808
        %v1223 = vpack.c.b16 %v818, %v809
        %v1224 = vpack.c.b16 %v819, %v810
        %v1225 = vpack.c.b16 %v820, %v811
        %v1226 = vpack.c.b16 %v821, %v812
        %v1227 = vpack.c.b16 %v822, %v813
        %v1228 = vpack.c.b16 %v832, %v823
        %v1229 = vpack.c.b16 %v833, %v824
        %v1230 = vpack.c.b16 %v834, %v825
        %v1231 = vpack.c.b16 %v835, %v826
        %v1232 = vpack.c.b16 %v836, %v827
        %v1233 = vpack.c.b16 %v837, %v828
        %v1234 = vpack.c.b16 %v838, %v829
        %v1235 = vpack.c.b16 %v839, %v830
        %v1236 = vpack.c.b16 %v840, %v831
        %v1237 = vpack.c.b16 %v850, %v841
        %v1238 = vpack.c.b16 %v851, %v842
        %v1239 = vpack.c.b16 %v852, %v843
        %v1240 = vpack.c.b16 %v853, %v844
        %v1241 = vpack.c.b16 %v854, %v845
        %v1242 = vpack.c.b16 %v855, %v846
        %v1243 = vpack.c.b16 %v856, %v847
        %v1244 = vpack.c.b16 %v857, %v848
        %v1245 = vpack.c.b16 %v858, %v849
        %v1246 = vpack.c.b16 %v868, %v859
        %v1247 = vpack.c.b16 %v869, %v860
        %v1248 = vpack.c.b16 %v870, %v861
        %v1249 = vpack.c.b16 %v871, %v862
        %v1250 = vpack.c.b16 %v872, %v863
        %v1251 = vpack.c.b16 %v873, %v864
        %v1252 = vpack.c.b16 %v874, %v865
        %v1253 = vpack.c.b16 %v875, %v866
        %v1254 = vpack.c.b16 %v876, %v867
        %v1255 = vpack.c.b16 %v886, %v877
        %v1256 = vpack.c.b16 %v887, %v878
        %v1257 = vpack.c.b16 %v888, %v879
        %v1258 = vpack.c.b16 %v889, %v880
        %v1259 = vpack.c.b16 %v890, %v881
        %v1260 = vpack.c.b16 %v891, %v882
        %v1261 = vpack.c.b16 %v892, %v883
        %v1262 = vpack.c.b16 %v893, %v884
        %v1263 = vpack.c.b16 %v894, %v885
        %v1264 = vpack.c.b16 %v904, %v895
        %v1265 = vpack.c.b16 %v905, %v896
        %v1266 = vpack.c.b16 %v906, %v897
        %v1267 = vpack.c.b16 %v907, %v898
        %v1268 = vpack.c.b16 %v908, %v899
        %v1269 = vpack.c.b16 %v909, %v900
        %v1270 = vpack.c.b16 %v910, %v901
        %v1271 = vpack.c.b16 %v911, %v902
        %v1272 = vpack.c.b16 %v912, %v903
        %v1273 = vpack.c.b16 %v922, %v913
        %v1274 = vpack.c.b16 %v923, %v914
        %v1275 = vpack.c.b16 %v924, %v915
        %v1276 = vpack.c.b16 %v925, %v916
        %v1277 = vpack.c.b16 %v926, %v917
        %v1278 = vpack.c.b16 %v927, %v918
        %v1279 = vpack.c.b16 %v928, %v919
        %v1280 = vpack.c.b16 %v929, %v920
        %v1281 = vpack.c.b16 %v930, %v921
        %v1282 = vpack.c.b16 %v940, %v931
        %v1283 = vpack.c.b16 %v941, %v932
        %v1284 = vpack.c.b16 %v942, %v933
        %v1285 = vpack.c.b16 %v943, %v934
        %v1286 = vpack.c.b16 %v944, %v935
        %v1287 = vpack.c.b16 %v945, %v936
        %v1288 = vpack.c.b16 %v946, %v937
        %v1289 = vpack.c.b16 %v947, %v938
        %v1290 = vpack.c.b16 %v948, %v939
        %v1291 = vpack.c.b16 %v958, %v949
        %v1292 = vpack.c.b16 %v959, %v950
        %v1293 = vpack.c.b16 %v960, %v951
        %v1294 = vpack.c.b16 %v961, %v952
        %v1295 = vpack.c.b16 %v962, %v953
        %v1296 = vpack.c.b16 %v963, %v954
        %v1297 = vpack.c.b16 %v964, %v955
        %v1298 = vpack.c.b16 %v965, %v956
        %v1299 = vpack.c.b16 %v966, %v957
        %v1300 = vpack.c.b16 %v976, %v967
        %v1301 = vpack.c.b16 %v977, %v968
        %v1302 = vpack.c.b16 %v978, %v969
        %v1303 = vpack.c.b16 %v979, %v970
        %v1304 = vpack.c.b16 %v980, %v971
        %v1305 = vpack.c.b16 %v981, %v972
        %v1306 = vpack.c.b16 %v982, %v973
        %v1307 = vpack.c.b16 %v983, %v974
        %v1308 = vpack.c.b16 %v984, %v975
        %v1309 = vpack.c.b16 %v994, %v985
        %v1310 = vpack.c.b16 %v995, %v986
        %v1311 = vpack.c.b16 %v996, %v987
        %v1312 = vpack.c.b16 %v997, %v988
        %v1313 = vpack.c.b16 %v998, %v989
        %v1314 = vpack.c.b16 %v999, %v990
        %v1315 = vpack.c.b16 %v1000, %v991
        %v1316 = vpack.c.b16 %v1001, %v992
        %v1317 = vpack.c.b16 %v1002, %v993
        %v1318 = vpack.c.b16 %v1012, %v1003
        %v1319 = vpack.c.b16 %v1013, %v1004
        %v1320 = vpack.c.b16 %v1014, %v1005
        %v1321 = vpack.c.b16 %v1015, %v1006
        %v1322 = vpack.c.b16 %v1016, %v1007
        %v1323 = vpack.c.b16 %v1017, %v1008
        %v1324 = vpack.c.b16 %v1018, %v1009
        %v1325 = vpack.c.b16 %v1019, %v1010
        %v1326 = vpack.c.b16 %v1020, %v1011
        %v1327 = vpack.c.b16 %v1030, %v1021
        %v1328 = vpack.c.b16 %v1031, %v1022
        %v1329 = vpack.c.b16 %v1032, %v1023
        %v1330 = vpack.c.b16 %v1033, %v1024
        %v1331 = vpack.c.b16 %v1034, %v1025
        %v1332 = vpack.c.b16 %v1035, %v1026
        %v1333 = vpack.c.b16 %v1036, %v1027
        %v1334 = vpack.c.b16 %v1037, %v1028
        %v1335 = vpack.c.b16 %v1038, %v1029
        %v1336 = vpack.c.b16 %v1048, %v1039
        %v1337 = vpack.c.b16 %v1049, %v1040
        %v1338 = vpack.c.b16 %v1050, %v1041
        %v1339 = vpack.c.b16 %v1051, %v1042
        %v1340 = vpack.c.b16 %v1052, %v1043
        %v1341 = vpack.c.b16 %v1053, %v1044
        %v1342 = vpack.c.b16 %v1054, %v1045
        %v1343 = vpack.c.b16 %v1055, %v1046
        %v1344 = vpack.c.b16 %v1056, %v1047
        %v1345 = vpack.c.b16 %v1066, %v1057
        %v1346 = vpack.c.b16 %v1067, %v1058
        %v1347 = vpack.c.b16 %v1068, %v1059
        %v1348 = vpack.c.b16 %v1069, %v1060
        %v1349 = vpack.c.b16 %v1070, %v1061
        %v1350 = vpack.c.b16 %v1071, %v1062
        %v1351 = vpack.c.b16 %v1072, %v1063
        %v1352 = vpack.c.b16 %v1073, %v1064
        %v1353 = vpack.c.b16 %v1074, %v1065
        %v1354 = vpack.c.b16 %v1084, %v1075
        %v1355 = vpack.c.b16 %v1085, %v1076
        %v1356 = vpack.c.b16 %v1086, %v1077
        %v1357 = vpack.c.b16 %v1087, %v1078
        %v1358 = vpack.c.b16 %v1088, %v1079
        %v1359 = vpack.c.b16 %v1089, %v1080
        %v1360 = vpack.c.b16 %v1090, %v1081
        %v1361 = vpack.c.b16 %v1091, %v1082
        %v1362 = vpack.c.b16 %v1092, %v1083
        %v1363 = vpack.c.b16 %v1102, %v1093
        %v1364 = vpack.c.b16 %v1103, %v1094
        %v1365 = vpack.c.b16 %v1104, %v1095
        %v1366 = vpack.c.b16 %v1105, %v1096
        %v1367 = vpack.c.b16 %v1106, %v1097
        %v1368 = vpack.c.b16 %v1107, %v1098
        %v1369 = vpack.c.b16 %v1108, %v1099
        %v1370 = vpack.c.b16 %v1109, %v1100
        %v1371 = vpack.c.b16 %v1110, %v1101
        %v1372 = vpack.c.b16 %v1120, %v1111
        %v1373 = vpack.c.b16 %v1121, %v1112
        %v1374 = vpack.c.b16 %v1122, %v1113
        %v1375 = vpack.c.b16 %v1123, %v1114
        %v1376 = vpack.c.b16 %v1124, %v1115
        %v1377 = vpack.c.b16 %v1125, %v1116
        %v1378 = vpack.c.b16 %v1126, %v1117
        %v1379 = vpack.c.b16 %v1127, %v1118
        %v1380 = vpack.c.b16 %v1128, %v1119
        %v1381 = vpack.c.b16 %v1138, %v1129
        %v1382 = vpack.c.b16 %v1139, %v1130
        %v1383 = vpack.c.b16 %v1140, %v1131
        %v1384 = vpack.c.b16 %v1141, %v1132
        %v1385 = vpack.c.b16 %v1142, %v1133
        %v1386 = vpack.c.b16 %v1143, %v1134
        %v1387 = vpack.c.b16 %v1144, %v1135
        %v1388 = vpack.c.b16 %v1145, %v1136
        %v1389 = vpack.c.b16 %v1146, %v1137
        %v1390 = vpack.c.b16 %v1156, %v1147
        %v1391 = vpack.c.b16 %v1157, %v1148
        %v1392 = vpack.c.b16 %v1158, %v1149
        %v1393 = vpack.c.b16 %v1159, %v1150
        %v1394 = vpack.c.b16 %v1160, %v1151
        %v1395 = vpack.c.b16 %v1161, %v1152
        %v1396 = vpack.c.b16 %v1162, %v1153
        %v1397 = vpack.c.b16 %v1163, %v1154
        %v1398 = vpack.c.b16 %v1164, %v1155
        %v1399 = vpack.c.b16 %v1174, %v1165
        %v1400 = vpack.c.b16 %v1175, %v1166
        %v1401 = vpack.c.b16 %v1176, %v1167
        %v1402 = vpack.c.b16 %v1177, %v1168
        %v1403 = vpack.c.b16 %v1178, %v1169
        %v1404 = vpack.c.b16 %v1179, %v1170
        %v1405 = vpack.c.b16 %v1180, %v1171
        %v1406 = vpack.c.b16 %v1181, %v1172
        %v1407 = vpack.c.b16 %v1182, %v1173
        %v1408 = vpack.c.b16 %v1192, %v1183
        %v1409 = vpack.c.b16 %v1193, %v1184
        %v1410 = vpack.c.b16 %v1194, %v1185
        %v1411 = vpack.c.b16 %v1195, %v1186
        %v1412 = vpack.c.b16 %v1196, %v1187
        %v1413 = vpack.c.b16 %v1197, %v1188
        %v1414 = vpack.c.b16 %v1198, %v1189
        %v1415 = vpack.c.b16 %v1199, %v1190
        %v1416 = vpack.c.b16 %v1200, %v1191
        %1633 = vmatprep.subr.bf16.mxu0 %v1265
        %1634 = vmatpush1.bf16.msra.mxu0 %v1264
        %1635 = vmatprep.subr.bf16.mxu0 %v1256
        %1636 = vmatpush1.bf16.msra.mxu0 %v1255
        %1637 = vmatprep.subr.bf16.mxu0 %v1247
        %1638 = vmatpush1.bf16.msra.mxu0 %v1246
        %1639 = vmatprep.subr.bf16.mxu0 %v1238
        %1640 = vmatpush1.bf16.msra.mxu0 %v1237
        %1641 = vmatprep.subr.bf16.mxu0 %v1229
        %1642 = vmatpush1.bf16.msra.mxu0 %v1228
        %1643 = vmatprep.subr.bf16.mxu0 %v1220
        %1644 = vmatpush1.bf16.msra.mxu0 %v1219
        %1645 = vmatprep.subr.bf16.mxu0 %v1211
        %1646 = vmatpush1.bf16.msra.mxu0 %v1210
        %1647 = vmatprep.subr.bf16.mxu0 %v1202
        %1648 = vmatpush1.bf16.msra.mxu0 %v1201
        %1649 = vmatprep.subr.bf16.mxu0 %v1337
        %1650 = vmatpush2.bf16.msra.mxu0 %v1336
        %1651 = vmatprep.subr.bf16.mxu0 %v1328
        %1652 = vmatpush2.bf16.msra.mxu0 %v1327
        %1653 = vmatprep.subr.bf16.mxu0 %v1319
        %1654 = vmatpush2.bf16.msra.mxu0 %v1318
        %1655 = vmatprep.subr.bf16.mxu0 %v1310
        %1656 = vmatpush2.bf16.msra.mxu0 %v1309
        %1657 = vmatprep.subr.bf16.mxu0 %v1301
        %1658 = vmatpush2.bf16.msra.mxu0 %v1300
        %1659 = vmatprep.subr.bf16.mxu0 %v1292
        %1660 = vmatpush2.bf16.msra.mxu0 %v1291
        %1661 = vmatprep.subr.bf16.mxu0 %v1283
        %1662 = vmatpush2.bf16.msra.mxu0 %v1282
        %1663 = vmatprep.subr.bf16.mxu0 %v1274
        %1664 = vmatpush2.bf16.msra.mxu0 %v1273
        %1665 = vmatprep.mubr.bf16.mxu0 %v518
        %1666 = vmatmul.mubr.bf16.gmra.mxu0 %v517
        %v1667 = vpop.f32.mrf.mxu0
        %v1668 = vadd.f32 0.0, %v1667
        %v1669 = vpop.f32.mrf.mxu0
        %v1670 = vadd.f32 0.0, %v1669
        %v1671 = vpop.f32.mrf.mxu0
        %v1672 = vadd.f32 0.0, %v1671
        %v1673 = vpop.f32.mrf.mxu0
        %v1674 = vadd.f32 0.0, %v1673
        %1675 = vmatprep.mubr.bf16.mxu0 %v521
        %1676 = vmatmul.mubr.bf16.gmra.mxu0 %v520
        %v1677 = vpop.f32.mrf.mxu0
        %v1678 = vadd.f32 0.0, %v1677
        %v1679 = vpop.f32.mrf.mxu0
        %v1680 = vadd.f32 0.0, %v1679
        %v1681 = vpop.f32.mrf.mxu0
        %v1682 = vadd.f32 0.0, %v1681
        %v1683 = vpop.f32.mrf.mxu0
        %v1684 = vadd.f32 0.0, %v1683
        %1685 = vdwg.mxu0
        %1686 = vmatprep.subr.bf16.mxu0 %v1409
        %1687 = vmatpush1.bf16.msra.mxu0 %v1408
        %1688 = vmatprep.subr.bf16.mxu0 %v1400
        %1689 = vmatpush1.bf16.msra.mxu0 %v1399
        %1690 = vmatprep.subr.bf16.mxu0 %v1391
        %1691 = vmatpush1.bf16.msra.mxu0 %v1390
        %1692 = vmatprep.subr.bf16.mxu0 %v1382
        %1693 = vmatpush1.bf16.msra.mxu0 %v1381
        %1694 = vmatprep.subr.bf16.mxu0 %v1373
        %1695 = vmatpush1.bf16.msra.mxu0 %v1372
        %1696 = vmatprep.subr.bf16.mxu0 %v1364
        %1697 = vmatpush1.bf16.msra.mxu0 %v1363
        %1698 = vmatprep.subr.bf16.mxu0 %v1355
        %1699 = vmatpush1.bf16.msra.mxu0 %v1354
        %1700 = vmatprep.subr.bf16.mxu0 %v1346
        %1701 = vmatpush1.bf16.msra.mxu0 %v1345
        %1702 = vmatprep.subr.bf16.mxu0 0
        %1703 = vmatpush2.bf16.msra.mxu0 0
        %1704 = vmatprep.subr.bf16.mxu0 0
        %1705 = vmatpush2.bf16.msra.mxu0 0
        %1706 = vmatprep.subr.bf16.mxu0 0
        %1707 = vmatpush2.bf16.msra.mxu0 0
        %1708 = vmatprep.subr.bf16.mxu0 0
        %1709 = vmatpush2.bf16.msra.mxu0 0
        %1710 = vmatprep.subr.bf16.mxu0 0
        %1711 = vmatpush2.bf16.msra.mxu0 0
        %1712 = vmatprep.subr.bf16.mxu0 0
        %1713 = vmatpush2.bf16.msra.mxu0 0
        %1714 = vmatprep.subr.bf16.mxu0 0
        %1715 = vmatpush2.bf16.msra.mxu0 0
        %1716 = vmatprep.subr.bf16.mxu0 0
        %1717 = vmatpush2.bf16.msra.mxu0 0
        %1718 = vmatprep.mubr.bf16.mxu0 0
        %1719 = vmatmul.mubr.bf16.gmra.mxu0 %v519
        %v1720 = vpop.f32.mrf.mxu0
        %v1721 = vadd.f32 %v1668, %v1720
        %v1722 = vpop.f32.mrf.mxu0
        %v1723 = vadd.f32 %v1670, %v1722
        %v1724 = vpop.f32.mrf.mxu0
        %v1725 = vadd.f32 %v1672, %v1724
        %v1726 = vpop.f32.mrf.mxu0
        %v1727 = vadd.f32 %v1674, %v1726
        %1728 = vmatprep.mubr.bf16.mxu0 0
        %1729 = vmatmul.mubr.bf16.gmra.mxu0 %v522
        %v1730 = vpop.f32.mrf.mxu0
        %v1731 = vadd.f32 %v1678, %v1730
        %v1732 = vpop.f32.mrf.mxu0
        %v1733 = vadd.f32 %v1680, %v1732
        %v1734 = vpop.f32.mrf.mxu0
        %v1735 = vadd.f32 %v1682, %v1734
        %v1736 = vpop.f32.mrf.mxu0
        %v1737 = vadd.f32 %v1684, %v1736
        %1738 = vdwg.mxu0
        %1739 = vmatprep.subr.bf16.mxu0 %v1267
        %1740 = vmatpush1.bf16.msra.mxu0 %v1266
        %1741 = vmatprep.subr.bf16.mxu0 %v1258
        %1742 = vmatpush1.bf16.msra.mxu0 %v1257
        %1743 = vmatprep.subr.bf16.mxu0 %v1249
        %1744 = vmatpush1.bf16.msra.mxu0 %v1248
        %1745 = vmatprep.subr.bf16.mxu0 %v1240
        %1746 = vmatpush1.bf16.msra.mxu0 %v1239
        %1747 = vmatprep.subr.bf16.mxu0 %v1231
        %1748 = vmatpush1.bf16.msra.mxu0 %v1230
        %1749 = vmatprep.subr.bf16.mxu0 %v1222
        %1750 = vmatpush1.bf16.msra.mxu0 %v1221
        %1751 = vmatprep.subr.bf16.mxu0 %v1213
        %1752 = vmatpush1.bf16.msra.mxu0 %v1212
        %1753 = vmatprep.subr.bf16.mxu0 %v1204
        %1754 = vmatpush1.bf16.msra.mxu0 %v1203
        %1755 = vmatprep.subr.bf16.mxu0 %v1339
        %1756 = vmatpush2.bf16.msra.mxu0 %v1338
        %1757 = vmatprep.subr.bf16.mxu0 %v1330
        %1758 = vmatpush2.bf16.msra.mxu0 %v1329
        %1759 = vmatprep.subr.bf16.mxu0 %v1321
        %1760 = vmatpush2.bf16.msra.mxu0 %v1320
        %1761 = vmatprep.subr.bf16.mxu0 %v1312
        %1762 = vmatpush2.bf16.msra.mxu0 %v1311
        %1763 = vmatprep.subr.bf16.mxu0 %v1303
        %1764 = vmatpush2.bf16.msra.mxu0 %v1302
        %1765 = vmatprep.subr.bf16.mxu0 %v1294
        %1766 = vmatpush2.bf16.msra.mxu0 %v1293
        %1767 = vmatprep.subr.bf16.mxu0 %v1285
        %1768 = vmatpush2.bf16.msra.mxu0 %v1284
        %1769 = vmatprep.subr.bf16.mxu0 %v1276
        %1770 = vmatpush2.bf16.msra.mxu0 %v1275
        %1771 = vmatprep.mubr.bf16.mxu0 %v518
        %1772 = vmatmul.mubr.bf16.gmra.mxu0 %v517
        %v1773 = vpop.f32.mrf.mxu0
        %v1774 = vadd.f32 0.0, %v1773
        %v1775 = vpop.f32.mrf.mxu0
        %v1776 = vadd.f32 0.0, %v1775
        %v1777 = vpop.f32.mrf.mxu0
        %v1778 = vadd.f32 0.0, %v1777
        %v1779 = vpop.f32.mrf.mxu0
        %v1780 = vadd.f32 0.0, %v1779
        %1781 = vmatprep.mubr.bf16.mxu0 %v521
        %1782 = vmatmul.mubr.bf16.gmra.mxu0 %v520
        %v1783 = vpop.f32.mrf.mxu0
        %v1784 = vadd.f32 0.0, %v1783
        %v1785 = vpop.f32.mrf.mxu0
        %v1786 = vadd.f32 0.0, %v1785
        %v1787 = vpop.f32.mrf.mxu0
        %v1788 = vadd.f32 0.0, %v1787
        %v1789 = vpop.f32.mrf.mxu0
        %v1790 = vadd.f32 0.0, %v1789
        %1791 = vdwg.mxu0
        %1792 = vmatprep.subr.bf16.mxu0 %v1411
        %1793 = vmatpush1.bf16.msra.mxu0 %v1410
        %1794 = vmatprep.subr.bf16.mxu0 %v1402
        %1795 = vmatpush1.bf16.msra.mxu0 %v1401
        %1796 = vmatprep.subr.bf16.mxu0 %v1393
        %1797 = vmatpush1.bf16.msra.mxu0 %v1392
        %1798 = vmatprep.subr.bf16.mxu0 %v1384
        %1799 = vmatpush1.bf16.msra.mxu0 %v1383
        %1800 = vmatprep.subr.bf16.mxu0 %v1375
        %1801 = vmatpush1.bf16.msra.mxu0 %v1374
        %1802 = vmatprep.subr.bf16.mxu0 %v1366
        %1803 = vmatpush1.bf16.msra.mxu0 %v1365
        %1804 = vmatprep.subr.bf16.mxu0 %v1357
        %1805 = vmatpush1.bf16.msra.mxu0 %v1356
        %1806 = vmatprep.subr.bf16.mxu0 %v1348
        %1807 = vmatpush1.bf16.msra.mxu0 %v1347
        %1808 = vmatprep.subr.bf16.mxu0 0
        %1809 = vmatpush2.bf16.msra.mxu0 0
        %1810 = vmatprep.subr.bf16.mxu0 0
        %1811 = vmatpush2.bf16.msra.mxu0 0
        %1812 = vmatprep.subr.bf16.mxu0 0
        %1813 = vmatpush2.bf16.msra.mxu0 0
        %1814 = vmatprep.subr.bf16.mxu0 0
        %1815 = vmatpush2.bf16.msra.mxu0 0
        %1816 = vmatprep.subr.bf16.mxu0 0
        %1817 = vmatpush2.bf16.msra.mxu0 0
        %1818 = vmatprep.subr.bf16.mxu0 0
        %1819 = vmatpush2.bf16.msra.mxu0 0
        %1820 = vmatprep.subr.bf16.mxu0 0
        %1821 = vmatpush2.bf16.msra.mxu0 0
        %1822 = vmatprep.subr.bf16.mxu0 0
        %1823 = vmatpush2.bf16.msra.mxu0 0
        %1824 = vmatprep.mubr.bf16.mxu0 0
        %1825 = vmatmul.mubr.bf16.gmra.mxu0 %v519
        %v1826 = vpop.f32.mrf.mxu0
        %v1827 = vadd.f32 %v1774, %v1826
        %v1828 = vpop.f32.mrf.mxu0
        %v1829 = vadd.f32 %v1776, %v1828
        %v1830 = vpop.f32.mrf.mxu0
        %v1831 = vadd.f32 %v1778, %v1830
        %v1832 = vpop.f32.mrf.mxu0
        %v1833 = vadd.f32 %v1780, %v1832
        %1834 = vmatprep.mubr.bf16.mxu0 0
        %1835 = vmatmul.mubr.bf16.gmra.mxu0 %v522
        %v1836 = vpop.f32.mrf.mxu0
        %v1837 = vadd.f32 %v1784, %v1836
        %v1838 = vpop.f32.mrf.mxu0
        %v1839 = vadd.f32 %v1786, %v1838
        %v1840 = vpop.f32.mrf.mxu0
        %v1841 = vadd.f32 %v1788, %v1840
        %v1842 = vpop.f32.mrf.mxu0
        %v1843 = vadd.f32 %v1790, %v1842
        %1844 = vdwg.mxu0
        %1845 = vmatprep.subr.bf16.mxu0 %v1269
        %1846 = vmatpush1.bf16.msra.mxu0 %v1268
        %1847 = vmatprep.subr.bf16.mxu0 %v1260
        %1848 = vmatpush1.bf16.msra.mxu0 %v1259
        %1849 = vmatprep.subr.bf16.mxu0 %v1251
        %1850 = vmatpush1.bf16.msra.mxu0 %v1250
        %1851 = vmatprep.subr.bf16.mxu0 %v1242
        %1852 = vmatpush1.bf16.msra.mxu0 %v1241
        %1853 = vmatprep.subr.bf16.mxu0 %v1233
        %1854 = vmatpush1.bf16.msra.mxu0 %v1232
        %1855 = vmatprep.subr.bf16.mxu0 %v1224
        %1856 = vmatpush1.bf16.msra.mxu0 %v1223
        %1857 = vmatprep.subr.bf16.mxu0 %v1215
        %1858 = vmatpush1.bf16.msra.mxu0 %v1214
        %1859 = vmatprep.subr.bf16.mxu0 %v1206
        %1860 = vmatpush1.bf16.msra.mxu0 %v1205
        %1861 = vmatprep.subr.bf16.mxu0 %v1341
        %1862 = vmatpush2.bf16.msra.mxu0 %v1340
        %1863 = vmatprep.subr.bf16.mxu0 %v1332
        %1864 = vmatpush2.bf16.msra.mxu0 %v1331
        %1865 = vmatprep.subr.bf16.mxu0 %v1323
        %1866 = vmatpush2.bf16.msra.mxu0 %v1322
        %1867 = vmatprep.subr.bf16.mxu0 %v1314
        %1868 = vmatpush2.bf16.msra.mxu0 %v1313
        %1869 = vmatprep.subr.bf16.mxu0 %v1305
        %1870 = vmatpush2.bf16.msra.mxu0 %v1304
        %1871 = vmatprep.subr.bf16.mxu0 %v1296
        %1872 = vmatpush2.bf16.msra.mxu0 %v1295
        %1873 = vmatprep.subr.bf16.mxu0 %v1287
        %1874 = vmatpush2.bf16.msra.mxu0 %v1286
        %1875 = vmatprep.subr.bf16.mxu0 %v1278
        %1876 = vmatpush2.bf16.msra.mxu0 %v1277
        %1877 = vmatprep.mubr.bf16.mxu0 %v518
        %1878 = vmatmul.mubr.bf16.gmra.mxu0 %v517
        %v1879 = vpop.f32.mrf.mxu0
        %v1880 = vadd.f32 0.0, %v1879
        %v1881 = vpop.f32.mrf.mxu0
        %v1882 = vadd.f32 0.0, %v1881
        %v1883 = vpop.f32.mrf.mxu0
        %v1884 = vadd.f32 0.0, %v1883
        %v1885 = vpop.f32.mrf.mxu0
        %v1886 = vadd.f32 0.0, %v1885
        %1887 = vmatprep.mubr.bf16.mxu0 %v521
        %1888 = vmatmul.mubr.bf16.gmra.mxu0 %v520
        %v1889 = vpop.f32.mrf.mxu0
        %v1890 = vadd.f32 0.0, %v1889
        %v1891 = vpop.f32.mrf.mxu0
        %v1892 = vadd.f32 0.0, %v1891
        %v1893 = vpop.f32.mrf.mxu0
        %v1894 = vadd.f32 0.0, %v1893
        %v1895 = vpop.f32.mrf.mxu0
        %v1896 = vadd.f32 0.0, %v1895
        %1897 = vdwg.mxu0
        %1898 = vmatprep.subr.bf16.mxu0 %v1413
        %1899 = vmatpush1.bf16.msra.mxu0 %v1412
        %1900 = vmatprep.subr.bf16.mxu0 %v1404
        %1901 = vmatpush1.bf16.msra.mxu0 %v1403
        %1902 = vmatprep.subr.bf16.mxu0 %v1395
        %1903 = vmatpush1.bf16.msra.mxu0 %v1394
        %1904 = vmatprep.subr.bf16.mxu0 %v1386
        %1905 = vmatpush1.bf16.msra.mxu0 %v1385
        %1906 = vmatprep.subr.bf16.mxu0 %v1377
        %1907 = vmatpush1.bf16.msra.mxu0 %v1376
        %1908 = vmatprep.subr.bf16.mxu0 %v1368
        %1909 = vmatpush1.bf16.msra.mxu0 %v1367
        %1910 = vmatprep.subr.bf16.mxu0 %v1359
        %1911 = vmatpush1.bf16.msra.mxu0 %v1358
        %1912 = vmatprep.subr.bf16.mxu0 %v1350
        %1913 = vmatpush1.bf16.msra.mxu0 %v1349
        %1914 = vmatprep.subr.bf16.mxu0 0
        %1915 = vmatpush2.bf16.msra.mxu0 0
        %1916 = vmatprep.subr.bf16.mxu0 0
        %1917 = vmatpush2.bf16.msra.mxu0 0
        %1918 = vmatprep.subr.bf16.mxu0 0
        %1919 = vmatpush2.bf16.msra.mxu0 0
        %1920 = vmatprep.subr.bf16.mxu0 0
        %1921 = vmatpush2.bf16.msra.mxu0 0
        %1922 = vmatprep.subr.bf16.mxu0 0
        %1923 = vmatpush2.bf16.msra.mxu0 0
        %1924 = vmatprep.subr.bf16.mxu0 0
        %1925 = vmatpush2.bf16.msra.mxu0 0
        %1926 = vmatprep.subr.bf16.mxu0 0
        %1927 = vmatpush2.bf16.msra.mxu0 0
        %1928 = vmatprep.subr.bf16.mxu0 0
        %1929 = vmatpush2.bf16.msra.mxu0 0
        %1930 = vmatprep.mubr.bf16.mxu0 0
        %1931 = vmatmul.mubr.bf16.gmra.mxu0 %v519
        %v1932 = vpop.f32.mrf.mxu0
        %v1933 = vadd.f32 %v1880, %v1932
        %v1934 = vpop.f32.mrf.mxu0
        %v1935 = vadd.f32 %v1882, %v1934
        %v1936 = vpop.f32.mrf.mxu0
        %v1937 = vadd.f32 %v1884, %v1936
        %v1938 = vpop.f32.mrf.mxu0
        %v1939 = vadd.f32 %v1886, %v1938
        %1940 = vmatprep.mubr.bf16.mxu0 0
        %1941 = vmatmul.mubr.bf16.gmra.mxu0 %v522
        %v1942 = vpop.f32.mrf.mxu0
        %v1943 = vadd.f32 %v1890, %v1942
        %v1944 = vpop.f32.mrf.mxu0
        %v1945 = vadd.f32 %v1892, %v1944
        %v1946 = vpop.f32.mrf.mxu0
        %v1947 = vadd.f32 %v1894, %v1946
        %v1948 = vpop.f32.mrf.mxu0
        %v1949 = vadd.f32 %v1896, %v1948
        %1950 = vdwg.mxu0
        %1951 = vmatprep.subr.bf16.mxu0 %v1271
        %1952 = vmatpush1.bf16.msra.mxu0 %v1270
        %1953 = vmatprep.subr.bf16.mxu0 %v1262
        %1954 = vmatpush1.bf16.msra.mxu0 %v1261
        %1955 = vmatprep.subr.bf16.mxu0 %v1253
        %1956 = vmatpush1.bf16.msra.mxu0 %v1252
        %1957 = vmatprep.subr.bf16.mxu0 %v1244
        %1958 = vmatpush1.bf16.msra.mxu0 %v1243
        %1959 = vmatprep.subr.bf16.mxu0 %v1235
        %1960 = vmatpush1.bf16.msra.mxu0 %v1234
        %1961 = vmatprep.subr.bf16.mxu0 %v1226
        %1962 = vmatpush1.bf16.msra.mxu0 %v1225
        %1963 = vmatprep.subr.bf16.mxu0 %v1217
        %1964 = vmatpush1.bf16.msra.mxu0 %v1216
        %1965 = vmatprep.subr.bf16.mxu0 %v1208
        %1966 = vmatpush1.bf16.msra.mxu0 %v1207
        %1967 = vmatprep.subr.bf16.mxu0 %v1343
        %1968 = vmatpush2.bf16.msra.mxu0 %v1342
        %1969 = vmatprep.subr.bf16.mxu0 %v1334
        %1970 = vmatpush2.bf16.msra.mxu0 %v1333
        %1971 = vmatprep.subr.bf16.mxu0 %v1325
        %1972 = vmatpush2.bf16.msra.mxu0 %v1324
        %1973 = vmatprep.subr.bf16.mxu0 %v1316
        %1974 = vmatpush2.bf16.msra.mxu0 %v1315
        %1975 = vmatprep.subr.bf16.mxu0 %v1307
        %1976 = vmatpush2.bf16.msra.mxu0 %v1306
        %1977 = vmatprep.subr.bf16.mxu0 %v1298
        %1978 = vmatpush2.bf16.msra.mxu0 %v1297
        %1979 = vmatprep.subr.bf16.mxu0 %v1289
        %1980 = vmatpush2.bf16.msra.mxu0 %v1288
        %1981 = vmatprep.subr.bf16.mxu0 %v1280
        %1982 = vmatpush2.bf16.msra.mxu0 %v1279
        %1983 = vmatprep.mubr.bf16.mxu0 %v518
        %1984 = vmatmul.mubr.bf16.gmra.mxu0 %v517
        %v1985 = vpop.f32.mrf.mxu0
        %v1986 = vadd.f32 0.0, %v1985
        %v1987 = vpop.f32.mrf.mxu0
        %v1988 = vadd.f32 0.0, %v1987
        %v1989 = vpop.f32.mrf.mxu0
        %v1990 = vadd.f32 0.0, %v1989
        %v1991 = vpop.f32.mrf.mxu0
        %v1992 = vadd.f32 0.0, %v1991
        %1993 = vmatprep.mubr.bf16.mxu0 %v521
        %1994 = vmatmul.mubr.bf16.gmra.mxu0 %v520
        %v1995 = vpop.f32.mrf.mxu0
        %v1996 = vadd.f32 0.0, %v1995
        %v1997 = vpop.f32.mrf.mxu0
        %v1998 = vadd.f32 0.0, %v1997
        %v1999 = vpop.f32.mrf.mxu0
        %v2000 = vadd.f32 0.0, %v1999
        %v2001 = vpop.f32.mrf.mxu0
        %v2002 = vadd.f32 0.0, %v2001
        %2003 = vdwg.mxu0
        %2004 = vmatprep.subr.bf16.mxu0 %v1415
        %2005 = vmatpush1.bf16.msra.mxu0 %v1414
        %2006 = vmatprep.subr.bf16.mxu0 %v1406
        %2007 = vmatpush1.bf16.msra.mxu0 %v1405
        %2008 = vmatprep.subr.bf16.mxu0 %v1397
        %2009 = vmatpush1.bf16.msra.mxu0 %v1396
        %2010 = vmatprep.subr.bf16.mxu0 %v1388
        %2011 = vmatpush1.bf16.msra.mxu0 %v1387
        %2012 = vmatprep.subr.bf16.mxu0 %v1379
        %2013 = vmatpush1.bf16.msra.mxu0 %v1378
        %2014 = vmatprep.subr.bf16.mxu0 %v1370
        %2015 = vmatpush1.bf16.msra.mxu0 %v1369
        %2016 = vmatprep.subr.bf16.mxu0 %v1361
        %2017 = vmatpush1.bf16.msra.mxu0 %v1360
        %2018 = vmatprep.subr.bf16.mxu0 %v1352
        %2019 = vmatpush1.bf16.msra.mxu0 %v1351
        %2020 = vmatprep.subr.bf16.mxu0 0
        %2021 = vmatpush2.bf16.msra.mxu0 0
        %2022 = vmatprep.subr.bf16.mxu0 0
        %2023 = vmatpush2.bf16.msra.mxu0 0
        %2024 = vmatprep.subr.bf16.mxu0 0
        %2025 = vmatpush2.bf16.msra.mxu0 0
        %2026 = vmatprep.subr.bf16.mxu0 0
        %2027 = vmatpush2.bf16.msra.mxu0 0
        %2028 = vmatprep.subr.bf16.mxu0 0
        %2029 = vmatpush2.bf16.msra.mxu0 0
        %2030 = vmatprep.subr.bf16.mxu0 0
        %2031 = vmatpush2.bf16.msra.mxu0 0
        %2032 = vmatprep.subr.bf16.mxu0 0
        %2033 = vmatpush2.bf16.msra.mxu0 0
        %2034 = vmatprep.subr.bf16.mxu0 0
        %2035 = vmatpush2.bf16.msra.mxu0 0
        %2036 = vmatprep.mubr.bf16.mxu0 0
        %2037 = vmatmul.mubr.bf16.gmra.mxu0 %v519
        %v2038 = vpop.f32.mrf.mxu0
        %v2039 = vadd.f32 %v1986, %v2038
        %v2040 = vpop.f32.mrf.mxu0
        %v2041 = vadd.f32 %v1988, %v2040
        %v2042 = vpop.f32.mrf.mxu0
        %v2043 = vadd.f32 %v1990, %v2042
        %v2044 = vpop.f32.mrf.mxu0
        %v2045 = vadd.f32 %v1992, %v2044
        %2046 = vmatprep.mubr.bf16.mxu0 0
        %2047 = vmatmul.mubr.bf16.gmra.mxu0 %v522
        %v2048 = vpop.f32.mrf.mxu0
        %v2049 = vadd.f32 %v1996, %v2048
        %v2050 = vpop.f32.mrf.mxu0
        %v2051 = vadd.f32 %v1998, %v2050
        %v2052 = vpop.f32.mrf.mxu0
        %v2053 = vadd.f32 %v2000, %v2052
        %v2054 = vpop.f32.mrf.mxu0
        %v2055 = vadd.f32 %v2002, %v2054
        %2056 = vdwg.mxu0
        %2057 = vmatprep.subr.bf16.mxu0 0
        %2058 = vmatpush1.bf16.msra.mxu0 %v1272
        %2059 = vmatprep.subr.bf16.mxu0 0
        %2060 = vmatpush1.bf16.msra.mxu0 %v1263
        %2061 = vmatprep.subr.bf16.mxu0 0
        %2062 = vmatpush1.bf16.msra.mxu0 %v1254
        %2063 = vmatprep.subr.bf16.mxu0 0
        %2064 = vmatpush1.bf16.msra.mxu0 %v1245
        %2065 = vmatprep.subr.bf16.mxu0 0
        %2066 = vmatpush1.bf16.msra.mxu0 %v1236
        %2067 = vmatprep.subr.bf16.mxu0 0
        %2068 = vmatpush1.bf16.msra.mxu0 %v1227
        %2069 = vmatprep.subr.bf16.mxu0 0
        %2070 = vmatpush1.bf16.msra.mxu0 %v1218
        %2071 = vmatprep.subr.bf16.mxu0 0
        %2072 = vmatpush1.bf16.msra.mxu0 %v1209
        %2073 = vmatprep.subr.bf16.mxu0 0
        %2074 = vmatpush2.bf16.msra.mxu0 %v1344
        %2075 = vmatprep.subr.bf16.mxu0 0
        %2076 = vmatpush2.bf16.msra.mxu0 %v1335
        %2077 = vmatprep.subr.bf16.mxu0 0
        %2078 = vmatpush2.bf16.msra.mxu0 %v1326
        %2079 = vmatprep.subr.bf16.mxu0 0
        %2080 = vmatpush2.bf16.msra.mxu0 %v1317
        %2081 = vmatprep.subr.bf16.mxu0 0
        %2082 = vmatpush2.bf16.msra.mxu0 %v1308
        %2083 = vmatprep.subr.bf16.mxu0 0
        %2084 = vmatpush2.bf16.msra.mxu0 %v1299
        %2085 = vmatprep.subr.bf16.mxu0 0
        %2086 = vmatpush2.bf16.msra.mxu0 %v1290
        %2087 = vmatprep.subr.bf16.mxu0 0
        %2088 = vmatpush2.bf16.msra.mxu0 %v1281
        %2089 = vmatprep.mubr.bf16.mxu0 %v518
        %2090 = vmatmul.mubr.bf16.gmra.mxu0 %v517
        %v2091 = vpop.f32.mrf.mxu0
        %v2092 = vadd.f32 0.0, %v2091
        %v2093 = vpop.f32.mrf.mxu0
        %v2094 = vpop.f32.mrf.mxu0
        %v2095 = vadd.f32 0.0, %v2094
        %v2096 = vpop.f32.mrf.mxu0
        %2097 = vmatprep.mubr.bf16.mxu0 %v521
        %2098 = vmatmul.mubr.bf16.gmra.mxu0 %v520
        %v2099 = vpop.f32.mrf.mxu0
        %v2100 = vadd.f32 0.0, %v2099
        %v2101 = vpop.f32.mrf.mxu0
        %v2102 = vpop.f32.mrf.mxu0
        %v2103 = vadd.f32 0.0, %v2102
        %v2104 = vpop.f32.mrf.mxu0
        %2105 = vdwg.mxu0
        %2106 = vmatprep.subr.bf16.mxu0 0
        %2107 = vmatpush1.bf16.msra.mxu0 %v1416
        %2108 = vmatprep.subr.bf16.mxu0 0
        %2109 = vmatpush1.bf16.msra.mxu0 %v1407
        %2110 = vmatprep.subr.bf16.mxu0 0
        %2111 = vmatpush1.bf16.msra.mxu0 %v1398
        %2112 = vmatprep.subr.bf16.mxu0 0
        %2113 = vmatpush1.bf16.msra.mxu0 %v1389
        %2114 = vmatprep.subr.bf16.mxu0 0
        %2115 = vmatpush1.bf16.msra.mxu0 %v1380
        %2116 = vmatprep.subr.bf16.mxu0 0
        %2117 = vmatpush1.bf16.msra.mxu0 %v1371
        %2118 = vmatprep.subr.bf16.mxu0 0
        %2119 = vmatpush1.bf16.msra.mxu0 %v1362
        %2120 = vmatprep.subr.bf16.mxu0 0
        %2121 = vmatpush1.bf16.msra.mxu0 %v1353
        %2122 = vmatprep.subr.bf16.mxu0 0
        %2123 = vmatpush2.bf16.msra.mxu0 0
        %2124 = vmatprep.subr.bf16.mxu0 0
        %2125 = vmatpush2.bf16.msra.mxu0 0
        %2126 = vmatprep.subr.bf16.mxu0 0
        %2127 = vmatpush2.bf16.msra.mxu0 0
        %2128 = vmatprep.subr.bf16.mxu0 0
        %2129 = vmatpush2.bf16.msra.mxu0 0
        %2130 = vmatprep.subr.bf16.mxu0 0
        %2131 = vmatpush2.bf16.msra.mxu0 0
        %2132 = vmatprep.subr.bf16.mxu0 0
        %2133 = vmatpush2.bf16.msra.mxu0 0
        %2134 = vmatprep.subr.bf16.mxu0 0
        %2135 = vmatpush2.bf16.msra.mxu0 0
        %2136 = vmatprep.subr.bf16.mxu0 0
        %2137 = vmatpush2.bf16.msra.mxu0 0
        %2138 = vmatprep.mubr.bf16.mxu0 0
        %2139 = vmatmul.mubr.bf16.gmra.mxu0 %v519
        %v2140 = vpop.f32.mrf.mxu0
        %v2141 = vadd.f32 %v2092, %v2140
        %v2142 = vpop.f32.mrf.mxu0
        %v2143 = vpop.f32.mrf.mxu0
        %v2144 = vadd.f32 %v2095, %v2143
        %v2145 = vpop.f32.mrf.mxu0
        %2146 = vmatprep.mubr.bf16.mxu0 0
        %2147 = vmatmul.mubr.bf16.gmra.mxu0 %v522
        %v2148 = vpop.f32.mrf.mxu0
        %v2149 = vadd.f32 %v2100, %v2148
        %v2150 = vpop.f32.mrf.mxu0
        %v2151 = vpop.f32.mrf.mxu0
        %v2152 = vadd.f32 %v2103, %v2151
        %v2153 = vpop.f32.mrf.mxu0
        %2154 = vdwg.mxu0
        %v2155 = vlaneseq
        %v2156 = vshrl.u32 %v2155, 7
        %v2157 = vadd.s32 %v2156, 8
        %v2158 = vlaneseq
        %v2159 = vand.u32 %v2158, 127
        %vm2160 = vcmp.le.s32.totalorder %v2159, %v2156
        %vm2161 = vcmp.le.s32.totalorder %v2159, %v2157
        %v2162 = vld [vmem:[%s3] sm:$0x7]
        %v2163 = vunpack.c.l.bf16 %v2162
        %v2165 = vlaneseq
        %v2166 = vshrl.u32 %v2165, 7
        %v2167 = vsub.s32 0, %v2166
        %v2168 = vrot.slane %v2163, %v2167
        %v2169 = vlaneseq
        %v2170 = vshrl.u32 %v2169, 7
        %v2171 = vsub.s32 2, %v2170
        %v2172 = vrot.slane %v2163, %v2171
        %v2173 = vlaneseq
        %v2174 = vshrl.u32 %v2173, 7
        %v2175 = vsub.s32 4, %v2174
        %v2176 = vrot.slane %v2163, %v2175
        %v2180 = vlaneseq
        %v2181 = vshrl.u32 %v2180, 7
        %v2182 = vsub.s32 0, %v2181
        %v2183 = vrot.slane %v2168, %v2182
        %v2184 = vlaneseq
        %v2185 = vshrl.u32 %v2184, 7
        %v2186 = vsub.s32 0, %v2185
        %v2187 = vrot.slane %v2172, %v2186
        %v2188 = vlaneseq
        %v2189 = vshrl.u32 %v2188, 7
        %v2190 = vsub.s32 0, %v2189
        %v2191 = vrot.slane %v2176, %v2190
        %v2192 = vadd.f32 %v2183, 0.0
        %v2193 = vadd.f32 %v2187, 0.0
        %v2194 = vadd.f32 %v2191, 0.0
        %v2195 = vpack.c.bf16 %v1725, %v1721
        %v2196 = vpack.c.bf16 %v1735, %v1731
        %v2197 = vpack.c.bf16 %v1833, %v1829
        %v2198 = vpack.c.bf16 %v1843, %v1839
        %v2199 = vpack.c.bf16 %v2043, %v2039
        %v2200 = vpack.c.bf16 %v2053, %v2049
        %2201 = vmatprep.subr.bf16.mxu0 0
        %2202 = vmatpush1.bf16.xpose.msra.mxu0 0
        %2203 = vmatprep.subr.bf16.mxu0 0
        %2204 = vmatpush1.bf16.xpose.msra.mxu0 0
        %2205 = vmatprep.subr.bf16.mxu0 0
        %2206 = vmatpush1.bf16.xpose.msra.mxu0 0
        %2207 = vmatprep.subr.bf16.mxu0 0
        %2208 = vmatpush1.bf16.xpose.msra.mxu0 0
        %2209 = vmatprep.subr.bf16.mxu0 0
        %2210 = vmatpush1.bf16.xpose.msra.mxu0 0
        %2211 = vmatprep.subr.bf16.mxu0 0
        %2212 = vmatpush1.bf16.xpose.msra.mxu0 0
        %2213 = vmatprep.subr.bf16.mxu0 0
        %2214 = vmatpush1.bf16.xpose.msra.mxu0 0
        %2215 = vmatprep.subr.bf16.mxu0 0
        %2216 = vmatpush1.bf16.xpose.msra.mxu0 %v2197
        %2217 = vmatprep.subr.bf16.mxu0 0
        %2218 = vmatpush2.bf16.xpose.msra.mxu0 0
        %2219 = vmatprep.subr.bf16.mxu0 0
        %2220 = vmatpush2.bf16.xpose.msra.mxu0 0
        %2221 = vmatprep.subr.bf16.mxu0 0
        %2222 = vmatpush2.bf16.xpose.msra.mxu0 0
        %2223 = vmatprep.subr.bf16.mxu0 0
        %2224 = vmatpush2.bf16.xpose.msra.mxu0 0
        %2225 = vmatprep.subr.bf16.mxu0 0
        %2226 = vmatpush2.bf16.xpose.msra.mxu0 0
        %2227 = vmatprep.subr.bf16.mxu0 0
        %2228 = vmatpush2.bf16.xpose.msra.mxu0 0
        %2229 = vmatprep.subr.bf16.mxu0 0
        %2230 = vmatpush2.bf16.xpose.msra.mxu0 0
        %2231 = vmatprep.subr.bf16.mxu0 0
        %2232 = vmatpush2.bf16.xpose.msra.mxu0 0
        %2233 = vmatprep.mubr.bf16.mxu0 0
        %2234 = vmatmul.mubr.bf16.gmra.mxu0 %v2195
        %v2235 = vpop.f32.mrf.mxu0
        %v2236 = vadd.f32 0.0, %v2235
        %v2237 = vpop.f32.mrf.mxu0
        %v2238 = vpop.f32.mrf.mxu0
        %v2239 = vadd.f32 0.0, %v2238
        %v2240 = vpop.f32.mrf.mxu0
        %2241 = vdwg.mxu0
        %2242 = vmatprep.subr.bf16.mxu0 0
        %2243 = vmatpush1.bf16.xpose.msra.mxu0 0
        %2244 = vmatprep.subr.bf16.mxu0 0
        %2245 = vmatpush1.bf16.xpose.msra.mxu0 0
        %2246 = vmatprep.subr.bf16.mxu0 0
        %2247 = vmatpush1.bf16.xpose.msra.mxu0 0
        %2248 = vmatprep.subr.bf16.mxu0 0
        %2249 = vmatpush1.bf16.xpose.msra.mxu0 0
        %2250 = vmatprep.subr.bf16.mxu0 0
        %2251 = vmatpush1.bf16.xpose.msra.mxu0 0
        %2252 = vmatprep.subr.bf16.mxu0 0
        %2253 = vmatpush1.bf16.xpose.msra.mxu0 0
        %2254 = vmatprep.subr.bf16.mxu0 0
        %2255 = vmatpush1.bf16.xpose.msra.mxu0 0
        %2256 = vmatprep.subr.bf16.mxu0 0
        %2257 = vmatpush1.bf16.xpose.msra.mxu0 %v2198
        %2258 = vmatprep.subr.bf16.mxu0 0
        %2259 = vmatpush2.bf16.xpose.msra.mxu0 0
        %2260 = vmatprep.subr.bf16.mxu0 0
        %2261 = vmatpush2.bf16.xpose.msra.mxu0 0
        %2262 = vmatprep.subr.bf16.mxu0 0
        %2263 = vmatpush2.bf16.xpose.msra.mxu0 0
        %2264 = vmatprep.subr.bf16.mxu0 0
        %2265 = vmatpush2.bf16.xpose.msra.mxu0 0
        %2266 = vmatprep.subr.bf16.mxu0 0
        %2267 = vmatpush2.bf16.xpose.msra.mxu0 0
        %2268 = vmatprep.subr.bf16.mxu0 0
        %2269 = vmatpush2.bf16.xpose.msra.mxu0 0
        %2270 = vmatprep.subr.bf16.mxu0 0
        %2271 = vmatpush2.bf16.xpose.msra.mxu0 0
        %2272 = vmatprep.subr.bf16.mxu0 0
        %2273 = vmatpush2.bf16.xpose.msra.mxu0 0
        %2274 = vmatprep.mubr.bf16.mxu0 0
        %2275 = vmatmul.mubr.bf16.gmra.mxu0 %v2196
        %v2276 = vpop.f32.mrf.mxu0
        %v2277 = vadd.f32 0.0, %v2276
        %v2278 = vpop.f32.mrf.mxu0
        %v2279 = vpop.f32.mrf.mxu0
        %v2280 = vadd.f32 0.0, %v2279
        %v2281 = vpop.f32.mrf.mxu0
        %2282 = vdwg.mxu0
        %vm2283 = vcmask 130048
        %v2284 = vsel %vm2283, %v2236, -inf
        %2285 = vmax.xlane.f32.xlu0 %v2284
        %v2286 = vpop.xlane.xlu0 %2285
        %v2287 = vsel %vm2283, %v2239, -inf
        %2288 = vmax.xlane.f32.xlu0 %v2287
        %v2289 = vpop.xlane.xlu0 %2288
        %v2290 = vsel %vm2283, %v2277, -inf
        %2291 = vmax.xlane.f32.xlu0 %v2290
        %v2292 = vpop.xlane.xlu0 %2291
        %v2293 = vsel %vm2283, %v2280, -inf
        %2294 = vmax.xlane.f32.xlu0 %v2293
        %v2295 = vpop.xlane.xlu0 %2294
        %v2296 = vsub.f32 %v2236, %v2286
        %v2297 = vsub.f32 %v2239, %v2289
        %v2298 = vsub.f32 %v2277, %v2292
        %v2299 = vsub.f32 %v2280, %v2295
        %v2300 = vmul.f32 %v2296, 1.442695
        %v2301 = vpow.pop %v2300
        %v2302 = vmul.f32 %v2297, 1.442695
        %v2303 = vpow.pop %v2302
        %v2304 = vmul.f32 %v2298, 1.442695
        %v2305 = vpow.pop %v2304
        %v2306 = vmul.f32 %v2299, 1.442695
        %v2307 = vpow.pop %v2306
        %v2308 = vsel %vm2160, 1, 0
        %v2309 = vsel %vm2161, 1, 0
        %vm2310 = vcmp.eq.s32.totalorder %v2308, 1
        %vm2311 = vcmp.eq.s32.totalorder %v2309, 1
        %v2312 = vsel %vm2310, %v2301, 0.0
        %v2313 = vsel %vm2311, %v2303, 0.0
        %v2314 = vsel %vm2310, %v2305, 0.0
        %v2315 = vsel %vm2311, %v2307, 0.0
        %v2316 = vsel %vm2283, %v2312, 0.0
        %2317 = vadd.xlane.f32.xlu0 %v2316
        %v2318 = vpop.xlane.xlu0 %2317
        %v2319 = vsel %vm2283, %v2313, 0.0
        %2320 = vadd.xlane.f32.xlu0 %v2319
        %v2321 = vpop.xlane.xlu0 %2320
        %v2322 = vsel %vm2283, %v2314, 0.0
        %2323 = vadd.xlane.f32.xlu0 %v2322
        %v2324 = vpop.xlane.xlu0 %2323
        %v2325 = vsel %vm2283, %v2315, 0.0
        %2326 = vadd.xlane.f32.xlu0 %v2325
        %v2327 = vpop.xlane.xlu0 %2326
        %v2328 = vrcp.pop %v2318
        %v2329 = vrcp.pop %v2321
        %v2330 = vrcp.pop %v2324
        %v2331 = vrcp.pop %v2327
        %v2332 = vmul.f32 %v2312, %v2328
        %v2333 = vmul.f32 %v2313, %v2329
        %v2334 = vmul.f32 %v2314, %v2330
        %v2335 = vmul.f32 %v2315, %v2331
        %v2336 = vpack.c.bf16 %v2333, %v2332
        %v2337 = vpack.c.bf16 %v2335, %v2334
        %v2339 = vsel %vm2283, %v2336, 0
        %2341 = vmatprep.subr.bf16.mxu0 0
        %2342 = vmatpush1.bf16.msra.mxu0 0
        %2343 = vmatprep.subr.bf16.mxu0 0
        %2344 = vmatpush1.bf16.msra.mxu0 0
        %2345 = vmatprep.subr.bf16.mxu0 0
        %2346 = vmatpush1.bf16.msra.mxu0 0
        %2347 = vmatprep.subr.bf16.mxu0 0
        %2348 = vmatpush1.bf16.msra.mxu0 0
        %2349 = vmatprep.subr.bf16.mxu0 0
        %2350 = vmatpush1.bf16.msra.mxu0 0
        %2351 = vmatprep.subr.bf16.mxu0 0
        %2352 = vmatpush1.bf16.msra.mxu0 0
        %2353 = vmatprep.subr.bf16.mxu0 0
        %2354 = vmatpush1.bf16.msra.mxu0 0
        %2355 = vmatprep.subr.bf16.mxu0 0
        %2356 = vmatpush1.bf16.msra.mxu0 %v2199
        %2357 = vmatprep.subr.bf16.mxu0 0
        %2358 = vmatpush2.bf16.msra.mxu0 0
        %2359 = vmatprep.subr.bf16.mxu0 0
        %2360 = vmatpush2.bf16.msra.mxu0 0
        %2361 = vmatprep.subr.bf16.mxu0 0
        %2362 = vmatpush2.bf16.msra.mxu0 0
        %2363 = vmatprep.subr.bf16.mxu0 0
        %2364 = vmatpush2.bf16.msra.mxu0 0
        %2365 = vmatprep.subr.bf16.mxu0 0
        %2366 = vmatpush2.bf16.msra.mxu0 0
        %2367 = vmatprep.subr.bf16.mxu0 0
        %2368 = vmatpush2.bf16.msra.mxu0 0
        %2369 = vmatprep.subr.bf16.mxu0 0
        %2370 = vmatpush2.bf16.msra.mxu0 0
        %2371 = vmatprep.subr.bf16.mxu0 0
        %2372 = vmatpush2.bf16.msra.mxu0 0
        %2373 = vmatprep.mubr.bf16.mxu0 0
        %2374 = vmatmul.mubr.bf16.gmra.mxu0 %v2339
        %v2375 = vpop.f32.mrf.mxu0
        %v2376 = vadd.f32 0.0, %v2375
        %v2377 = vpop.f32.mrf.mxu0
        %v2378 = vpop.f32.mrf.mxu0
        %v2379 = vadd.f32 0.0, %v2378
        %v2380 = vpop.f32.mrf.mxu0
        %2381 = vdwg.mxu0
        %v2383 = vsel %vm2283, %v2337, 0
        %2385 = vmatprep.subr.bf16.mxu0 0
        %2386 = vmatpush1.bf16.msra.mxu0 0
        %2387 = vmatprep.subr.bf16.mxu0 0
        %2388 = vmatpush1.bf16.msra.mxu0 0
        %2389 = vmatprep.subr.bf16.mxu0 0
        %2390 = vmatpush1.bf16.msra.mxu0 0
        %2391 = vmatprep.subr.bf16.mxu0 0
        %2392 = vmatpush1.bf16.msra.mxu0 0
        %2393 = vmatprep.subr.bf16.mxu0 0
        %2394 = vmatpush1.bf16.msra.mxu0 0
        %2395 = vmatprep.subr.bf16.mxu0 0
        %2396 = vmatpush1.bf16.msra.mxu0 0
        %2397 = vmatprep.subr.bf16.mxu0 0
        %2398 = vmatpush1.bf16.msra.mxu0 0
        %2399 = vmatprep.subr.bf16.mxu0 0
        %2400 = vmatpush1.bf16.msra.mxu0 %v2200
        %2401 = vmatprep.subr.bf16.mxu0 0
        %2402 = vmatpush2.bf16.msra.mxu0 0
        %2403 = vmatprep.subr.bf16.mxu0 0
        %2404 = vmatpush2.bf16.msra.mxu0 0
        %2405 = vmatprep.subr.bf16.mxu0 0
        %2406 = vmatpush2.bf16.msra.mxu0 0
        %2407 = vmatprep.subr.bf16.mxu0 0
        %2408 = vmatpush2.bf16.msra.mxu0 0
        %2409 = vmatprep.subr.bf16.mxu0 0
        %2410 = vmatpush2.bf16.msra.mxu0 0
        %2411 = vmatprep.subr.bf16.mxu0 0
        %2412 = vmatpush2.bf16.msra.mxu0 0
        %2413 = vmatprep.subr.bf16.mxu0 0
        %2414 = vmatpush2.bf16.msra.mxu0 0
        %2415 = vmatprep.subr.bf16.mxu0 0
        %2416 = vmatpush2.bf16.msra.mxu0 0
        %2417 = vmatprep.mubr.bf16.mxu0 0
        %2418 = vmatmul.mubr.bf16.gmra.mxu0 %v2383
        %v2419 = vpop.f32.mrf.mxu0
        %v2420 = vadd.f32 0.0, %v2419
        %v2421 = vpop.f32.mrf.mxu0
        %v2422 = vpop.f32.mrf.mxu0
        %v2423 = vadd.f32 0.0, %v2422
        %v2424 = vpop.f32.mrf.mxu0
        %2425 = vdwg.mxu0
        %v2426 = vpack.c.bf16 %v2379, %v2376
        %v2427 = vpack.c.bf16 %v2423, %v2420
        %v2428 = vld [vmem:[#allocation7] sm:$0xff]
        %v2429 = vld [vmem:[#allocation7 + $0x8] sm:$0xf]
        %v2430 = vld [vmem:[#allocation7 + $0xc] sm:$0xff]
        %v2431 = vld [vmem:[#allocation7 + $0x14] sm:$0xf]
        %v2432 = vld [vmem:[#allocation7 + $0x18] sm:$0xff]
        %v2433 = vld [vmem:[#allocation7 + $0x20] sm:$0xf]
        %v2434 = vld [vmem:[#allocation7 + $0x24] sm:$0xff]
        %v2435 = vld [vmem:[#allocation7 + $0x2c] sm:$0xf]
        %v2436 = vld [vmem:[#allocation7 + $0x30] sm:$0xff]
        %v2437 = vld [vmem:[#allocation7 + $0x38] sm:$0xf]
        %v2438 = vld [vmem:[#allocation7 + $0x3c] sm:$0xff]
        %v2439 = vld [vmem:[#allocation7 + $0x44] sm:$0xf]
        %v2440 = vld [vmem:[#allocation7 + $0x48] sm:$0xff]
        %v2441 = vld [vmem:[#allocation7 + $0x50] sm:$0xf]
        %v2442 = vld [vmem:[#allocation7 + $0x54] sm:$0xff]
        %v2443 = vld [vmem:[#allocation7 + $0x5c] sm:$0xf]
        %v2444 = vld [vmem:[#allocation7 + $0x60] sm:$0xff]
        %v2445 = vld [vmem:[#allocation7 + $0x68] sm:$0xf]
        %v2446 = vld [vmem:[#allocation7 + $0x6c] sm:$0xff]
        %v2447 = vld [vmem:[#allocation7 + $0x74] sm:$0xf]
        %v2448 = vld [vmem:[#allocation7 + $0x78] sm:$0xff]
        %v2449 = vld [vmem:[#allocation7 + $0x80] sm:$0xf]
        %v2450 = vld [vmem:[#allocation7 + $0x84] sm:$0xff]
        %v2451 = vld [vmem:[#allocation7 + $0x8c] sm:$0xf]
        %v2452 = vld [vmem:[#allocation7 + $0x90] sm:$0xff]
        %v2453 = vld [vmem:[#allocation7 + $0x98] sm:$0xf]
        %v2454 = vld [vmem:[#allocation7 + $0x9c] sm:$0xff]
        %v2455 = vld [vmem:[#allocation7 + $0xa4] sm:$0xf]
        %v2456 = vld [vmem:[#allocation7 + $0xa8] sm:$0xff]
        %v2457 = vld [vmem:[#allocation7 + $0xb0] sm:$0xf]
        %v2458 = vld [vmem:[#allocation7 + $0xb4] sm:$0xff]
        %v2459 = vld [vmem:[#allocation7 + $0xbc] sm:$0xf]
        %v2492 = vunpack.c.l.b16 %v2428
        %v2493 = vunpack.c.h.b16 %v2428
        %v2494 = vunpack.c.l.b16 %v2429
        %v2495 = vunpack.c.l.b16 %v2430
        %v2496 = vunpack.c.h.b16 %v2430
        %v2497 = vunpack.c.l.b16 %v2431
        %v2498 = vunpack.c.l.b16 %v2432
        %v2499 = vunpack.c.h.b16 %v2432
        %v2500 = vunpack.c.l.b16 %v2433
        %v2501 = vunpack.c.l.b16 %v2434
        %v2502 = vunpack.c.h.b16 %v2434
        %v2503 = vunpack.c.l.b16 %v2435
        %v2504 = vunpack.c.l.b16 %v2436
        %v2505 = vunpack.c.h.b16 %v2436
        %v2506 = vunpack.c.l.b16 %v2437
        %v2507 = vunpack.c.l.b16 %v2438
        %v2508 = vunpack.c.h.b16 %v2438
        %v2509 = vunpack.c.l.b16 %v2439
        %v2510 = vunpack.c.l.b16 %v2440
        %v2511 = vunpack.c.h.b16 %v2440
        %v2512 = vunpack.c.l.b16 %v2441
        %v2513 = vunpack.c.l.b16 %v2442
        %v2514 = vunpack.c.h.b16 %v2442
        %v2515 = vunpack.c.l.b16 %v2443
        %v2516 = vunpack.c.l.b16 %v2444
        %v2517 = vunpack.c.h.b16 %v2444
        %v2518 = vunpack.c.l.b16 %v2445
        %v2519 = vunpack.c.l.b16 %v2446
        %v2520 = vunpack.c.h.b16 %v2446
        %v2521 = vunpack.c.l.b16 %v2447
        %v2522 = vunpack.c.l.b16 %v2448
        %v2523 = vunpack.c.h.b16 %v2448
        %v2524 = vunpack.c.l.b16 %v2449
        %v2525 = vunpack.c.l.b16 %v2450
        %v2526 = vunpack.c.h.b16 %v2450
        %v2527 = vunpack.c.l.b16 %v2451
        %v2528 = vunpack.c.l.b16 %v2452
        %v2529 = vunpack.c.h.b16 %v2452
        %v2530 = vunpack.c.l.b16 %v2453
        %v2531 = vunpack.c.l.b16 %v2454
        %v2532 = vunpack.c.h.b16 %v2454
        %v2533 = vunpack.c.l.b16 %v2455
        %v2534 = vunpack.c.l.b16 %v2456
        %v2535 = vunpack.c.h.b16 %v2456
        %v2536 = vunpack.c.l.b16 %v2457
        %v2537 = vunpack.c.l.b16 %v2458
        %v2538 = vunpack.c.h.b16 %v2458
        %v2539 = vunpack.c.l.b16 %v2459
        %v2540 = vpack.c.b16 %v2495, %v2492
        %v2541 = vpack.c.b16 %v2496, %v2493
        %v2542 = vpack.c.b16 %v2497, %v2494
        %v2543 = vpack.c.b16 %v2501, %v2498
        %v2544 = vpack.c.b16 %v2502, %v2499
        %v2545 = vpack.c.b16 %v2503, %v2500
        %v2546 = vpack.c.b16 %v2507, %v2504
        %v2547 = vpack.c.b16 %v2508, %v2505
        %v2548 = vpack.c.b16 %v2509, %v2506
        %v2549 = vpack.c.b16 %v2513, %v2510
        %v2550 = vpack.c.b16 %v2514, %v2511
        %v2551 = vpack.c.b16 %v2515, %v2512
        %v2552 = vpack.c.b16 %v2519, %v2516
        %v2553 = vpack.c.b16 %v2520, %v2517
        %v2554 = vpack.c.b16 %v2521, %v2518
        %v2555 = vpack.c.b16 %v2525, %v2522
        %v2556 = vpack.c.b16 %v2526, %v2523
        %v2557 = vpack.c.b16 %v2527, %v2524
        %v2558 = vpack.c.b16 %v2531, %v2528
        %v2559 = vpack.c.b16 %v2532, %v2529
        %v2560 = vpack.c.b16 %v2533, %v2530
        %v2561 = vpack.c.b16 %v2537, %v2534
        %v2562 = vpack.c.b16 %v2538, %v2535
        %v2563 = vpack.c.b16 %v2539, %v2536
        %2588 = vmatprep.subr.bf16.mxu0 %v2562
        %2589 = vmatpush1.bf16.msra.mxu0 %v2561
        %2590 = vmatprep.subr.bf16.mxu0 %v2559
        %2591 = vmatpush1.bf16.msra.mxu0 %v2558
        %2592 = vmatprep.subr.bf16.mxu0 %v2556
        %2593 = vmatpush1.bf16.msra.mxu0 %v2555
        %2594 = vmatprep.subr.bf16.mxu0 %v2553
        %2595 = vmatpush1.bf16.msra.mxu0 %v2552
        %2596 = vmatprep.subr.bf16.mxu0 %v2550
        %2597 = vmatpush1.bf16.msra.mxu0 %v2549
        %2598 = vmatprep.subr.bf16.mxu0 %v2547
        %2599 = vmatpush1.bf16.msra.mxu0 %v2546
        %2600 = vmatprep.subr.bf16.mxu0 %v2544
        %2601 = vmatpush1.bf16.msra.mxu0 %v2543
        %2602 = vmatprep.subr.bf16.mxu0 %v2541
        %2603 = vmatpush1.bf16.msra.mxu0 %v2540
        %2604 = vmatprep.subr.bf16.mxu0 0
        %2605 = vmatpush2.bf16.msra.mxu0 0
        %2606 = vmatprep.subr.bf16.mxu0 0
        %2607 = vmatpush2.bf16.msra.mxu0 0
        %2608 = vmatprep.subr.bf16.mxu0 0
        %2609 = vmatpush2.bf16.msra.mxu0 0
        %2610 = vmatprep.subr.bf16.mxu0 0
        %2611 = vmatpush2.bf16.msra.mxu0 0
        %2612 = vmatprep.subr.bf16.mxu0 0
        %2613 = vmatpush2.bf16.msra.mxu0 0
        %2614 = vmatprep.subr.bf16.mxu0 0
        %2615 = vmatpush2.bf16.msra.mxu0 0
        %2616 = vmatprep.subr.bf16.mxu0 0
        %2617 = vmatpush2.bf16.msra.mxu0 0
        %2618 = vmatprep.subr.bf16.mxu0 0
        %2619 = vmatpush2.bf16.msra.mxu0 0
        %2620 = vmatprep.mubr.bf16.mxu0 0
        %2621 = vmatmul.mubr.bf16.gmra.mxu0 %v2426
        %v2622 = vpop.f32.mrf.mxu0
        %v2623 = vadd.f32 0.0, %v2622
        %v2624 = vpop.f32.mrf.mxu0
        %v2625 = vadd.f32 0.0, %v2624
        %v2626 = vpop.f32.mrf.mxu0
        %v2627 = vadd.f32 0.0, %v2626
        %v2628 = vpop.f32.mrf.mxu0
        %v2629 = vadd.f32 0.0, %v2628
        %2630 = vmatprep.mubr.bf16.mxu0 0
        %2631 = vmatmul.mubr.bf16.gmra.mxu0 %v2427
        %v2632 = vpop.f32.mrf.mxu0
        %v2633 = vadd.f32 0.0, %v2632
        %v2634 = vpop.f32.mrf.mxu0
        %v2635 = vadd.f32 0.0, %v2634
        %v2636 = vpop.f32.mrf.mxu0
        %v2637 = vadd.f32 0.0, %v2636
        %v2638 = vpop.f32.mrf.mxu0
        %v2639 = vadd.f32 0.0, %v2638
        %2640 = vdwg.mxu0
        %2641 = vmatprep.subr.bf16.mxu0 0
        %2642 = vmatpush1.bf16.msra.mxu0 %v2563
        %2643 = vmatprep.subr.bf16.mxu0 0
        %2644 = vmatpush1.bf16.msra.mxu0 %v2560
        %2645 = vmatprep.subr.bf16.mxu0 0
        %2646 = vmatpush1.bf16.msra.mxu0 %v2557
        %2647 = vmatprep.subr.bf16.mxu0 0
        %2648 = vmatpush1.bf16.msra.mxu0 %v2554
        %2649 = vmatprep.subr.bf16.mxu0 0
        %2650 = vmatpush1.bf16.msra.mxu0 %v2551
        %2651 = vmatprep.subr.bf16.mxu0 0
        %2652 = vmatpush1.bf16.msra.mxu0 %v2548
        %2653 = vmatprep.subr.bf16.mxu0 0
        %2654 = vmatpush1.bf16.msra.mxu0 %v2545
        %2655 = vmatprep.subr.bf16.mxu0 0
        %2656 = vmatpush1.bf16.msra.mxu0 %v2542
        %2657 = vmatprep.subr.bf16.mxu0 0
        %2658 = vmatpush2.bf16.msra.mxu0 0
        %2659 = vmatprep.subr.bf16.mxu0 0
        %2660 = vmatpush2.bf16.msra.mxu0 0
        %2661 = vmatprep.subr.bf16.mxu0 0
        %2662 = vmatpush2.bf16.msra.mxu0 0
        %2663 = vmatprep.subr.bf16.mxu0 0
        %2664 = vmatpush2.bf16.msra.mxu0 0
        %2665 = vmatprep.subr.bf16.mxu0 0
        %2666 = vmatpush2.bf16.msra.mxu0 0
        %2667 = vmatprep.subr.bf16.mxu0 0
        %2668 = vmatpush2.bf16.msra.mxu0 0
        %2669 = vmatprep.subr.bf16.mxu0 0
        %2670 = vmatpush2.bf16.msra.mxu0 0
        %2671 = vmatprep.subr.bf16.mxu0 0
        %2672 = vmatpush2.bf16.msra.mxu0 0
        %2673 = vmatprep.mubr.bf16.mxu0 0
        %2674 = vmatmul.mubr.bf16.gmra.mxu0 %v2426
        %v2675 = vpop.f32.mrf.mxu0
        %v2676 = vadd.f32 0.0, %v2675
        %v2677 = vpop.f32.mrf.mxu0
        %v2678 = vpop.f32.mrf.mxu0
        %v2679 = vadd.f32 0.0, %v2678
        %v2680 = vpop.f32.mrf.mxu0
        %2681 = vmatprep.mubr.bf16.mxu0 0
        %2682 = vmatmul.mubr.bf16.gmra.mxu0 %v2427
        %v2683 = vpop.f32.mrf.mxu0
        %v2684 = vadd.f32 0.0, %v2683
        %v2685 = vpop.f32.mrf.mxu0
        %v2686 = vpop.f32.mrf.mxu0
        %v2687 = vadd.f32 0.0, %v2686
        %v2688 = vpop.f32.mrf.mxu0
        %2689 = vdwg.mxu0
        %v2690 = vadd.f32 %v2192, %v2623
        %v2691 = vadd.f32 %v2193, %v2625
        %v2692 = vadd.f32 %v2194, %v2676
        %v2693 = vadd.f32 %v2192, %v2627
        %v2694 = vadd.f32 %v2193, %v2629
        %v2695 = vadd.f32 %v2194, %v2679
        %v2696 = vadd.f32 %v2192, %v2633
        %v2697 = vadd.f32 %v2193, %v2635
        %v2698 = vadd.f32 %v2194, %v2684
        %v2699 = vadd.f32 %v2192, %v2637
        %v2700 = vadd.f32 %v2193, %v2639
        %v2701 = vadd.f32 %v2194, %v2687
        %v2702 = vpack.c.bf16 %v1727, %v1723
        %v2703 = vpack.c.bf16 %v1737, %v1733
        %v2704 = vpack.c.bf16 %v1937, %v1933
        %v2705 = vpack.c.bf16 %v1947, %v1943
        %v2706 = vpack.c.bf16 %v2045, %v2041
        %v2707 = vpack.c.bf16 %v2055, %v2051
        %2708 = vmatprep.subr.bf16.mxu0 0
        %2709 = vmatpush1.bf16.xpose.msra.mxu0 0
        %2710 = vmatprep.subr.bf16.mxu0 0
        %2711 = vmatpush1.bf16.xpose.msra.mxu0 0
        %2712 = vmatprep.subr.bf16.mxu0 0
        %2713 = vmatpush1.bf16.xpose.msra.mxu0 0
        %2714 = vmatprep.subr.bf16.mxu0 0
        %2715 = vmatpush1.bf16.xpose.msra.mxu0 0
        %2716 = vmatprep.subr.bf16.mxu0 0
        %2717 = vmatpush1.bf16.xpose.msra.mxu0 0
        %2718 = vmatprep.subr.bf16.mxu0 0
        %2719 = vmatpush1.bf16.xpose.msra.mxu0 0
        %2720 = vmatprep.subr.bf16.mxu0 0
        %2721 = vmatpush1.bf16.xpose.msra.mxu0 0
        %2722 = vmatprep.subr.bf16.mxu0 0
        %2723 = vmatpush1.bf16.xpose.msra.mxu0 %v2704
        %2724 = vmatprep.subr.bf16.mxu0 0
        %2725 = vmatpush2.bf16.xpose.msra.mxu0 0
        %2726 = vmatprep.subr.bf16.mxu0 0
        %2727 = vmatpush2.bf16.xpose.msra.mxu0 0
        %2728 = vmatprep.subr.bf16.mxu0 0
        %2729 = vmatpush2.bf16.xpose.msra.mxu0 0
        %2730 = vmatprep.subr.bf16.mxu0 0
        %2731 = vmatpush2.bf16.xpose.msra.mxu0 0
        %2732 = vmatprep.subr.bf16.mxu0 0
        %2733 = vmatpush2.bf16.xpose.msra.mxu0 0
        %2734 = vmatprep.subr.bf16.mxu0 0
        %2735 = vmatpush2.bf16.xpose.msra.mxu0 0
        %2736 = vmatprep.subr.bf16.mxu0 0
        %2737 = vmatpush2.bf16.xpose.msra.mxu0 0
        %2738 = vmatprep.subr.bf16.mxu0 0
        %2739 = vmatpush2.bf16.xpose.msra.mxu0 0
        %2740 = vmatprep.mubr.bf16.mxu0 0
        %2741 = vmatmul.mubr.bf16.gmra.mxu0 %v2702
        %v2742 = vpop.f32.mrf.mxu0
        %v2743 = vadd.f32 0.0, %v2742
        %v2744 = vpop.f32.mrf.mxu0
        %v2745 = vpop.f32.mrf.mxu0
        %v2746 = vadd.f32 0.0, %v2745
        %v2747 = vpop.f32.mrf.mxu0
        %2748 = vdwg.mxu0
        %2749 = vmatprep.subr.bf16.mxu0 0
        %2750 = vmatpush1.bf16.xpose.msra.mxu0 0
        %2751 = vmatprep.subr.bf16.mxu0 0
        %2752 = vmatpush1.bf16.xpose.msra.mxu0 0
        %2753 = vmatprep.subr.bf16.mxu0 0
        %2754 = vmatpush1.bf16.xpose.msra.mxu0 0
        %2755 = vmatprep.subr.bf16.mxu0 0
        %2756 = vmatpush1.bf16.xpose.msra.mxu0 0
        %2757 = vmatprep.subr.bf16.mxu0 0
        %2758 = vmatpush1.bf16.xpose.msra.mxu0 0
        %2759 = vmatprep.subr.bf16.mxu0 0
        %2760 = vmatpush1.bf16.xpose.msra.mxu0 0
        %2761 = vmatprep.subr.bf16.mxu0 0
        %2762 = vmatpush1.bf16.xpose.msra.mxu0 0
        %2763 = vmatprep.subr.bf16.mxu0 0
        %2764 = vmatpush1.bf16.xpose.msra.mxu0 %v2705
        %2765 = vmatprep.subr.bf16.mxu0 0
        %2766 = vmatpush2.bf16.xpose.msra.mxu0 0
        %2767 = vmatprep.subr.bf16.mxu0 0
        %2768 = vmatpush2.bf16.xpose.msra.mxu0 0
        %2769 = vmatprep.subr.bf16.mxu0 0
        %2770 = vmatpush2.bf16.xpose.msra.mxu0 0
        %2771 = vmatprep.subr.bf16.mxu0 0
        %2772 = vmatpush2.bf16.xpose.msra.mxu0 0
        %2773 = vmatprep.subr.bf16.mxu0 0
        %2774 = vmatpush2.bf16.xpose.msra.mxu0 0
        %2775 = vmatprep.subr.bf16.mxu0 0
        %2776 = vmatpush2.bf16.xpose.msra.mxu0 0
        %2777 = vmatprep.subr.bf16.mxu0 0
        %2778 = vmatpush2.bf16.xpose.msra.mxu0 0
        %2779 = vmatprep.subr.bf16.mxu0 0
        %2780 = vmatpush2.bf16.xpose.msra.mxu0 0
        %2781 = vmatprep.mubr.bf16.mxu0 0
        %2782 = vmatmul.mubr.bf16.gmra.mxu0 %v2703
        %v2783 = vpop.f32.mrf.mxu0
        %v2784 = vadd.f32 0.0, %v2783
        %v2785 = vpop.f32.mrf.mxu0
        %v2786 = vpop.f32.mrf.mxu0
        %v2787 = vadd.f32 0.0, %v2786
        %v2788 = vpop.f32.mrf.mxu0
        %2789 = vdwg.mxu0
        %v2790 = vsel %vm2283, %v2743, -inf
        %2791 = vmax.xlane.f32.xlu0 %v2790
        %v2792 = vpop.xlane.xlu0 %2791
        %v2793 = vsel %vm2283, %v2746, -inf
        %2794 = vmax.xlane.f32.xlu0 %v2793
        %v2795 = vpop.xlane.xlu0 %2794
        %v2796 = vsel %vm2283, %v2784, -inf
        %2797 = vmax.xlane.f32.xlu0 %v2796
        %v2798 = vpop.xlane.xlu0 %2797
        %v2799 = vsel %vm2283, %v2787, -inf
        %2800 = vmax.xlane.f32.xlu0 %v2799
        %v2801 = vpop.xlane.xlu0 %2800
        %v2802 = vsub.f32 %v2743, %v2792
        %v2803 = vsub.f32 %v2746, %v2795
        %v2804 = vsub.f32 %v2784, %v2798
        %v2805 = vsub.f32 %v2787, %v2801
        %v2806 = vmul.f32 %v2802, 1.442695
        %v2807 = vpow.pop %v2806
        %v2808 = vmul.f32 %v2803, 1.442695
        %v2809 = vpow.pop %v2808
        %v2810 = vmul.f32 %v2804, 1.442695
        %v2811 = vpow.pop %v2810
        %v2812 = vmul.f32 %v2805, 1.442695
        %v2813 = vpow.pop %v2812
        %v2814 = vsel %vm2310, %v2807, 0.0
        %v2815 = vsel %vm2311, %v2809, 0.0
        %v2816 = vsel %vm2310, %v2811, 0.0
        %v2817 = vsel %vm2311, %v2813, 0.0
        %v2818 = vsel %vm2283, %v2814, 0.0
        %2819 = vadd.xlane.f32.xlu0 %v2818
        %v2820 = vpop.xlane.xlu0 %2819
        %v2821 = vsel %vm2283, %v2815, 0.0
        %2822 = vadd.xlane.f32.xlu0 %v2821
        %v2823 = vpop.xlane.xlu0 %2822
        %v2824 = vsel %vm2283, %v2816, 0.0
        %2825 = vadd.xlane.f32.xlu0 %v2824
        %v2826 = vpop.xlane.xlu0 %2825
        %v2827 = vsel %vm2283, %v2817, 0.0
        %2828 = vadd.xlane.f32.xlu0 %v2827
        %v2829 = vpop.xlane.xlu0 %2828
        %v2830 = vrcp.pop %v2820
        %v2831 = vrcp.pop %v2823
        %v2832 = vrcp.pop %v2826
        %v2833 = vrcp.pop %v2829
        %v2834 = vmul.f32 %v2814, %v2830
        %v2835 = vmul.f32 %v2815, %v2831
        %v2836 = vmul.f32 %v2816, %v2832
        %v2837 = vmul.f32 %v2817, %v2833
        %v2838 = vpack.c.bf16 %v2835, %v2834
        %v2839 = vpack.c.bf16 %v2837, %v2836
        %v2841 = vsel %vm2283, %v2838, 0
        %2843 = vmatprep.subr.bf16.mxu0 0
        %2844 = vmatpush1.bf16.msra.mxu0 0
        %2845 = vmatprep.subr.bf16.mxu0 0
        %2846 = vmatpush1.bf16.msra.mxu0 0
        %2847 = vmatprep.subr.bf16.mxu0 0
        %2848 = vmatpush1.bf16.msra.mxu0 0
        %2849 = vmatprep.subr.bf16.mxu0 0
        %2850 = vmatpush1.bf16.msra.mxu0 0
        %2851 = vmatprep.subr.bf16.mxu0 0
        %2852 = vmatpush1.bf16.msra.mxu0 0
        %2853 = vmatprep.subr.bf16.mxu0 0
        %2854 = vmatpush1.bf16.msra.mxu0 0
        %2855 = vmatprep.subr.bf16.mxu0 0
        %2856 = vmatpush1.bf16.msra.mxu0 0
        %2857 = vmatprep.subr.bf16.mxu0 0
        %2858 = vmatpush1.bf16.msra.mxu0 %v2706
        %2859 = vmatprep.subr.bf16.mxu0 0
        %2860 = vmatpush2.bf16.msra.mxu0 0
        %2861 = vmatprep.subr.bf16.mxu0 0
        %2862 = vmatpush2.bf16.msra.mxu0 0
        %2863 = vmatprep.subr.bf16.mxu0 0
        %2864 = vmatpush2.bf16.msra.mxu0 0
        %2865 = vmatprep.subr.bf16.mxu0 0
        %2866 = vmatpush2.bf16.msra.mxu0 0
        %2867 = vmatprep.subr.bf16.mxu0 0
        %2868 = vmatpush2.bf16.msra.mxu0 0
        %2869 = vmatprep.subr.bf16.mxu0 0
        %2870 = vmatpush2.bf16.msra.mxu0 0
        %2871 = vmatprep.subr.bf16.mxu0 0
        %2872 = vmatpush2.bf16.msra.mxu0 0
        %2873 = vmatprep.subr.bf16.mxu0 0
        %2874 = vmatpush2.bf16.msra.mxu0 0
        %2875 = vmatprep.mubr.bf16.mxu0 0
        %2876 = vmatmul.mubr.bf16.gmra.mxu0 %v2841
        %v2877 = vpop.f32.mrf.mxu0
        %v2878 = vadd.f32 0.0, %v2877
        %v2879 = vpop.f32.mrf.mxu0
        %v2880 = vpop.f32.mrf.mxu0
        %v2881 = vadd.f32 0.0, %v2880
        %v2882 = vpop.f32.mrf.mxu0
        %2883 = vdwg.mxu0
        %v2885 = vsel %vm2283, %v2839, 0
        %2887 = vmatprep.subr.bf16.mxu0 0
        %2888 = vmatpush1.bf16.msra.mxu0 0
        %2889 = vmatprep.subr.bf16.mxu0 0
        %2890 = vmatpush1.bf16.msra.mxu0 0
        %2891 = vmatprep.subr.bf16.mxu0 0
        %2892 = vmatpush1.bf16.msra.mxu0 0
        %2893 = vmatprep.subr.bf16.mxu0 0
        %2894 = vmatpush1.bf16.msra.mxu0 0
        %2895 = vmatprep.subr.bf16.mxu0 0
        %2896 = vmatpush1.bf16.msra.mxu0 0
        %2897 = vmatprep.subr.bf16.mxu0 0
        %2898 = vmatpush1.bf16.msra.mxu0 0
        %2899 = vmatprep.subr.bf16.mxu0 0
        %2900 = vmatpush1.bf16.msra.mxu0 0
        %2901 = vmatprep.subr.bf16.mxu0 0
        %2902 = vmatpush1.bf16.msra.mxu0 %v2707
        %2903 = vmatprep.subr.bf16.mxu0 0
        %2904 = vmatpush2.bf16.msra.mxu0 0
        %2905 = vmatprep.subr.bf16.mxu0 0
        %2906 = vmatpush2.bf16.msra.mxu0 0
        %2907 = vmatprep.subr.bf16.mxu0 0
        %2908 = vmatpush2.bf16.msra.mxu0 0
        %2909 = vmatprep.subr.bf16.mxu0 0
        %2910 = vmatpush2.bf16.msra.mxu0 0
        %2911 = vmatprep.subr.bf16.mxu0 0
        %2912 = vmatpush2.bf16.msra.mxu0 0
        %2913 = vmatprep.subr.bf16.mxu0 0
        %2914 = vmatpush2.bf16.msra.mxu0 0
        %2915 = vmatprep.subr.bf16.mxu0 0
        %2916 = vmatpush2.bf16.msra.mxu0 0
        %2917 = vmatprep.subr.bf16.mxu0 0
        %2918 = vmatpush2.bf16.msra.mxu0 0
        %2919 = vmatprep.mubr.bf16.mxu0 0
        %2920 = vmatmul.mubr.bf16.gmra.mxu0 %v2885
        %v2921 = vpop.f32.mrf.mxu0
        %v2922 = vadd.f32 0.0, %v2921
        %v2923 = vpop.f32.mrf.mxu0
        %v2924 = vpop.f32.mrf.mxu0
        %v2925 = vadd.f32 0.0, %v2924
        %v2926 = vpop.f32.mrf.mxu0
        %2927 = vdwg.mxu0
        %v2928 = vpack.c.bf16 %v2881, %v2878
        %v2929 = vpack.c.bf16 %v2925, %v2922
        %v2930 = vld [vmem:[#allocation7 + $0xc0] sm:$0xff]
        %v2931 = vld [vmem:[#allocation7 + $0xc8] sm:$0xf]
        %v2932 = vld [vmem:[#allocation7 + $0xcc] sm:$0xff]
        %v2933 = vld [vmem:[#allocation7 + $0xd4] sm:$0xf]
        %v2934 = vld [vmem:[#allocation7 + $0xd8] sm:$0xff]
        %v2935 = vld [vmem:[#allocation7 + $0xe0] sm:$0xf]
        %v2936 = vld [vmem:[#allocation7 + $0xe4] sm:$0xff]
        %v2937 = vld [vmem:[#allocation7 + $0xec] sm:$0xf]
        %v2938 = vld [vmem:[#allocation7 + $0xf0] sm:$0xff]
        %v2939 = vld [vmem:[#allocation7 + $0xf8] sm:$0xf]
        %v2940 = vld [vmem:[#allocation7 + $0xfc] sm:$0xff]
        %v2941 = vld [vmem:[#allocation7 + $0x104] sm:$0xf]
        %v2942 = vld [vmem:[#allocation7 + $0x108] sm:$0xff]
        %v2943 = vld [vmem:[#allocation7 + $0x110] sm:$0xf]
        %v2944 = vld [vmem:[#allocation7 + $0x114] sm:$0xff]
        %v2945 = vld [vmem:[#allocation7 + $0x11c] sm:$0xf]
        %v2946 = vld [vmem:[#allocation7 + $0x120] sm:$0xff]
        %v2947 = vld [vmem:[#allocation7 + $0x128] sm:$0xf]
        %v2948 = vld [vmem:[#allocation7 + $0x12c] sm:$0xff]
        %v2949 = vld [vmem:[#allocation7 + $0x134] sm:$0xf]
        %v2950 = vld [vmem:[#allocation7 + $0x138] sm:$0xff]
        %v2951 = vld [vmem:[#allocation7 + $0x140] sm:$0xf]
        %v2952 = vld [vmem:[#allocation7 + $0x144] sm:$0xff]
        %v2953 = vld [vmem:[#allocation7 + $0x14c] sm:$0xf]
        %v2954 = vld [vmem:[#allocation7 + $0x150] sm:$0xff]
        %v2955 = vld [vmem:[#allocation7 + $0x158] sm:$0xf]
        %v2956 = vld [vmem:[#allocation7 + $0x15c] sm:$0xff]
        %v2957 = vld [vmem:[#allocation7 + $0x164] sm:$0xf]
        %v2958 = vld [vmem:[#allocation7 + $0x168] sm:$0xff]
        %v2959 = vld [vmem:[#allocation7 + $0x170] sm:$0xf]
        %v2960 = vld [vmem:[#allocation7 + $0x174] sm:$0xff]
        %v2961 = vld [vmem:[#allocation7 + $0x17c] sm:$0xf]
        %v2994 = vunpack.c.l.b16 %v2930
        %v2995 = vunpack.c.h.b16 %v2930
        %v2996 = vunpack.c.l.b16 %v2931
        %v2997 = vunpack.c.l.b16 %v2932
        %v2998 = vunpack.c.h.b16 %v2932
        %v2999 = vunpack.c.l.b16 %v2933
        %v3000 = vunpack.c.l.b16 %v2934
        %v3001 = vunpack.c.h.b16 %v2934
        %v3002 = vunpack.c.l.b16 %v2935
        %v3003 = vunpack.c.l.b16 %v2936
        %v3004 = vunpack.c.h.b16 %v2936
        %v3005 = vunpack.c.l.b16 %v2937
        %v3006 = vunpack.c.l.b16 %v2938
        %v3007 = vunpack.c.h.b16 %v2938
        %v3008 = vunpack.c.l.b16 %v2939
        %v3009 = vunpack.c.l.b16 %v2940
        %v3010 = vunpack.c.h.b16 %v2940
        %v3011 = vunpack.c.l.b16 %v2941
        %v3012 = vunpack.c.l.b16 %v2942
        %v3013 = vunpack.c.h.b16 %v2942
        %v3014 = vunpack.c.l.b16 %v2943
        %v3015 = vunpack.c.l.b16 %v2944
        %v3016 = vunpack.c.h.b16 %v2944
        %v3017 = vunpack.c.l.b16 %v2945
        %v3018 = vunpack.c.l.b16 %v2946
        %v3019 = vunpack.c.h.b16 %v2946
        %v3020 = vunpack.c.l.b16 %v2947
        %v3021 = vunpack.c.l.b16 %v2948
        %v3022 = vunpack.c.h.b16 %v2948
        %v3023 = vunpack.c.l.b16 %v2949
        %v3024 = vunpack.c.l.b16 %v2950
        %v3025 = vunpack.c.h.b16 %v2950
        %v3026 = vunpack.c.l.b16 %v2951
        %v3027 = vunpack.c.l.b16 %v2952
        %v3028 = vunpack.c.h.b16 %v2952
        %v3029 = vunpack.c.l.b16 %v2953
        %v3030 = vunpack.c.l.b16 %v2954
        %v3031 = vunpack.c.h.b16 %v2954
        %v3032 = vunpack.c.l.b16 %v2955
        %v3033 = vunpack.c.l.b16 %v2956
        %v3034 = vunpack.c.h.b16 %v2956
        %v3035 = vunpack.c.l.b16 %v2957
        %v3036 = vunpack.c.l.b16 %v2958
        %v3037 = vunpack.c.h.b16 %v2958
        %v3038 = vunpack.c.l.b16 %v2959
        %v3039 = vunpack.c.l.b16 %v2960
        %v3040 = vunpack.c.h.b16 %v2960
        %v3041 = vunpack.c.l.b16 %v2961
        %v3042 = vpack.c.b16 %v2997, %v2994
        %v3043 = vpack.c.b16 %v2998, %v2995
        %v3044 = vpack.c.b16 %v2999, %v2996
        %v3045 = vpack.c.b16 %v3003, %v3000
        %v3046 = vpack.c.b16 %v3004, %v3001
        %v3047 = vpack.c.b16 %v3005, %v3002
        %v3048 = vpack.c.b16 %v3009, %v3006
        %v3049 = vpack.c.b16 %v3010, %v3007
        %v3050 = vpack.c.b16 %v3011, %v3008
        %v3051 = vpack.c.b16 %v3015, %v3012
        %v3052 = vpack.c.b16 %v3016, %v3013
        %v3053 = vpack.c.b16 %v3017, %v3014
        %v3054 = vpack.c.b16 %v3021, %v3018
        %v3055 = vpack.c.b16 %v3022, %v3019
        %v3056 = vpack.c.b16 %v3023, %v3020
        %v3057 = vpack.c.b16 %v3027, %v3024
        %v3058 = vpack.c.b16 %v3028, %v3025
        %v3059 = vpack.c.b16 %v3029, %v3026
        %v3060 = vpack.c.b16 %v3033, %v3030
        %v3061 = vpack.c.b16 %v3034, %v3031
        %v3062 = vpack.c.b16 %v3035, %v3032
        %v3063 = vpack.c.b16 %v3039, %v3036
        %v3064 = vpack.c.b16 %v3040, %v3037
        %v3065 = vpack.c.b16 %v3041, %v3038
        %3090 = vmatprep.subr.bf16.mxu0 %v3064
        %3091 = vmatpush1.bf16.msra.mxu0 %v3063
        %3092 = vmatprep.subr.bf16.mxu0 %v3061
        %3093 = vmatpush1.bf16.msra.mxu0 %v3060
        %3094 = vmatprep.subr.bf16.mxu0 %v3058
        %3095 = vmatpush1.bf16.msra.mxu0 %v3057
        %3096 = vmatprep.subr.bf16.mxu0 %v3055
        %3097 = vmatpush1.bf16.msra.mxu0 %v3054
        %3098 = vmatprep.subr.bf16.mxu0 %v3052
        %3099 = vmatpush1.bf16.msra.mxu0 %v3051
        %3100 = vmatprep.subr.bf16.mxu0 %v3049
        %3101 = vmatpush1.bf16.msra.mxu0 %v3048
        %3102 = vmatprep.subr.bf16.mxu0 %v3046
        %3103 = vmatpush1.bf16.msra.mxu0 %v3045
        %3104 = vmatprep.subr.bf16.mxu0 %v3043
        %3105 = vmatpush1.bf16.msra.mxu0 %v3042
        %3106 = vmatprep.subr.bf16.mxu0 0
        %3107 = vmatpush2.bf16.msra.mxu0 0
        %3108 = vmatprep.subr.bf16.mxu0 0
        %3109 = vmatpush2.bf16.msra.mxu0 0
        %3110 = vmatprep.subr.bf16.mxu0 0
        %3111 = vmatpush2.bf16.msra.mxu0 0
        %3112 = vmatprep.subr.bf16.mxu0 0
        %3113 = vmatpush2.bf16.msra.mxu0 0
        %3114 = vmatprep.subr.bf16.mxu0 0
        %3115 = vmatpush2.bf16.msra.mxu0 0
        %3116 = vmatprep.subr.bf16.mxu0 0
        %3117 = vmatpush2.bf16.msra.mxu0 0
        %3118 = vmatprep.subr.bf16.mxu0 0
        %3119 = vmatpush2.bf16.msra.mxu0 0
        %3120 = vmatprep.subr.bf16.mxu0 0
        %3121 = vmatpush2.bf16.msra.mxu0 0
        %3122 = vmatprep.mubr.bf16.mxu0 0
        %3123 = vmatmul.mubr.bf16.gmra.mxu0 %v2928
        %v3124 = vpop.f32.mrf.mxu0
        %v3125 = vadd.f32 0.0, %v3124
        %v3126 = vpop.f32.mrf.mxu0
        %v3127 = vadd.f32 0.0, %v3126
        %v3128 = vpop.f32.mrf.mxu0
        %v3129 = vadd.f32 0.0, %v3128
        %v3130 = vpop.f32.mrf.mxu0
        %v3131 = vadd.f32 0.0, %v3130
        %3132 = vmatprep.mubr.bf16.mxu0 0
        %3133 = vmatmul.mubr.bf16.gmra.mxu0 %v2929
        %v3134 = vpop.f32.mrf.mxu0
        %v3135 = vadd.f32 0.0, %v3134
        %v3136 = vpop.f32.mrf.mxu0
        %v3137 = vadd.f32 0.0, %v3136
        %v3138 = vpop.f32.mrf.mxu0
        %v3139 = vadd.f32 0.0, %v3138
        %v3140 = vpop.f32.mrf.mxu0
        %v3141 = vadd.f32 0.0, %v3140
        %3142 = vdwg.mxu0
        %3143 = vmatprep.subr.bf16.mxu0 0
        %3144 = vmatpush1.bf16.msra.mxu0 %v3065
        %3145 = vmatprep.subr.bf16.mxu0 0
        %3146 = vmatpush1.bf16.msra.mxu0 %v3062
        %3147 = vmatprep.subr.bf16.mxu0 0
        %3148 = vmatpush1.bf16.msra.mxu0 %v3059
        %3149 = vmatprep.subr.bf16.mxu0 0
        %3150 = vmatpush1.bf16.msra.mxu0 %v3056
        %3151 = vmatprep.subr.bf16.mxu0 0
        %3152 = vmatpush1.bf16.msra.mxu0 %v3053
        %3153 = vmatprep.subr.bf16.mxu0 0
        %3154 = vmatpush1.bf16.msra.mxu0 %v3050
        %3155 = vmatprep.subr.bf16.mxu0 0
        %3156 = vmatpush1.bf16.msra.mxu0 %v3047
        %3157 = vmatprep.subr.bf16.mxu0 0
        %3158 = vmatpush1.bf16.msra.mxu0 %v3044
        %3159 = vmatprep.subr.bf16.mxu0 0
        %3160 = vmatpush2.bf16.msra.mxu0 0
        %3161 = vmatprep.subr.bf16.mxu0 0
        %3162 = vmatpush2.bf16.msra.mxu0 0
        %3163 = vmatprep.subr.bf16.mxu0 0
        %3164 = vmatpush2.bf16.msra.mxu0 0
        %3165 = vmatprep.subr.bf16.mxu0 0
        %3166 = vmatpush2.bf16.msra.mxu0 0
        %3167 = vmatprep.subr.bf16.mxu0 0
        %3168 = vmatpush2.bf16.msra.mxu0 0
        %3169 = vmatprep.subr.bf16.mxu0 0
        %3170 = vmatpush2.bf16.msra.mxu0 0
        %3171 = vmatprep.subr.bf16.mxu0 0
        %3172 = vmatpush2.bf16.msra.mxu0 0
        %3173 = vmatprep.subr.bf16.mxu0 0
        %3174 = vmatpush2.bf16.msra.mxu0 0
        %3175 = vmatprep.mubr.bf16.mxu0 0
        %3176 = vmatmul.mubr.bf16.gmra.mxu0 %v2928
        %v3177 = vpop.f32.mrf.mxu0
        %v3178 = vadd.f32 0.0, %v3177
        %v3179 = vpop.f32.mrf.mxu0
        %v3180 = vpop.f32.mrf.mxu0
        %v3181 = vadd.f32 0.0, %v3180
        %v3182 = vpop.f32.mrf.mxu0
        %3183 = vmatprep.mubr.bf16.mxu0 0
        %3184 = vmatmul.mubr.bf16.gmra.mxu0 %v2929
        %v3185 = vpop.f32.mrf.mxu0
        %v3186 = vadd.f32 0.0, %v3185
        %v3187 = vpop.f32.mrf.mxu0
        %v3188 = vpop.f32.mrf.mxu0
        %v3189 = vadd.f32 0.0, %v3188
        %v3190 = vpop.f32.mrf.mxu0
        %3191 = vdwg.mxu0
        %v3192 = vadd.f32 %v2690, %v3125
        %v3193 = vadd.f32 %v2691, %v3127
        %v3194 = vadd.f32 %v2692, %v3178
        %v3195 = vadd.f32 %v2693, %v3129
        %v3196 = vadd.f32 %v2694, %v3131
        %v3197 = vadd.f32 %v2695, %v3181
        %v3198 = vadd.f32 %v2696, %v3135
        %v3199 = vadd.f32 %v2697, %v3137
        %v3200 = vadd.f32 %v2698, %v3186
        %v3201 = vadd.f32 %v2699, %v3139
        %v3202 = vadd.f32 %v2700, %v3141
        %v3203 = vadd.f32 %v2701, %v3189
        %v3204 = vpack.c.bf16 %v1831, %v1827
        %v3205 = vpack.c.bf16 %v1841, %v1837
        %v3206 = vpack.c.bf16 %v1939, %v1935
        %v3207 = vpack.c.bf16 %v1949, %v1945
        %v3208 = vpack.c.bf16 %v2144, %v2141
        %v3209 = vpack.c.bf16 %v2152, %v2149
        %3210 = vmatprep.subr.bf16.mxu0 0
        %3211 = vmatpush1.bf16.xpose.msra.mxu0 0
        %3212 = vmatprep.subr.bf16.mxu0 0
        %3213 = vmatpush1.bf16.xpose.msra.mxu0 0
        %3214 = vmatprep.subr.bf16.mxu0 0
        %3215 = vmatpush1.bf16.xpose.msra.mxu0 0
        %3216 = vmatprep.subr.bf16.mxu0 0
        %3217 = vmatpush1.bf16.xpose.msra.mxu0 0
        %3218 = vmatprep.subr.bf16.mxu0 0
        %3219 = vmatpush1.bf16.xpose.msra.mxu0 0
        %3220 = vmatprep.subr.bf16.mxu0 0
        %3221 = vmatpush1.bf16.xpose.msra.mxu0 0
        %3222 = vmatprep.subr.bf16.mxu0 0
        %3223 = vmatpush1.bf16.xpose.msra.mxu0 0
        %3224 = vmatprep.subr.bf16.mxu0 0
        %3225 = vmatpush1.bf16.xpose.msra.mxu0 %v3206
        %3226 = vmatprep.subr.bf16.mxu0 0
        %3227 = vmatpush2.bf16.xpose.msra.mxu0 0
        %3228 = vmatprep.subr.bf16.mxu0 0
        %3229 = vmatpush2.bf16.xpose.msra.mxu0 0
        %3230 = vmatprep.subr.bf16.mxu0 0
        %3231 = vmatpush2.bf16.xpose.msra.mxu0 0
        %3232 = vmatprep.subr.bf16.mxu0 0
        %3233 = vmatpush2.bf16.xpose.msra.mxu0 0
        %3234 = vmatprep.subr.bf16.mxu0 0
        %3235 = vmatpush2.bf16.xpose.msra.mxu0 0
        %3236 = vmatprep.subr.bf16.mxu0 0
        %3237 = vmatpush2.bf16.xpose.msra.mxu0 0
        %3238 = vmatprep.subr.bf16.mxu0 0
        %3239 = vmatpush2.bf16.xpose.msra.mxu0 0
        %3240 = vmatprep.subr.bf16.mxu0 0
        %3241 = vmatpush2.bf16.xpose.msra.mxu0 0
        %3242 = vmatprep.mubr.bf16.mxu0 0
        %3243 = vmatmul.mubr.bf16.gmra.mxu0 %v3204
        %v3244 = vpop.f32.mrf.mxu0
        %v3245 = vadd.f32 0.0, %v3244
        %v3246 = vpop.f32.mrf.mxu0
        %v3247 = vpop.f32.mrf.mxu0
        %v3248 = vadd.f32 0.0, %v3247
        %v3249 = vpop.f32.mrf.mxu0
        %3250 = vdwg.mxu0
        %3251 = vmatprep.subr.bf16.mxu0 0
        %3252 = vmatpush1.bf16.xpose.msra.mxu0 0
        %3253 = vmatprep.subr.bf16.mxu0 0
        %3254 = vmatpush1.bf16.xpose.msra.mxu0 0
        %3255 = vmatprep.subr.bf16.mxu0 0
        %3256 = vmatpush1.bf16.xpose.msra.mxu0 0
        %3257 = vmatprep.subr.bf16.mxu0 0
        %3258 = vmatpush1.bf16.xpose.msra.mxu0 0
        %3259 = vmatprep.subr.bf16.mxu0 0
        %3260 = vmatpush1.bf16.xpose.msra.mxu0 0
        %3261 = vmatprep.subr.bf16.mxu0 0
        %3262 = vmatpush1.bf16.xpose.msra.mxu0 0
        %3263 = vmatprep.subr.bf16.mxu0 0
        %3264 = vmatpush1.bf16.xpose.msra.mxu0 0
        %3265 = vmatprep.subr.bf16.mxu0 0
        %3266 = vmatpush1.bf16.xpose.msra.mxu0 %v3207
        %3267 = vmatprep.subr.bf16.mxu0 0
        %3268 = vmatpush2.bf16.xpose.msra.mxu0 0
        %3269 = vmatprep.subr.bf16.mxu0 0
        %3270 = vmatpush2.bf16.xpose.msra.mxu0 0
        %3271 = vmatprep.subr.bf16.mxu0 0
        %3272 = vmatpush2.bf16.xpose.msra.mxu0 0
        %3273 = vmatprep.subr.bf16.mxu0 0
        %3274 = vmatpush2.bf16.xpose.msra.mxu0 0
        %3275 = vmatprep.subr.bf16.mxu0 0
        %3276 = vmatpush2.bf16.xpose.msra.mxu0 0
        %3277 = vmatprep.subr.bf16.mxu0 0
        %3278 = vmatpush2.bf16.xpose.msra.mxu0 0
        %3279 = vmatprep.subr.bf16.mxu0 0
        %3280 = vmatpush2.bf16.xpose.msra.mxu0 0
        %3281 = vmatprep.subr.bf16.mxu0 0
        %3282 = vmatpush2.bf16.xpose.msra.mxu0 0
        %3283 = vmatprep.mubr.bf16.mxu0 0
        %3284 = vmatmul.mubr.bf16.gmra.mxu0 %v3205
        %v3285 = vpop.f32.mrf.mxu0
        %v3286 = vadd.f32 0.0, %v3285
        %v3287 = vpop.f32.mrf.mxu0
        %v3288 = vpop.f32.mrf.mxu0
        %v3289 = vadd.f32 0.0, %v3288
        %v3290 = vpop.f32.mrf.mxu0
        %3291 = vdwg.mxu0
        %v3292 = vsel %vm2283, %v3245, -inf
        %3293 = vmax.xlane.f32.xlu0 %v3292
        %v3294 = vpop.xlane.xlu0 %3293
        %v3295 = vsel %vm2283, %v3248, -inf
        %3296 = vmax.xlane.f32.xlu0 %v3295
        %v3297 = vpop.xlane.xlu0 %3296
        %v3298 = vsel %vm2283, %v3286, -inf
        %3299 = vmax.xlane.f32.xlu0 %v3298
        %v3300 = vpop.xlane.xlu0 %3299
        %v3301 = vsel %vm2283, %v3289, -inf
        %3302 = vmax.xlane.f32.xlu0 %v3301
        %v3303 = vpop.xlane.xlu0 %3302
        %v3304 = vsub.f32 %v3245, %v3294
        %v3305 = vsub.f32 %v3248, %v3297
        %v3306 = vsub.f32 %v3286, %v3300
        %v3307 = vsub.f32 %v3289, %v3303
        %v3308 = vmul.f32 %v3304, 1.442695
        %v3309 = vpow.pop %v3308
        %v3310 = vmul.f32 %v3305, 1.442695
        %v3311 = vpow.pop %v3310
        %v3312 = vmul.f32 %v3306, 1.442695
        %v3313 = vpow.pop %v3312
        %v3314 = vmul.f32 %v3307, 1.442695
        %v3315 = vpow.pop %v3314
        %v3316 = vsel %vm2310, %v3309, 0.0
        %v3317 = vsel %vm2311, %v3311, 0.0
        %v3318 = vsel %vm2310, %v3313, 0.0
        %v3319 = vsel %vm2311, %v3315, 0.0
        %v3320 = vsel %vm2283, %v3316, 0.0
        %3321 = vadd.xlane.f32.xlu0 %v3320
        %v3322 = vpop.xlane.xlu0 %3321
        %v3323 = vsel %vm2283, %v3317, 0.0
        %3324 = vadd.xlane.f32.xlu0 %v3323
        %v3325 = vpop.xlane.xlu0 %3324
        %v3326 = vsel %vm2283, %v3318, 0.0
        %3327 = vadd.xlane.f32.xlu0 %v3326
        %v3328 = vpop.xlane.xlu0 %3327
        %v3329 = vsel %vm2283, %v3319, 0.0
        %3330 = vadd.xlane.f32.xlu0 %v3329
        %v3331 = vpop.xlane.xlu0 %3330
        %v3332 = vrcp.pop %v3322
        %v3333 = vrcp.pop %v3325
        %v3334 = vrcp.pop %v3328
        %v3335 = vrcp.pop %v3331
        %v3336 = vmul.f32 %v3316, %v3332
        %v3337 = vmul.f32 %v3317, %v3333
        %v3338 = vmul.f32 %v3318, %v3334
        %v3339 = vmul.f32 %v3319, %v3335
        %v3340 = vpack.c.bf16 %v3337, %v3336
        %v3341 = vpack.c.bf16 %v3339, %v3338
        %v3343 = vsel %vm2283, %v3340, 0
        %3345 = vmatprep.subr.bf16.mxu0 0
        %3346 = vmatpush1.bf16.msra.mxu0 0
        %3347 = vmatprep.subr.bf16.mxu0 0
        %3348 = vmatpush1.bf16.msra.mxu0 0
        %3349 = vmatprep.subr.bf16.mxu0 0
        %3350 = vmatpush1.bf16.msra.mxu0 0
        %3351 = vmatprep.subr.bf16.mxu0 0
        %3352 = vmatpush1.bf16.msra.mxu0 0
        %3353 = vmatprep.subr.bf16.mxu0 0
        %3354 = vmatpush1.bf16.msra.mxu0 0
        %3355 = vmatprep.subr.bf16.mxu0 0
        %3356 = vmatpush1.bf16.msra.mxu0 0
        %3357 = vmatprep.subr.bf16.mxu0 0
        %3358 = vmatpush1.bf16.msra.mxu0 0
        %3359 = vmatprep.subr.bf16.mxu0 0
        %3360 = vmatpush1.bf16.msra.mxu0 %v3208
        %3361 = vmatprep.subr.bf16.mxu0 0
        %3362 = vmatpush2.bf16.msra.mxu0 0
        %3363 = vmatprep.subr.bf16.mxu0 0
        %3364 = vmatpush2.bf16.msra.mxu0 0
        %3365 = vmatprep.subr.bf16.mxu0 0
        %3366 = vmatpush2.bf16.msra.mxu0 0
        %3367 = vmatprep.subr.bf16.mxu0 0
        %3368 = vmatpush2.bf16.msra.mxu0 0
        %3369 = vmatprep.subr.bf16.mxu0 0
        %3370 = vmatpush2.bf16.msra.mxu0 0
        %3371 = vmatprep.subr.bf16.mxu0 0
        %3372 = vmatpush2.bf16.msra.mxu0 0
        %3373 = vmatprep.subr.bf16.mxu0 0
        %3374 = vmatpush2.bf16.msra.mxu0 0
        %3375 = vmatprep.subr.bf16.mxu0 0
        %3376 = vmatpush2.bf16.msra.mxu0 0
        %3377 = vmatprep.mubr.bf16.mxu0 0
        %3378 = vmatmul.mubr.bf16.gmra.mxu0 %v3343
        %v3379 = vpop.f32.mrf.mxu0
        %v3380 = vadd.f32 0.0, %v3379
        %v3381 = vpop.f32.mrf.mxu0
        %v3382 = vpop.f32.mrf.mxu0
        %v3383 = vadd.f32 0.0, %v3382
        %v3384 = vpop.f32.mrf.mxu0
        %3385 = vdwg.mxu0
        %v3387 = vsel %vm2283, %v3341, 0
        %3389 = vmatprep.subr.bf16.mxu0 0
        %3390 = vmatpush1.bf16.msra.mxu0 0
        %3391 = vmatprep.subr.bf16.mxu0 0
        %3392 = vmatpush1.bf16.msra.mxu0 0
        %3393 = vmatprep.subr.bf16.mxu0 0
        %3394 = vmatpush1.bf16.msra.mxu0 0
        %3395 = vmatprep.subr.bf16.mxu0 0
        %3396 = vmatpush1.bf16.msra.mxu0 0
        %3397 = vmatprep.subr.bf16.mxu0 0
        %3398 = vmatpush1.bf16.msra.mxu0 0
        %3399 = vmatprep.subr.bf16.mxu0 0
        %3400 = vmatpush1.bf16.msra.mxu0 0
        %3401 = vmatprep.subr.bf16.mxu0 0
        %3402 = vmatpush1.bf16.msra.mxu0 0
        %3403 = vmatprep.subr.bf16.mxu0 0
        %3404 = vmatpush1.bf16.msra.mxu0 %v3209
        %3405 = vmatprep.subr.bf16.mxu0 0
        %3406 = vmatpush2.bf16.msra.mxu0 0
        %3407 = vmatprep.subr.bf16.mxu0 0
        %3408 = vmatpush2.bf16.msra.mxu0 0
        %3409 = vmatprep.subr.bf16.mxu0 0
        %3410 = vmatpush2.bf16.msra.mxu0 0
        %3411 = vmatprep.subr.bf16.mxu0 0
        %3412 = vmatpush2.bf16.msra.mxu0 0
        %3413 = vmatprep.subr.bf16.mxu0 0
        %3414 = vmatpush2.bf16.msra.mxu0 0
        %3415 = vmatprep.subr.bf16.mxu0 0
        %3416 = vmatpush2.bf16.msra.mxu0 0
        %3417 = vmatprep.subr.bf16.mxu0 0
        %3418 = vmatpush2.bf16.msra.mxu0 0
        %3419 = vmatprep.subr.bf16.mxu0 0
        %3420 = vmatpush2.bf16.msra.mxu0 0
        %3421 = vmatprep.mubr.bf16.mxu0 0
        %3422 = vmatmul.mubr.bf16.gmra.mxu0 %v3387
        %v3423 = vpop.f32.mrf.mxu0
        %v3424 = vadd.f32 0.0, %v3423
        %v3425 = vpop.f32.mrf.mxu0
        %v3426 = vpop.f32.mrf.mxu0
        %v3427 = vadd.f32 0.0, %v3426
        %v3428 = vpop.f32.mrf.mxu0
        %3429 = vdwg.mxu0
        %v3430 = vpack.c.bf16 %v3383, %v3380
        %v3431 = vpack.c.bf16 %v3427, %v3424
        %v3432 = vld [vmem:[#allocation7 + $0x180] sm:$0xff]
        %v3433 = vld [vmem:[#allocation7 + $0x188] sm:$0xf]
        %v3434 = vld [vmem:[#allocation7 + $0x18c] sm:$0xff]
        %v3435 = vld [vmem:[#allocation7 + $0x194] sm:$0xf]
        %v3436 = vld [vmem:[#allocation7 + $0x198] sm:$0xff]
        %v3437 = vld [vmem:[#allocation7 + $0x1a0] sm:$0xf]
        %v3438 = vld [vmem:[#allocation7 + $0x1a4] sm:$0xff]
        %v3439 = vld [vmem:[#allocation7 + $0x1ac] sm:$0xf]
        %v3440 = vld [vmem:[#allocation7 + $0x1b0] sm:$0xff]
        %v3441 = vld [vmem:[#allocation7 + $0x1b8] sm:$0xf]
        %v3442 = vld [vmem:[#allocation7 + $0x1bc] sm:$0xff]
        %v3443 = vld [vmem:[#allocation7 + $0x1c4] sm:$0xf]
        %v3444 = vld [vmem:[#allocation7 + $0x1c8] sm:$0xff]
        %v3445 = vld [vmem:[#allocation7 + $0x1d0] sm:$0xf]
        %v3446 = vld [vmem:[#allocation7 + $0x1d4] sm:$0xff]
        %v3447 = vld [vmem:[#allocation7 + $0x1dc] sm:$0xf]
        %v3448 = vld [vmem:[#allocation7 + $0x1e0] sm:$0xff]
        %v3449 = vld [vmem:[#allocation7 + $0x1e8] sm:$0xf]
        %v3450 = vld [vmem:[#allocation7 + $0x1ec] sm:$0xff]
        %v3451 = vld [vmem:[#allocation7 + $0x1f4] sm:$0xf]
        %v3452 = vld [vmem:[#allocation7 + $0x1f8] sm:$0xff]
        %v3453 = vld [vmem:[#allocation7 + $0x200] sm:$0xf]
        %v3454 = vld [vmem:[#allocation7 + $0x204] sm:$0xff]
        %v3455 = vld [vmem:[#allocation7 + $0x20c] sm:$0xf]
        %v3456 = vld [vmem:[#allocation7 + $0x210] sm:$0xff]
        %v3457 = vld [vmem:[#allocation7 + $0x218] sm:$0xf]
        %v3458 = vld [vmem:[#allocation7 + $0x21c] sm:$0xff]
        %v3459 = vld [vmem:[#allocation7 + $0x224] sm:$0xf]
        %v3460 = vld [vmem:[#allocation7 + $0x228] sm:$0xff]
        %v3461 = vld [vmem:[#allocation7 + $0x230] sm:$0xf]
        %v3462 = vld [vmem:[#allocation7 + $0x234] sm:$0xff]
        %v3463 = vld [vmem:[#allocation7 + $0x23c] sm:$0xf]
        %v3496 = vunpack.c.l.b16 %v3432
        %v3497 = vunpack.c.h.b16 %v3432
        %v3498 = vunpack.c.l.b16 %v3433
        %v3499 = vunpack.c.l.b16 %v3434
        %v3500 = vunpack.c.h.b16 %v3434
        %v3501 = vunpack.c.l.b16 %v3435
        %v3502 = vunpack.c.l.b16 %v3436
        %v3503 = vunpack.c.h.b16 %v3436
        %v3504 = vunpack.c.l.b16 %v3437
        %v3505 = vunpack.c.l.b16 %v3438
        %v3506 = vunpack.c.h.b16 %v3438
        %v3507 = vunpack.c.l.b16 %v3439
        %v3508 = vunpack.c.l.b16 %v3440
        %v3509 = vunpack.c.h.b16 %v3440
        %v3510 = vunpack.c.l.b16 %v3441
        %v3511 = vunpack.c.l.b16 %v3442
        %v3512 = vunpack.c.h.b16 %v3442
        %v3513 = vunpack.c.l.b16 %v3443
        %v3514 = vunpack.c.l.b16 %v3444
        %v3515 = vunpack.c.h.b16 %v3444
        %v3516 = vunpack.c.l.b16 %v3445
        %v3517 = vunpack.c.l.b16 %v3446
        %v3518 = vunpack.c.h.b16 %v3446
        %v3519 = vunpack.c.l.b16 %v3447
        %v3520 = vunpack.c.l.b16 %v3448
        %v3521 = vunpack.c.h.b16 %v3448
        %v3522 = vunpack.c.l.b16 %v3449
        %v3523 = vunpack.c.l.b16 %v3450
        %v3524 = vunpack.c.h.b16 %v3450
        %v3525 = vunpack.c.l.b16 %v3451
        %v3526 = vunpack.c.l.b16 %v3452
        %v3527 = vunpack.c.h.b16 %v3452
        %v3528 = vunpack.c.l.b16 %v3453
        %v3529 = vunpack.c.l.b16 %v3454
        %v3530 = vunpack.c.h.b16 %v3454
        %v3531 = vunpack.c.l.b16 %v3455
        %v3532 = vunpack.c.l.b16 %v3456
        %v3533 = vunpack.c.h.b16 %v3456
        %v3534 = vunpack.c.l.b16 %v3457
        %v3535 = vunpack.c.l.b16 %v3458
        %v3536 = vunpack.c.h.b16 %v3458
        %v3537 = vunpack.c.l.b16 %v3459
        %v3538 = vunpack.c.l.b16 %v3460
        %v3539 = vunpack.c.h.b16 %v3460
        %v3540 = vunpack.c.l.b16 %v3461
        %v3541 = vunpack.c.l.b16 %v3462
        %v3542 = vunpack.c.h.b16 %v3462
        %v3543 = vunpack.c.l.b16 %v3463
        %v3544 = vpack.c.b16 %v3499, %v3496
        %v3545 = vpack.c.b16 %v3500, %v3497
        %v3546 = vpack.c.b16 %v3501, %v3498
        %v3547 = vpack.c.b16 %v3505, %v3502
        %v3548 = vpack.c.b16 %v3506, %v3503
        %v3549 = vpack.c.b16 %v3507, %v3504
        %v3550 = vpack.c.b16 %v3511, %v3508
        %v3551 = vpack.c.b16 %v3512, %v3509
        %v3552 = vpack.c.b16 %v3513, %v3510
        %v3553 = vpack.c.b16 %v3517, %v3514
        %v3554 = vpack.c.b16 %v3518, %v3515
        %v3555 = vpack.c.b16 %v3519, %v3516
        %v3556 = vpack.c.b16 %v3523, %v3520
        %v3557 = vpack.c.b16 %v3524, %v3521
        %v3558 = vpack.c.b16 %v3525, %v3522
        %v3559 = vpack.c.b16 %v3529, %v3526
        %v3560 = vpack.c.b16 %v3530, %v3527
        %v3561 = vpack.c.b16 %v3531, %v3528
        %v3562 = vpack.c.b16 %v3535, %v3532
        %v3563 = vpack.c.b16 %v3536, %v3533
        %v3564 = vpack.c.b16 %v3537, %v3534
        %v3565 = vpack.c.b16 %v3541, %v3538
        %v3566 = vpack.c.b16 %v3542, %v3539
        %v3567 = vpack.c.b16 %v3543, %v3540
        %3592 = vmatprep.subr.bf16.mxu0 %v3566
        %3593 = vmatpush1.bf16.msra.mxu0 %v3565
        %3594 = vmatprep.subr.bf16.mxu0 %v3563
        %3595 = vmatpush1.bf16.msra.mxu0 %v3562
        %3596 = vmatprep.subr.bf16.mxu0 %v3560
        %3597 = vmatpush1.bf16.msra.mxu0 %v3559
        %3598 = vmatprep.subr.bf16.mxu0 %v3557
        %3599 = vmatpush1.bf16.msra.mxu0 %v3556
        %3600 = vmatprep.subr.bf16.mxu0 %v3554
        %3601 = vmatpush1.bf16.msra.mxu0 %v3553
        %3602 = vmatprep.subr.bf16.mxu0 %v3551
        %3603 = vmatpush1.bf16.msra.mxu0 %v3550
        %3604 = vmatprep.subr.bf16.mxu0 %v3548
        %3605 = vmatpush1.bf16.msra.mxu0 %v3547
        %3606 = vmatprep.subr.bf16.mxu0 %v3545
        %3607 = vmatpush1.bf16.msra.mxu0 %v3544
        %3608 = vmatprep.subr.bf16.mxu0 0
        %3609 = vmatpush2.bf16.msra.mxu0 0
        %3610 = vmatprep.subr.bf16.mxu0 0
        %3611 = vmatpush2.bf16.msra.mxu0 0
        %3612 = vmatprep.subr.bf16.mxu0 0
        %3613 = vmatpush2.bf16.msra.mxu0 0
        %3614 = vmatprep.subr.bf16.mxu0 0
        %3615 = vmatpush2.bf16.msra.mxu0 0
        %3616 = vmatprep.subr.bf16.mxu0 0
        %3617 = vmatpush2.bf16.msra.mxu0 0
        %3618 = vmatprep.subr.bf16.mxu0 0
        %3619 = vmatpush2.bf16.msra.mxu0 0
        %3620 = vmatprep.subr.bf16.mxu0 0
        %3621 = vmatpush2.bf16.msra.mxu0 0
        %3622 = vmatprep.subr.bf16.mxu0 0
        %3623 = vmatpush2.bf16.msra.mxu0 0
        %3624 = vmatprep.mubr.bf16.mxu0 0
        %3625 = vmatmul.mubr.bf16.gmra.mxu0 %v3430
        %v3626 = vpop.f32.mrf.mxu0
        %v3627 = vadd.f32 0.0, %v3626
        %v3628 = vpop.f32.mrf.mxu0
        %v3629 = vadd.f32 0.0, %v3628
        %v3630 = vpop.f32.mrf.mxu0
        %v3631 = vadd.f32 0.0, %v3630
        %v3632 = vpop.f32.mrf.mxu0
        %v3633 = vadd.f32 0.0, %v3632
        %3634 = vmatprep.mubr.bf16.mxu0 0
        %3635 = vmatmul.mubr.bf16.gmra.mxu0 %v3431
        %v3636 = vpop.f32.mrf.mxu0
        %v3637 = vadd.f32 0.0, %v3636
        %v3638 = vpop.f32.mrf.mxu0
        %v3639 = vadd.f32 0.0, %v3638
        %v3640 = vpop.f32.mrf.mxu0
        %v3641 = vadd.f32 0.0, %v3640
        %v3642 = vpop.f32.mrf.mxu0
        %v3643 = vadd.f32 0.0, %v3642
        %3644 = vdwg.mxu0
        %3645 = vmatprep.subr.bf16.mxu0 0
        %3646 = vmatpush1.bf16.msra.mxu0 %v3567
        %3647 = vmatprep.subr.bf16.mxu0 0
        %3648 = vmatpush1.bf16.msra.mxu0 %v3564
        %3649 = vmatprep.subr.bf16.mxu0 0
        %3650 = vmatpush1.bf16.msra.mxu0 %v3561
        %3651 = vmatprep.subr.bf16.mxu0 0
        %3652 = vmatpush1.bf16.msra.mxu0 %v3558
        %3653 = vmatprep.subr.bf16.mxu0 0
        %3654 = vmatpush1.bf16.msra.mxu0 %v3555
        %3655 = vmatprep.subr.bf16.mxu0 0
        %3656 = vmatpush1.bf16.msra.mxu0 %v3552
        %3657 = vmatprep.subr.bf16.mxu0 0
        %3658 = vmatpush1.bf16.msra.mxu0 %v3549
        %3659 = vmatprep.subr.bf16.mxu0 0
        %3660 = vmatpush1.bf16.msra.mxu0 %v3546
        %3661 = vmatprep.subr.bf16.mxu0 0
        %3662 = vmatpush2.bf16.msra.mxu0 0
        %3663 = vmatprep.subr.bf16.mxu0 0
        %3664 = vmatpush2.bf16.msra.mxu0 0
        %3665 = vmatprep.subr.bf16.mxu0 0
        %3666 = vmatpush2.bf16.msra.mxu0 0
        %3667 = vmatprep.subr.bf16.mxu0 0
        %3668 = vmatpush2.bf16.msra.mxu0 0
        %3669 = vmatprep.subr.bf16.mxu0 0
        %3670 = vmatpush2.bf16.msra.mxu0 0
        %3671 = vmatprep.subr.bf16.mxu0 0
        %3672 = vmatpush2.bf16.msra.mxu0 0
        %3673 = vmatprep.subr.bf16.mxu0 0
        %3674 = vmatpush2.bf16.msra.mxu0 0
        %3675 = vmatprep.subr.bf16.mxu0 0
        %3676 = vmatpush2.bf16.msra.mxu0 0
        %3677 = vmatprep.mubr.bf16.mxu0 0
        %3678 = vmatmul.mubr.bf16.gmra.mxu0 %v3430
        %v3679 = vpop.f32.mrf.mxu0
        %v3680 = vadd.f32 0.0, %v3679
        %v3681 = vpop.f32.mrf.mxu0
        %v3682 = vpop.f32.mrf.mxu0
        %v3683 = vadd.f32 0.0, %v3682
        %v3684 = vpop.f32.mrf.mxu0
        %3685 = vmatprep.mubr.bf16.mxu0 0
        %3686 = vmatmul.mubr.bf16.gmra.mxu0 %v3431
        %v3687 = vpop.f32.mrf.mxu0
        %v3688 = vadd.f32 0.0, %v3687
        %v3689 = vpop.f32.mrf.mxu0
        %v3690 = vpop.f32.mrf.mxu0
        %v3691 = vadd.f32 0.0, %v3690
        %v3692 = vpop.f32.mrf.mxu0
        %3693 = vdwg.mxu0
        %v3694 = vadd.f32 %v3192, %v3627
        %v3695 = vadd.f32 %v3193, %v3629
        %v3696 = vadd.f32 %v3194, %v3680
        %v3697 = vadd.f32 %v3195, %v3631
        %v3698 = vadd.f32 %v3196, %v3633
        %v3699 = vadd.f32 %v3197, %v3683
        %v3700 = vadd.f32 %v3198, %v3637
        %v3701 = vadd.f32 %v3199, %v3639
        %v3702 = vadd.f32 %v3200, %v3688
        %v3703 = vadd.f32 %v3201, %v3641
        %v3704 = vadd.f32 %v3202, %v3643
        %v3705 = vadd.f32 %v3203, %v3691
        %3706 = vst [vmem:[%s245] sm:$0xff] %v3694
        %3707 = vst [vmem:[%s245 + $0x8] sm:$0xff] %v3695
        %3708 = vst [vmem:[%s245 + $0x10] sm:$0xff] %v3696
        %3709 = vst [vmem:[%s245 + $0x18] sm:$0xff] %v3697
        %3710 = vst [vmem:[%s245 + $0x20] sm:$0xff] %v3698
        %3711 = vst [vmem:[%s245 + $0x28] sm:$0xff] %v3699
        %3712 = vst [vmem:[%s245 + $0x30] sm:$0xff] %v3700
        %3713 = vst [vmem:[%s245 + $0x38] sm:$0xff] %v3701
        %3714 = vst [vmem:[%s245 + $0x40] sm:$0xff] %v3702
        %3715 = vst [vmem:[%s245 + $0x48] sm:$0xff] %v3703
        %3716 = vst [vmem:[%s245 + $0x50] sm:$0xff] %v3704
        %3717 = vst [vmem:[%s245 + $0x58] sm:$0xff] %v3705
        %s3718 = sand.u32 %s119, 1
        %s3719 = scalar_lea.sflag [#allocation4], %s3718
        %s3720 = sand.u32 %s119, 1
        %s3721 = smul.addr %s3720, 96
        %s3722 = scalar_lea.vmem [#allocation8], %s3721
        // Predicated region
        $region49: #{tpu_custom_call.1} parent=35 // pred_check
          %p3723 = pneg %p129
        $region50: #{tpu_custom_call.1} parent=35 // pred_check_branch
          %3725 = sbr.rel (%p3723) target = $region52
        $region51: #{tpu_custom_call.1} parent=35 // pred_region
          %s3726 = smul.u32 2, %s22
          %s3728 = ssub.s32 1536, 1536
          %3729 = vsyncadd %s3719, %s3728
          %s3730 = smul.addr %s3726, 6
          %s3731 = smul.addr %s3730, 128
          %s3732 = scalar_lea.hbm %s4, %s3731
          %s3733 = sshll.u32 %s3722, 4
          %s3734 = int_to_ptr.vmem [resolvable:$true] %s3733
          %3739 = dma.vmem_to_hbm [thread:$0]  %s3734, 1536, %s3732, %s3719, 384, 384, 24
        $region52: #{tpu_custom_call.1} parent=35 // pred_fallthru
          _
      $region36: #{tpu_custom_call.1} parent=5 // pred_fallthru
        _
      %p3740 = scmp.le.s32.totalorder 2, %s17
      // Predicated region
      $region53: #{tpu_custom_call.1} parent=5 // pred_check
        %p3741 = pneg %p3740
      $region54: #{tpu_custom_call.1} parent=5 // pred_check_branch
        %3743 = sbr.rel (%p3741) target = $region56
      $region55: #{tpu_custom_call.1} parent=5 // pred_region
        %s3744 = ssub.s32 %s17, 2
        // Predicated region
        $region57: #{tpu_custom_call.1} parent=55 // pred_check
          %p3745 = pneg %p135
        $region58: #{tpu_custom_call.1} parent=55 // pred_check_branch
          %3747 = sbr.rel (%p3745) target = $region60
        $region59: #{tpu_custom_call.1} parent=55 // pred_region
          %s3748 = sand.u32 %s120, 1
          %s3749 = scalar_lea.sflag [#allocation4], %s3748
          %s3750 = sand.u32 %s120, 1
          %s3751 = smul.addr %s3750, 96
          %s3752 = scalar_lea.vmem [#allocation8], %s3751
          %3753 = dma.done %s3749, 1536
        $region60: #{tpu_custom_call.1} parent=55 // pred_fallthru
          _
      $region56: #{tpu_custom_call.1} parent=5 // pred_fallthru
        _
    $region6: #{tpu_custom_call.1} parent=1 // loop_footer
      %s21 = sadd.s32 1, %s17
    $region7: #{tpu_custom_call.1} parent=1 // loop_footer_branch
      %16 = sbr.rel target = $region3
    $region8: #{tpu_custom_call.1} parent=1 // loop_exit
      _
    %3754 = vsyncpa [#allocation3], 1
    %s3755 = scalar_lea.sflag [#allocation3], 1
    %3756 = vsyncpa %s3755, 1
    %3757 = vsyncpa [#allocation6], 1
    %3758 = vsyncpa [#allocation4], 1
    %s3759 = scalar_lea.sflag [#allocation4], 1
    %3760 = vsyncpa %s3759, 1

</llo_original>
